<compile_context>
chip_gen: v6e
topology: v6e:2x2x1
jax: 0.10.0
libtpu: 0.0.40
codegen_flags: <defaults>
</compile_context>

<pallas_src>
import functools
import math

import jax
import jax.numpy as jnp
from jax import lax
from jax.experimental import pallas as pl
from jax.experimental.pallas import tpu as pltpu


# ---------------- Fused projection + multi-head attention kernel ----------------
def _fused_attn_kernel(
    xq_ref, xk_ref, xv_ref,          # (S, H) activation tiles (batch dim squeezed)
    wq_ref, wkr_ref, wv_ref,         # Wq/Wv: (H, GW) columns; Wk: (GW, H) rows
    bq_ref, bkT_ref, bv_ref,         # (1, GW), (GW, 1), (1, GW)
    *rest,
    heads_per_block, head_dim, scale, precision, write_probs,
):
    if write_probs:
        ctx_ref, probs_ref, acc_ref = rest
    else:
        ctx_ref, acc_ref = rest
        probs_ref = None

    in_dtype = xq_ref.dtype

    # --- Projections for this head group (MXU, f32 accumulation) ---
    q = jnp.dot(xq_ref[...], wq_ref[...],
                preferred_element_type=jnp.float32, precision=precision)
    q = (q + bq_ref[...].astype(jnp.float32)) * scale      # fold 1/sqrt(dH) into q

    # K projection produced directly transposed: (GW, S).  wkr is the PyTorch
    # (out, in) weight, so this is a single MXU-native NT contraction; per-head
    # kT slices below are sublane slices and the scores matmul needs no transpose.
    kT = lax.dot_general(wkr_ref[...], xk_ref[...],
                         dimension_numbers=(((1,), (1,)), ((), ())),
                         preferred_element_type=jnp.float32, precision=precision)
    kT = kT + bkT_ref[...].astype(jnp.float32)

    v = jnp.dot(xv_ref[...], wv_ref[...],
                preferred_element_type=jnp.float32, precision=precision)
    v = v + bv_ref[...].astype(jnp.float32)

    # Keep attention matmul operands in the model dtype (bf16 stays bf16 on MXU).
    q = q.astype(in_dtype)
    kT = kT.astype(in_dtype)
    v = v.astype(in_dtype)

    for h in range(heads_per_block):                 # static unroll over heads
        lo = h * head_dim
        q_h = q[:, lo:lo + head_dim]                 # (S, dH)
        kT_h = kT[lo:lo + head_dim, :]               # (dH, S) sublane slice
        v_h = v[:, lo:lo + head_dim]                 # (S, dH)

        # scores = (q_h / sqrt(dH)) @ k_h^T, plain NN matmul thanks to kT.
        scores = jnp.dot(q_h, kT_h,
                         preferred_element_type=jnp.float32, precision=precision)

        # Numerically stable softmax, entirely in f32 (v5e has no bf16 VPU/EUP).
        m = jnp.max(scores, axis=-1, keepdims=True)
        e = jnp.exp(scores - m)
        denom = jnp.sum(e, axis=-1, keepdims=True)
        probs = e * pl.reciprocal(denom, approx=False)   # exact: probs are exported

        # TODO(synk): attention dropout is identity in eval mode; head_mask is None.
        if write_probs:
            probs_ref[h] = probs.astype(probs_ref.dtype)

        ctx_h = jnp.dot(probs.astype(v_h.dtype), v_h,
                        preferred_element_type=jnp.float32, precision=precision)
        # Per-head scratch write: bounds live ranges to one head's temporaries,
        # no concatenate of all per-head partials at the end.
        acc_ref[:, lo:lo + head_dim] = ctx_h

    ctx_ref[...] = acc_ref[...].astype(ctx_ref.dtype)    # lane-dense (S, GW) store


# ---------------- VMEM budgeting / head-group selection ----------------
def _vmem_footprint_bytes(heads_per_block, head_dim, hidden, seq, itemsize,
                          write_probs):
    gw = heads_per_block * head_dim
    acts = 3 * seq * hidden * itemsize * 2        # double-buffered Q/K/V tiles
    wts = 3 * hidden * gw * itemsize * 2          # double-buffered weight slices
    bias = 3 * max(gw, 128) * itemsize * 2
    ctx = seq * gw * itemsize * 2
    probs = (heads_per_block * seq * seq * itemsize * 2) if write_probs else 0
    scratch = seq * gw * 4                        # f32 accumulator
    return acts + wts + bias + ctx + probs + scratch


def _pick_heads_per_block(num_heads, head_dim, hidden, seq, itemsize, write_probs,
                          vmem_budget_bytes=40 * 1024 * 1024):
    def fits(g):
        return _vmem_footprint_bytes(g, head_dim, hidden, seq, itemsize,
                                     write_probs) <= vmem_budget_bytes

    # Prefer ALL heads per step: weights stay VMEM-resident across the batch and
    # the projection GEMM N-dim is the full hidden width.
    if fits(num_heads):
        return num_heads
    divisors = [g for g in range(num_heads - 1, 0, -1) if num_heads % g == 0]
    # VMEM fallback: keep the group width a multiple of 256 lanes (v6e/v7x MXU),
    # then 128 (v5e), then anything that fits.
    for lane_mult in (256, 128):
        for g in divisors:
            if (g * head_dim) % lane_mult == 0 and fits(g):
                return g
    for g in divisors:
        if fits(g):
            return g
    return 1


# ---------------- Module wrapper ----------------
def vit_self_attention_modified(K, Q, V, params, num_attention_heads,
                                head_mask=None, output_attentions=True,
                                heads_per_block=None):
    """Mirrors ViTSelfAttention_modified.forward(K, Q, V, ...).

    K, Q, V: (B, S, hidden).  Returns (context,) or (context, probs).
    """
    if head_mask is not None:
        # TODO(synk): head_mask is always None in the reference usage; supporting it
        # would be a broadcast multiply on `probs` inside the kernel.
        raise NotImplementedError("head_mask is not supported")

    B, S, H = Q.shape
    nH = num_attention_heads
    dH = H // nH
    assert nH * dH == H
    itemsize = jnp.dtype(Q.dtype).itemsize

    if heads_per_block is None:
        heads_per_block = _pick_heads_per_block(nH, dH, H, S, itemsize,
                                                output_attentions)
    assert nH % heads_per_block == 0
    G = nH // heads_per_block          # number of head groups (usually 1)
    GW = heads_per_block * dH          # group width along the hidden dim
    scale = 1.0 / math.sqrt(dH)

    # HIGHEST precision for f32 parity with the PyTorch fp32 reference; bf16/other
    # dtypes use the default (native MXU) path.
    precision = (lax.Precision.HIGHEST
                 if jnp.dtype(Q.dtype) == jnp.dtype(jnp.float32) else None)

    # PyTorch Linear weight is (out, in).  Q/V weights are transposed so the kernel
    # computes x @ W + b; the K weight stays in (out, in) row layout so the kernel
    # produces k^T directly with one NT matmul (bias transposed to match).
    wq, bq = params["wq"].T, params["bq"].reshape(1, H)
    wv, bv = params["wv"].T, params["bv"].reshape(1, H)
    wkr, bkT = params["wk"], params["bk"].reshape(H, 1)

    kernel = functools.partial(
        _fused_attn_kernel,
        heads_per_block=heads_per_block, head_dim=dH, scale=scale,
        precision=precision, write_probs=output_attentions)

    in_specs = [
        # Activations: one (S, H) tile per batch element.  Block index depends only
        # on b (the innermost grid axis); the weight block indices depend only on g,
        # so with G == 1 weights are DMA'd once and stay VMEM-resident.
        pl.BlockSpec((None, S, H), lambda g, b: (b, 0, 0)),   # Q
        pl.BlockSpec((None, S, H), lambda g, b: (b, 0, 0)),   # K
        pl.BlockSpec((None, S, H), lambda g, b: (b, 0, 0)),   # V
        pl.BlockSpec((H, GW), lambda g, b: (0, g)),           # Wq (x @ W layout)
        pl.BlockSpec((GW, H), lambda g, b: (g, 0)),           # Wk rows (out, in)
        pl.BlockSpec((H, GW), lambda g, b: (0, g)),           # Wv
        pl.BlockSpec((1, GW), lambda g, b: (0, g)),           # bq
        pl.BlockSpec((GW, 1), lambda g, b: (g, 0)),           # bk (transposed)
        pl.BlockSpec((1, GW), lambda g, b: (0, g)),           # bv
    ]

    ctx_spec = pl.BlockSpec((None, S, GW), lambda g, b: (b, 0, g))
    ctx_shape = jax.ShapeDtypeStruct((B, S, H), Q.dtype)
    if output_attentions:
        out_shape = (ctx_shape, jax.ShapeDtypeStruct((B, nH, S, S), Q.dtype))
        out_specs = [
            ctx_spec,
            pl.BlockSpec((None, heads_per_block, S, S), lambda g, b: (b, g, 0, 0)),
        ]
    else:
        out_shape = ctx_shape
        out_specs = ctx_spec

    footprint = _vmem_footprint_bytes(heads_per_block, dH, H, S, itemsize,
                                      output_attentions)
    vmem_limit = int(min(64 * 1024 * 1024,
                         max(32 * 1024 * 1024, int(1.5 * footprint))))

    out = pl.pallas_call(
        kernel,
        out_shape=out_shape,
        grid_spec=pltpu.PrefetchScalarGridSpec(
            num_scalar_prefetch=0,
            # Grid = (head_group, batch), batch innermost: weight slices are DMA'd
            # once per group (once total when G == 1), activations once per batch.
            grid=(G, B),
            in_specs=in_specs,
            out_specs=out_specs,
            scratch_shapes=[pltpu.VMEM((S, GW), jnp.float32)],
        ),
        compiler_params=pltpu.CompilerParams(
            dimension_semantics=("parallel", "parallel"),
            vmem_limit_bytes=vmem_limit,
        ),
    )(Q, K, V, wq, wkr, wv, bq, bkT, bv)

    if output_attentions:
        ctx, probs = out
        return ctx, probs
    return (out,)


# ---------------- Pure-JAX reference for validation ----------------
def _reference(K, Q, V, params, num_attention_heads):
    B, S, H = Q.shape
    nH = num_attention_heads
    dH = H // nH
    prec = lax.Precision.HIGHEST
    q = jnp.einsum("bsh,oh->bso", Q, params["wq"], precision=prec) + params["bq"]
    k = jnp.einsum("bsh,oh->bso", K, params["wk"], precision=prec) + params["bk"]
    v = jnp.einsum("bsh,oh->bso", V, params["wv"], precision=prec) + params["bv"]
    sh = lambda x: x.reshape(B, S, nH, dH).transpose(0, 2, 1, 3)
    q, k, v = sh(q), sh(k), sh(v)
    scores = jnp.einsum("bhqd,bhkd->bhqk", q, k, precision=prec) / math.sqrt(dH)
    probs = jax.nn.softmax(scores, axis=-1)
    ctx = jnp.einsum("bhqk,bhkd->bhqd", probs, v, precision=prec)
    ctx = ctx.transpose(0, 2, 1, 3).reshape(B, S, H)
    return ctx, probs


if __name__ == "__main__":
    # Small ViT-like config: hidden=32, heads=4, seq=8, batch=2.
    B, S, H, nH = 2, 8, 32, 4

    key = jax.random.PRNGKey(0)
    keys = jax.random.split(key, 9)
    w_scale = 1.0 / math.sqrt(H)
    params = {
        "wq": jax.random.normal(keys[0], (H, H), jnp.float32) * w_scale,
        "bq": jax.random.normal(keys[1], (H,), jnp.float32) * 0.01,
        "wk": jax.random.normal(keys[2], (H, H), jnp.float32) * w_scale,
        "bk": jax.random.normal(keys[3], (H,), jnp.float32) * 0.01,
        "wv": jax.random.normal(keys[4], (H, H), jnp.float32) * w_scale,
        "bv": jax.random.normal(keys[5], (H,), jnp.float32) * 0.01,
    }
    K_in = jax.random.normal(keys[6], (B, S, H), jnp.float32)
    Q_in = jax.random.normal(keys[7], (B, S, H), jnp.float32)
    V_in = jax.random.normal(keys[8], (B, S, H), jnp.float32)

    # Path with attention probs (output_attentions=True).
    ctx, probs = vit_self_attention_modified(K_in, Q_in, V_in, params, nH,
                                             output_attentions=True)
    ctx = jax.block_until_ready(ctx)
    probs = jax.block_until_ready(probs)

    ctx_ref, probs_ref = _reference(K_in, Q_in, V_in, params, nH)
    assert ctx.shape == (B, S, H)
    assert probs.shape == (B, nH, S, S)
    assert jnp.allclose(ctx, ctx_ref, atol=1e-4, rtol=1e-4)
    assert jnp.allclose(probs, probs_ref, atol=1e-4, rtol=1e-4)

    # Path without attention probs (skips the largest HBM writeback stream).
    (ctx_only,) = vit_self_attention_modified(K_in, Q_in, V_in, params, nH,
                                              output_attentions=False)
    ctx_only = jax.block_until_ready(ctx_only)
    assert jnp.allclose(ctx_only, ctx_ref, atol=1e-4, rtol=1e-4)

    print("KERNEL_OK")
</pallas_src>

<mosaic_0001>
module attributes {stable_mosaic.version = 11 : i64} {
  func.func @_fused_attn_kernel(%arg0: i32, %arg1: i32, %arg2: memref<1x8x32xf32, #tpu.memory_space<vmem>>, %arg3: memref<1x8x32xf32, #tpu.memory_space<vmem>>, %arg4: memref<1x8x32xf32, #tpu.memory_space<vmem>>, %arg5: memref<32x32xf32, #tpu.memory_space<vmem>>, %arg6: memref<32x32xf32, #tpu.memory_space<vmem>>, %arg7: memref<32x32xf32, #tpu.memory_space<vmem>>, %arg8: memref<1x32xf32, #tpu.memory_space<vmem>>, %arg9: memref<32x1xf32, #tpu.memory_space<vmem>>, %arg10: memref<1x32xf32, #tpu.memory_space<vmem>>, %arg11: memref<1x8x32xf32, #tpu.memory_space<vmem>>, %arg12: memref<1x4x8x8xf32, #tpu.memory_space<vmem>>, %arg13: memref<8x32xf32, #tpu.memory_space<vmem>>) attributes {dimension_semantics = [#tpu.dimension_semantics<parallel>, #tpu.dimension_semantics<parallel>], iteration_bounds = array<i64: 1, 2>, scalar_prefetch = 0 : i64, scratch_operands = 1 : i64, tpu.core_type = #tpu.core_type<tc>, window_params = [{transform_indices = @transform_0, window_bounds = array<i64: 1, 8, 32>}, {transform_indices = @transform_1, window_bounds = array<i64: 1, 8, 32>}, {transform_indices = @transform_2, window_bounds = array<i64: 1, 8, 32>}, {transform_indices = @transform_3, window_bounds = array<i64: 32, 32>}, {transform_indices = @transform_4, window_bounds = array<i64: 32, 32>}, {transform_indices = @transform_5, window_bounds = array<i64: 32, 32>}, {transform_indices = @transform_6, window_bounds = array<i64: 1, 32>}, {transform_indices = @transform_7, window_bounds = array<i64: 32, 1>}, {transform_indices = @transform_8, window_bounds = array<i64: 1, 32>}, {transform_indices = @transform_9, window_bounds = array<i64: 1, 8, 32>}, {transform_indices = @transform_10, window_bounds = array<i64: 1, 4, 8, 8>}]} {
    %c0 = arith.constant 0 : index
    %c0_0 = arith.constant 0 : index
    %c0_1 = arith.constant 0 : index
    %0 = vector.load %arg2[%c0, %c0_0, %c0_1] : memref<1x8x32xf32, #tpu.memory_space<vmem>>, vector<1x8x32xf32>
    %1 = vector.shape_cast %0 : vector<1x8x32xf32> to vector<8x32xf32>
    %c0_2 = arith.constant 0 : index
    %c0_3 = arith.constant 0 : index
    %2 = vector.load %arg5[%c0_2, %c0_3] : memref<32x32xf32, #tpu.memory_space<vmem>>, vector<32x32xf32>
    %cst = arith.constant dense<0.000000e+00> : vector<8x32xf32>
    %3 = tpu.matmul %1, %2, %cst {dimension_numbers = #tpu.dot_dimension_numbers<[1], [0], [0], [1], [0, 0, 1, 1], [], []>, precision = #tpu.contract_precision<fp32>} : vector<8x32xf32>, vector<32x32xf32>, vector<8x32xf32> -> vector<8x32xf32>
    %c0_4 = arith.constant 0 : index
    %c0_5 = arith.constant 0 : index
    %4 = vector.load %arg8[%c0_4, %c0_5] : memref<1x32xf32, #tpu.memory_space<vmem>>, vector<1x32xf32>
    %5 = vector.broadcast %4 : vector<1x32xf32> to vector<8x32xf32>
    %6 = arith.addf %3, %5 : vector<8x32xf32>
    %cst_6 = arith.constant 0.353553385 : f32
    %7 = vector.broadcast %cst_6 : f32 to vector<8x32xf32>
    %8 = arith.mulf %6, %7 : vector<8x32xf32>
    %c0_7 = arith.constant 0 : index
    %c0_8 = arith.constant 0 : index
    %9 = vector.load %arg6[%c0_7, %c0_8] : memref<32x32xf32, #tpu.memory_space<vmem>>, vector<32x32xf32>
    %c0_9 = arith.constant 0 : index
    %c0_10 = arith.constant 0 : index
    %c0_11 = arith.constant 0 : index
    %10 = vector.load %arg3[%c0_9, %c0_10, %c0_11] : memref<1x8x32xf32, #tpu.memory_space<vmem>>, vector<1x8x32xf32>
    %11 = vector.shape_cast %10 : vector<1x8x32xf32> to vector<8x32xf32>
    %cst_12 = arith.constant dense<0.000000e+00> : vector<32x8xf32>
    %12 = tpu.matmul %9, %11, %cst_12 {dimension_numbers = #tpu.dot_dimension_numbers<[1], [1], [0], [0], [0, 0, 1, 0], [], []>, precision = #tpu.contract_precision<fp32>} : vector<32x32xf32>, vector<8x32xf32>, vector<32x8xf32> -> vector<32x8xf32>
    %c0_13 = arith.constant 0 : index
    %c0_14 = arith.constant 0 : index
    %13 = vector.load %arg9[%c0_13, %c0_14] : memref<32x1xf32, #tpu.memory_space<vmem>>, vector<32x1xf32>
    %14 = vector.broadcast %13 : vector<32x1xf32> to vector<32x8xf32>
    %15 = arith.addf %12, %14 : vector<32x8xf32>
    %c0_15 = arith.constant 0 : index
    %c0_16 = arith.constant 0 : index
    %c0_17 = arith.constant 0 : index
    %16 = vector.load %arg4[%c0_15, %c0_16, %c0_17] : memref<1x8x32xf32, #tpu.memory_space<vmem>>, vector<1x8x32xf32>
    %17 = vector.shape_cast %16 : vector<1x8x32xf32> to vector<8x32xf32>
    %c0_18 = arith.constant 0 : index
    %c0_19 = arith.constant 0 : index
    %18 = vector.load %arg7[%c0_18, %c0_19] : memref<32x32xf32, #tpu.memory_space<vmem>>, vector<32x32xf32>
    %cst_20 = arith.constant dense<0.000000e+00> : vector<8x32xf32>
    %19 = tpu.matmul %17, %18, %cst_20 {dimension_numbers = #tpu.dot_dimension_numbers<[1], [0], [0], [1], [0, 0, 1, 1], [], []>, precision = #tpu.contract_precision<fp32>} : vector<8x32xf32>, vector<32x32xf32>, vector<8x32xf32> -> vector<8x32xf32>
    %c0_21 = arith.constant 0 : index
    %c0_22 = arith.constant 0 : index
    %20 = vector.load %arg10[%c0_21, %c0_22] : memref<1x32xf32, #tpu.memory_space<vmem>>, vector<1x32xf32>
    %21 = vector.broadcast %20 : vector<1x32xf32> to vector<8x32xf32>
    %22 = arith.addf %19, %21 : vector<8x32xf32>
    %23 = vector.extract_strided_slice %8 {offsets = [0, 0], sizes = [8, 8], strides = [1, 1]} : vector<8x32xf32> to vector<8x8xf32>
    %24 = vector.extract_strided_slice %15 {offsets = [0, 0], sizes = [8, 8], strides = [1, 1]} : vector<32x8xf32> to vector<8x8xf32>
    %25 = vector.extract_strided_slice %22 {offsets = [0, 0], sizes = [8, 8], strides = [1, 1]} : vector<8x32xf32> to vector<8x8xf32>
    %cst_23 = arith.constant dense<0.000000e+00> : vector<8x8xf32>
    %26 = tpu.matmul %23, %24, %cst_23 {dimension_numbers = #tpu.dot_dimension_numbers<[1], [0], [0], [1], [0, 0, 1, 1], [], []>, precision = #tpu.contract_precision<fp32>} : vector<8x8xf32>, vector<8x8xf32>, vector<8x8xf32> -> vector<8x8xf32>
    %cst_24 = arith.constant dense<0xFF800000> : vector<8xf32>
    %27 = vector.multi_reduction <maximumf>, %26, %cst_24 [1] : vector<8x8xf32> to vector<8xf32>
    %28 = vector.shape_cast %27 : vector<8xf32> to vector<8x1xf32>
    %29 = vector.broadcast %28 : vector<8x1xf32> to vector<8x8xf32>
    %30 = arith.subf %26, %29 : vector<8x8xf32>
    %31 = math.exp %30 : vector<8x8xf32>
    %cst_25 = arith.constant dense<0.000000e+00> : vector<8xf32>
    %32 = vector.multi_reduction <add>, %31, %cst_25 [1] : vector<8x8xf32> to vector<8xf32>
    %33 = vector.shape_cast %32 : vector<8xf32> to vector<8x1xf32>
    %34 = tpu.reciprocal %33 : vector<8x1xf32> -> vector<8x1xf32>
    %35 = vector.broadcast %34 : vector<8x1xf32> to vector<8x8xf32>
    %36 = arith.mulf %31, %35 : vector<8x8xf32>
    %c0_26 = arith.constant 0 : index
    %c0_27 = arith.constant 0 : index
    %c0_28 = arith.constant 0 : index
    %c0_29 = arith.constant 0 : index
    %37 = vector.load %arg12[%c0_26, %c0_27, %c0_28, %c0_29] : memref<1x4x8x8xf32, #tpu.memory_space<vmem>>, vector<1x1x8x8xf32>
    %38 = vector.shape_cast %37 : vector<1x1x8x8xf32> to vector<8x8xf32>
    %39 = vector.shape_cast %36 : vector<8x8xf32> to vector<1x1x8x8xf32>
    tpu.vector_store %arg12[%c0_26, %c0_27, %c0_28, %c0_29], %39 {strides = array<i32>} : memref<1x4x8x8xf32, #tpu.memory_space<vmem>>, vector<1x1x8x8xf32>,
    %cst_30 = arith.constant dense<0.000000e+00> : vector<8x8xf32>
    %40 = tpu.matmul %36, %25, %cst_30 {dimension_numbers = #tpu.dot_dimension_numbers<[1], [0], [0], [1], [0, 0, 1, 1], [], []>, precision = #tpu.contract_precision<fp32>} : vector<8x8xf32>, vector<8x8xf32>, vector<8x8xf32> -> vector<8x8xf32>
    %c0_31 = arith.constant 0 : index
    %c0_32 = arith.constant 0 : index
    %41 = vector.load %arg13[%c0_31, %c0_32] : memref<8x32xf32, #tpu.memory_space<vmem>>, vector<8x8xf32>
    tpu.vector_store %arg13[%c0_31, %c0_32], %40 {strides = array<i32>} : memref<8x32xf32, #tpu.memory_space<vmem>>, vector<8x8xf32>,
    %42 = vector.extract_strided_slice %8 {offsets = [0, 8], sizes = [8, 8], strides = [1, 1]} : vector<8x32xf32> to vector<8x8xf32>
    %43 = vector.extract_strided_slice %15 {offsets = [8, 0], sizes = [8, 8], strides = [1, 1]} : vector<32x8xf32> to vector<8x8xf32>
    %44 = vector.extract_strided_slice %22 {offsets = [0, 8], sizes = [8, 8], strides = [1, 1]} : vector<8x32xf32> to vector<8x8xf32>
    %cst_33 = arith.constant dense<0.000000e+00> : vector<8x8xf32>
    %45 = tpu.matmul %42, %43, %cst_33 {dimension_numbers = #tpu.dot_dimension_numbers<[1], [0], [0], [1], [0, 0, 1, 1], [], []>, precision = #tpu.contract_precision<fp32>} : vector<8x8xf32>, vector<8x8xf32>, vector<8x8xf32> -> vector<8x8xf32>
    %cst_34 = arith.constant dense<0xFF800000> : vector<8xf32>
    %46 = vector.multi_reduction <maximumf>, %45, %cst_34 [1] : vector<8x8xf32> to vector<8xf32>
    %47 = vector.shape_cast %46 : vector<8xf32> to vector<8x1xf32>
    %48 = vector.broadcast %47 : vector<8x1xf32> to vector<8x8xf32>
    %49 = arith.subf %45, %48 : vector<8x8xf32>
    %50 = math.exp %49 : vector<8x8xf32>
    %cst_35 = arith.constant dense<0.000000e+00> : vector<8xf32>
    %51 = vector.multi_reduction <add>, %50, %cst_35 [1] : vector<8x8xf32> to vector<8xf32>
    %52 = vector.shape_cast %51 : vector<8xf32> to vector<8x1xf32>
    %53 = tpu.reciprocal %52 : vector<8x1xf32> -> vector<8x1xf32>
    %54 = vector.broadcast %53 : vector<8x1xf32> to vector<8x8xf32>
    %55 = arith.mulf %50, %54 : vector<8x8xf32>
    %c0_36 = arith.constant 0 : index
    %c1 = arith.constant 1 : index
    %c0_37 = arith.constant 0 : index
    %c0_38 = arith.constant 0 : index
    %56 = vector.load %arg12[%c0_36, %c1, %c0_37, %c0_38] : memref<1x4x8x8xf32, #tpu.memory_space<vmem>>, vector<1x1x8x8xf32>
    %57 = vector.shape_cast %56 : vector<1x1x8x8xf32> to vector<8x8xf32>
    %58 = vector.shape_cast %55 : vector<8x8xf32> to vector<1x1x8x8xf32>
    tpu.vector_store %arg12[%c0_36, %c1, %c0_37, %c0_38], %58 {strides = array<i32>} : memref<1x4x8x8xf32, #tpu.memory_space<vmem>>, vector<1x1x8x8xf32>,
    %cst_39 = arith.constant dense<0.000000e+00> : vector<8x8xf32>
    %59 = tpu.matmul %55, %44, %cst_39 {dimension_numbers = #tpu.dot_dimension_numbers<[1], [0], [0], [1], [0, 0, 1, 1], [], []>, precision = #tpu.contract_precision<fp32>} : vector<8x8xf32>, vector<8x8xf32>, vector<8x8xf32> -> vector<8x8xf32>
    %c0_40 = arith.constant 0 : index
    %c8 = arith.constant 8 : index
    %60 = vector.load %arg13[%c0_40, %c8] : memref<8x32xf32, #tpu.memory_space<vmem>>, vector<8x8xf32>
    tpu.vector_store %arg13[%c0_40, %c8], %59 {strides = array<i32>} : memref<8x32xf32, #tpu.memory_space<vmem>>, vector<8x8xf32>,
    %61 = vector.extract_strided_slice %8 {offsets = [0, 16], sizes = [8, 8], strides = [1, 1]} : vector<8x32xf32> to vector<8x8xf32>
    %62 = vector.extract_strided_slice %15 {offsets = [16, 0], sizes = [8, 8], strides = [1, 1]} : vector<32x8xf32> to vector<8x8xf32>
    %63 = vector.extract_strided_slice %22 {offsets = [0, 16], sizes = [8, 8], strides = [1, 1]} : vector<8x32xf32> to vector<8x8xf32>
    %cst_41 = arith.constant dense<0.000000e+00> : vector<8x8xf32>
    %64 = tpu.matmul %61, %62, %cst_41 {dimension_numbers = #tpu.dot_dimension_numbers<[1], [0], [0], [1], [0, 0, 1, 1], [], []>, precision = #tpu.contract_precision<fp32>} : vector<8x8xf32>, vector<8x8xf32>, vector<8x8xf32> -> vector<8x8xf32>
    %cst_42 = arith.constant dense<0xFF800000> : vector<8xf32>
    %65 = vector.multi_reduction <maximumf>, %64, %cst_42 [1] : vector<8x8xf32> to vector<8xf32>
    %66 = vector.shape_cast %65 : vector<8xf32> to vector<8x1xf32>
    %67 = vector.broadcast %66 : vector<8x1xf32> to vector<8x8xf32>
    %68 = arith.subf %64, %67 : vector<8x8xf32>
    %69 = math.exp %68 : vector<8x8xf32>
    %cst_43 = arith.constant dense<0.000000e+00> : vector<8xf32>
    %70 = vector.multi_reduction <add>, %69, %cst_43 [1] : vector<8x8xf32> to vector<8xf32>
    %71 = vector.shape_cast %70 : vector<8xf32> to vector<8x1xf32>
    %72 = tpu.reciprocal %71 : vector<8x1xf32> -> vector<8x1xf32>
    %73 = vector.broadcast %72 : vector<8x1xf32> to vector<8x8xf32>
    %74 = arith.mulf %69, %73 : vector<8x8xf32>
    %c0_44 = arith.constant 0 : index
    %c2 = arith.constant 2 : index
    %c0_45 = arith.constant 0 : index
    %c0_46 = arith.constant 0 : index
    %75 = vector.load %arg12[%c0_44, %c2, %c0_45, %c0_46] : memref<1x4x8x8xf32, #tpu.memory_space<vmem>>, vector<1x1x8x8xf32>
    %76 = vector.shape_cast %75 : vector<1x1x8x8xf32> to vector<8x8xf32>
    %77 = vector.shape_cast %74 : vector<8x8xf32> to vector<1x1x8x8xf32>
    tpu.vector_store %arg12[%c0_44, %c2, %c0_45, %c0_46], %77 {strides = array<i32>} : memref<1x4x8x8xf32, #tpu.memory_space<vmem>>, vector<1x1x8x8xf32>,
    %cst_47 = arith.constant dense<0.000000e+00> : vector<8x8xf32>
    %78 = tpu.matmul %74, %63, %cst_47 {dimension_numbers = #tpu.dot_dimension_numbers<[1], [0], [0], [1], [0, 0, 1, 1], [], []>, precision = #tpu.contract_precision<fp32>} : vector<8x8xf32>, vector<8x8xf32>, vector<8x8xf32> -> vector<8x8xf32>
    %c0_48 = arith.constant 0 : index
    %c16 = arith.constant 16 : index
    %79 = vector.load %arg13[%c0_48, %c16] : memref<8x32xf32, #tpu.memory_space<vmem>>, vector<8x8xf32>
    tpu.vector_store %arg13[%c0_48, %c16], %78 {strides = array<i32>} : memref<8x32xf32, #tpu.memory_space<vmem>>, vector<8x8xf32>,
    %80 = vector.extract_strided_slice %8 {offsets = [0, 24], sizes = [8, 8], strides = [1, 1]} : vector<8x32xf32> to vector<8x8xf32>
    %81 = vector.extract_strided_slice %15 {offsets = [24, 0], sizes = [8, 8], strides = [1, 1]} : vector<32x8xf32> to vector<8x8xf32>
    %82 = vector.extract_strided_slice %22 {offsets = [0, 24], sizes = [8, 8], strides = [1, 1]} : vector<8x32xf32> to vector<8x8xf32>
    %cst_49 = arith.constant dense<0.000000e+00> : vector<8x8xf32>
    %83 = tpu.matmul %80, %81, %cst_49 {dimension_numbers = #tpu.dot_dimension_numbers<[1], [0], [0], [1], [0, 0, 1, 1], [], []>, precision = #tpu.contract_precision<fp32>} : vector<8x8xf32>, vector<8x8xf32>, vector<8x8xf32> -> vector<8x8xf32>
    %cst_50 = arith.constant dense<0xFF800000> : vector<8xf32>
    %84 = vector.multi_reduction <maximumf>, %83, %cst_50 [1] : vector<8x8xf32> to vector<8xf32>
    %85 = vector.shape_cast %84 : vector<8xf32> to vector<8x1xf32>
    %86 = vector.broadcast %85 : vector<8x1xf32> to vector<8x8xf32>
    %87 = arith.subf %83, %86 : vector<8x8xf32>
    %88 = math.exp %87 : vector<8x8xf32>
    %cst_51 = arith.constant dense<0.000000e+00> : vector<8xf32>
    %89 = vector.multi_reduction <add>, %88, %cst_51 [1] : vector<8x8xf32> to vector<8xf32>
    %90 = vector.shape_cast %89 : vector<8xf32> to vector<8x1xf32>
    %91 = tpu.reciprocal %90 : vector<8x1xf32> -> vector<8x1xf32>
    %92 = vector.broadcast %91 : vector<8x1xf32> to vector<8x8xf32>
    %93 = arith.mulf %88, %92 : vector<8x8xf32>
    %c0_52 = arith.constant 0 : index
    %c3 = arith.constant 3 : index
    %c0_53 = arith.constant 0 : index
    %c0_54 = arith.constant 0 : index
    %94 = vector.load %arg12[%c0_52, %c3, %c0_53, %c0_54] : memref<1x4x8x8xf32, #tpu.memory_space<vmem>>, vector<1x1x8x8xf32>
    %95 = vector.shape_cast %94 : vector<1x1x8x8xf32> to vector<8x8xf32>
    %96 = vector.shape_cast %93 : vector<8x8xf32> to vector<1x1x8x8xf32>
    tpu.vector_store %arg12[%c0_52, %c3, %c0_53, %c0_54], %96 {strides = array<i32>} : memref<1x4x8x8xf32, #tpu.memory_space<vmem>>, vector<1x1x8x8xf32>,
    %cst_55 = arith.constant dense<0.000000e+00> : vector<8x8xf32>
    %97 = tpu.matmul %93, %82, %cst_55 {dimension_numbers = #tpu.dot_dimension_numbers<[1], [0], [0], [1], [0, 0, 1, 1], [], []>, precision = #tpu.contract_precision<fp32>} : vector<8x8xf32>, vector<8x8xf32>, vector<8x8xf32> -> vector<8x8xf32>
    %c0_56 = arith.constant 0 : index
    %c24 = arith.constant 24 : index
    %98 = vector.load %arg13[%c0_56, %c24] : memref<8x32xf32, #tpu.memory_space<vmem>>, vector<8x8xf32>
    tpu.vector_store %arg13[%c0_56, %c24], %97 {strides = array<i32>} : memref<8x32xf32, #tpu.memory_space<vmem>>, vector<8x8xf32>,
    %c0_57 = arith.constant 0 : index
    %c0_58 = arith.constant 0 : index
    %99 = vector.load %arg13[%c0_57, %c0_58] : memref<8x32xf32, #tpu.memory_space<vmem>>, vector<8x32xf32>
    %c0_59 = arith.constant 0 : index
    %c0_60 = arith.constant 0 : index
    %c0_61 = arith.constant 0 : index
    %100 = vector.load %arg11[%c0_59, %c0_60, %c0_61] : memref<1x8x32xf32, #tpu.memory_space<vmem>>, vector<1x8x32xf32>
    %101 = vector.shape_cast %100 : vector<1x8x32xf32> to vector<8x32xf32>
    %102 = vector.shape_cast %99 : vector<8x32xf32> to vector<1x8x32xf32>
    tpu.vector_store %arg11[%c0_59, %c0_60, %c0_61], %102 {strides = array<i32>} : memref<1x8x32xf32, #tpu.memory_space<vmem>>, vector<1x8x32xf32>,
    return
  }
  func.func @transform_0(%arg0: i32, %arg1: i32) -> (i32, i32, i32) {
    %c0_i32 = arith.constant 0 : i32
    %c0_i32_0 = arith.constant 0 : i32
    %c0_i32_1 = arith.constant 0 : i32
    return %arg1, %c0_i32, %c0_i32_0 : i32, i32, i32
  }
  func.func @transform_1(%arg0: i32, %arg1: i32) -> (i32, i32, i32) {
    %c0_i32 = arith.constant 0 : i32
    %c0_i32_0 = arith.constant 0 : i32
    %c0_i32_1 = arith.constant 0 : i32
    return %arg1, %c0_i32, %c0_i32_0 : i32, i32, i32
  }
  func.func @transform_2(%arg0: i32, %arg1: i32) -> (i32, i32, i32) {
    %c0_i32 = arith.constant 0 : i32
    %c0_i32_0 = arith.constant 0 : i32
    %c0_i32_1 = arith.constant 0 : i32
    return %arg1, %c0_i32, %c0_i32_0 : i32, i32, i32
  }
  func.func @transform_3(%arg0: i32, %arg1: i32) -> (i32, i32) {
    %c0_i32 = arith.constant 0 : i32
    %c0_i32_0 = arith.constant 0 : i32
    return %c0_i32, %arg0 : i32, i32
  }
  func.func @transform_4(%arg0: i32, %arg1: i32) -> (i32, i32) {
    %c0_i32 = arith.constant 0 : i32
    %c0_i32_0 = arith.constant 0 : i32
    return %arg0, %c0_i32 : i32, i32
  }
  func.func @transform_5(%arg0: i32, %arg1: i32) -> (i32, i32) {
    %c0_i32 = arith.constant 0 : i32
    %c0_i32_0 = arith.constant 0 : i32
    return %c0_i32, %arg0 : i32, i32
  }
  func.func @transform_6(%arg0: i32, %arg1: i32) -> (i32, i32) {
    %c0_i32 = arith.constant 0 : i32
    %c0_i32_0 = arith.constant 0 : i32
    return %c0_i32, %arg0 : i32, i32
  }
  func.func @transform_7(%arg0: i32, %arg1: i32) -> (i32, i32) {
    %c0_i32 = arith.constant 0 : i32
    %c0_i32_0 = arith.constant 0 : i32
    return %arg0, %c0_i32 : i32, i32
  }
  func.func @transform_8(%arg0: i32, %arg1: i32) -> (i32, i32) {
    %c0_i32 = arith.constant 0 : i32
    %c0_i32_0 = arith.constant 0 : i32
    return %c0_i32, %arg0 : i32, i32
  }
  func.func @transform_9(%arg0: i32, %arg1: i32) -> (i32, i32, i32) {
    %c0_i32 = arith.constant 0 : i32
    %c0_i32_0 = arith.constant 0 : i32
    return %arg1, %c0_i32, %arg0 : i32, i32, i32
  }
  func.func @transform_10(%arg0: i32, %arg1: i32) -> (i32, i32, i32, i32) {
    %c0_i32 = arith.constant 0 : i32
    %c0_i32_0 = arith.constant 0 : i32
    %c0_i32_1 = arith.constant 0 : i32
    return %arg1, %arg0, %c0_i32, %c0_i32_0 : i32, i32, i32, i32
  }
}

</mosaic_0001>

<llo_original>
// kernel: tpu_custom_call.1
$region0: #{tpu_custom_call.1}
  #allocation0 [shape = 'u32[]', space=smem, size = 0x4, offset = 0x4, fixed_abs, tag = 'smem constant byte address 0x4 - core index']
  #allocation1 [shape = 'u32[144,128]{1,0:T(1,128)}', space=vmem, size = 0x12000, scoped, tag = 'internal scratch']
  #allocation2 [shape = 'f32[8,32]{1,0:T(8,128)}', space=vmem, size = 0x1000, scoped, tag = 'scratch operand']
  %s0 = inlined_call_operand.hbm [shape: f32[2,8,32], index: 0, kind: input, shape index: {}]
  %s1 = inlined_call_operand.hbm [shape: f32[2,8,32], index: 1, kind: input, shape index: {}]
  %s2 = inlined_call_operand.hbm [shape: f32[2,8,32], index: 2, kind: input, shape index: {}]
  %s3 = inlined_call_operand.vmem [shape: f32[32,32], index: 3, kind: input, shape index: {}]
  %s4 = inlined_call_operand.hbm [shape: f32[32,32], index: 4, kind: input, shape index: {}]
  %s5 = inlined_call_operand.hbm [shape: f32[32,32], index: 5, kind: input, shape index: {}]
  %s6 = inlined_call_operand.vmem [shape: f32[1,32], index: 6, kind: input, shape index: {}]
  %s7 = inlined_call_operand.vmem [shape: f32[32,1], index: 7, kind: input, shape index: {}]
  %s8 = inlined_call_operand.vmem [shape: f32[1,32], index: 8, kind: input, shape index: {}]
  %s9 = inlined_call_operand.hbm [shape: f32[2,8,32], index: 9, kind: output, shape index: {0}]
  %s10 = inlined_call_operand.hbm [shape: f32[2,4,8,8], index: 10, kind: output, shape index: {1}]
  %11 = xla_tuple %s9, %s10
  %s12 = sld [smem:[#allocation0]]
  $region97: #{tpu_custom_call.1} parent=0
    _
  %s14 = ssub.s32 1, %s12
  %s15 = scalar_select 0, %s14, %s12
  $region1: #{tpu_custom_call.1} parent=0
    #allocation3 [shape = 'u8[8192]{0}', space=vmem, size = 0x2000, scoped, tag = 'input window, operand 0']
    #allocation4 [shape = 's32[2]{0}', space=sflag, size = 0x8, scoped, tag = 'scoped memory for tpu_custom_call.1']
    #allocation5 [shape = 's32[2]{0}', space=sflag, size = 0x8, scoped, tag = 'scoped memory for tpu_custom_call.1']
    #allocation6 [shape = 'u8[8192]{0}', space=vmem, size = 0x2000, scoped, tag = 'input window, operand 1']
    #allocation7 [shape = 's32[2]{0}', space=sflag, size = 0x8, scoped, tag = 'scoped memory for tpu_custom_call.1']
    #allocation8 [shape = 'u8[8192]{0}', space=vmem, size = 0x2000, scoped, tag = 'input window, operand 2']
    #allocation9 [shape = 'u8[16384]{0}', space=vmem, size = 0x4000, scoped, tag = 'input window, operand 4, single buffered']
    #allocation10 [shape = 's32[1]{0}', space=sflag, size = 0x4, scoped, tag = 'scoped memory for tpu_custom_call.1']
    #allocation11 [shape = 'u8[16384]{0}', space=vmem, size = 0x4000, scoped, tag = 'input window, operand 5, single buffered']
    #allocation12 [shape = 'u8[8192]{0}', space=vmem, size = 0x2000, scoped, tag = 'output window, operand 0']
    #allocation13 [shape = 'u8[32768]{0}', space=vmem, size = 0x8000, scoped, tag = 'output window, operand 1']
    #allocation14 [shape = 's32[2]{0}', space=sflag, size = 0x8, scoped, tag = 'scoped memory for tpu_custom_call.1']
    %16 = vsyncpa [#allocation4], 0
    %s17 = scalar_lea.sflag [#allocation4], 1
    %18 = vsyncpa %s17, 0
    %19 = vsyncpa [#allocation7], 0
    %s20 = scalar_lea.sflag [#allocation7], 1
    %21 = vsyncpa %s20, 0
    %22 = vsyncpa [#allocation10], 0
    %23 = vsyncpa [#allocation5], 0
    %s24 = scalar_lea.sflag [#allocation5], 1
    %25 = vsyncpa %s24, 0
    %26 = vsyncpa [#allocation14], 0
    %s27 = scalar_lea.sflag [#allocation14], 1
    %28 = vsyncpa %s27, 0
    loop: start=0, step=1, limit=4
    $region2: #{tpu_custom_call.1} parent=1 // loop_pre_header
      _
    $region3: #{tpu_custom_call.1} parent=1 // loop_header
      %s30 = sphi 0, %s34
      %p31 = scmp.ge.s32.totalorder %s30, 4
      %s37 = sphi 0, %s49
      %s38 = sphi 0, %s45
      %s39 = sphi 0, %s37
      %s40 = sphi 0, %s38
      %s41 = sphi 0, %s39
      %s42 = sphi 0, %s40
      %s52 = sphi 0, %s54
      %s55 = sphi 0, %s52
      %s56 = sphi 0, %s55
      %s72 = sphi 0, %s56
      %s78 = sphi 0, %s80
      %s81 = sphi 0, %s78
      %s82 = sphi 0, %s81
      %s98 = sphi 0, %s82
      %s104 = sphi 0, %s106
      %s107 = sphi 0, %s104
      %s108 = sphi 0, %s107
      %s124 = sphi 0, %s108
      %s130 = sphi 0, %s132
      %s133 = sphi 0, %s130
      %s134 = sphi 0, %s133
      %s150 = sphi 0, %s134
      %s156 = sphi 0, %s158
      %s159 = sphi 0, %s156
      %s160 = sphi 0, %s159
      %s176 = sphi 0, %s160
      %s182 = sphi 0, %s184
      %s185 = sphi 0, %s182
      %s186 = sphi 0, %s185
      %s202 = sphi 0, %s186
      %s208 = sphi 0, %s210
      %s211 = sphi 0, %s208
      %s212 = sphi 0, %s211
      %s228 = sphi 0, %s212
      %s234 = sphi 0, %s236
      %s237 = sphi 0, %s234
      %s238 = sphi 0, %s237
      %s254 = sphi 0, %s238
      %s260 = sphi 0, %s262
      %s263 = sphi 0, %s260
      %s264 = sphi 0, %s263
      %s280 = sphi 0, %s264
      %s288 = sphi 0, %s290
      %s291 = sphi 0, %s288
      %s292 = sphi 0, %s291
      %s308 = sphi 0, %s292
      %s316 = sphi 0, %s318
      %s319 = sphi 0, %s316
      %s320 = sphi 0, %s319
      %s336 = sphi 0, %s320
    $region4: #{tpu_custom_call.1} parent=1 // loop_header_branch
      %33 = sbr.rel (%p31) target = $region8
    $region5: #{tpu_custom_call.1} parent=1 // loop_body
      %s35 = ssub.s32 %s30, 1
      %s36 = ssub.s32 %s30, 2
      %s43 = sadd.s32 1, %s38
      %p44 = scmp.ge.s32.totalorder %s43, 2
      %s45 = scalar_select %p44, 0, %s43
      %s46 = sadd.s32 1, %s37
      %s47 = scalar_select %p44, %s46, %s37
      %p48 = scmp.ge.s32.totalorder %s47, 1
      %s49 = scalar_select %p48, 0, %s47
      %s50 = ssub.s32 %s38, %s45
      %p51 = scmp.eq.s32.totalorder %s50, 0
      %s53 = sadd.s32 %s52, 1
      %s54 = scalar_select %p51, %s52, %s53
      %p57 = pneg %p51
      %p58 = scmp.eq.s32.totalorder %s30, 1
      %p59 = por %p57, %p58
      %p60 = scmp.ne.s32.totalorder %s52, %s55
      %p61 = scmp.eq.s32.totalorder %s30, 0
      %p62 = por %p60, %p61
      %p63 = scmp.ne.s32.totalorder %s52, %s55
      %p64 = scmp.eq.s32.totalorder %s35, 1
      %p65 = por %p63, %p64
      %p66 = scmp.ne.s32.totalorder %s55, %s56
      %p67 = scmp.eq.s32.totalorder %s35, 0
      %p68 = por %p66, %p67
      %p69 = scmp.ne.s32.totalorder %s55, %s56
      %p70 = scmp.eq.s32.totalorder %s36, 1
      %p71 = por %p69, %p70
      %p73 = scmp.ne.s32.totalorder %s56, %s72
      %p74 = scmp.eq.s32.totalorder %s36, 0
      %p75 = por %p73, %p74
      %s76 = ssub.s32 %s38, %s45
      %p77 = scmp.eq.s32.totalorder %s76, 0
      %s79 = sadd.s32 %s78, 1
      %s80 = scalar_select %p77, %s78, %s79
      %p83 = pneg %p77
      %p84 = scmp.eq.s32.totalorder %s30, 1
      %p85 = por %p83, %p84
      %p86 = scmp.ne.s32.totalorder %s78, %s81
      %p87 = scmp.eq.s32.totalorder %s30, 0
      %p88 = por %p86, %p87
      %p89 = scmp.ne.s32.totalorder %s78, %s81
      %p90 = scmp.eq.s32.totalorder %s35, 1
      %p91 = por %p89, %p90
      %p92 = scmp.ne.s32.totalorder %s81, %s82
      %p93 = scmp.eq.s32.totalorder %s35, 0
      %p94 = por %p92, %p93
      %p95 = scmp.ne.s32.totalorder %s81, %s82
      %p96 = scmp.eq.s32.totalorder %s36, 1
      %p97 = por %p95, %p96
      %p99 = scmp.ne.s32.totalorder %s82, %s98
      %p100 = scmp.eq.s32.totalorder %s36, 0
      %p101 = por %p99, %p100
      %s102 = ssub.s32 %s38, %s45
      %p103 = scmp.eq.s32.totalorder %s102, 0
      %s105 = sadd.s32 %s104, 1
      %s106 = scalar_select %p103, %s104, %s105
      %p109 = pneg %p103
      %p110 = scmp.eq.s32.totalorder %s30, 1
      %p111 = por %p109, %p110
      %p112 = scmp.ne.s32.totalorder %s104, %s107
      %p113 = scmp.eq.s32.totalorder %s30, 0
      %p114 = por %p112, %p113
      %p115 = scmp.ne.s32.totalorder %s104, %s107
      %p116 = scmp.eq.s32.totalorder %s35, 1
      %p117 = por %p115, %p116
      %p118 = scmp.ne.s32.totalorder %s107, %s108
      %p119 = scmp.eq.s32.totalorder %s35, 0
      %p120 = por %p118, %p119
      %p121 = scmp.ne.s32.totalorder %s107, %s108
      %p122 = scmp.eq.s32.totalorder %s36, 1
      %p123 = por %p121, %p122
      %p125 = scmp.ne.s32.totalorder %s108, %s124
      %p126 = scmp.eq.s32.totalorder %s36, 0
      %p127 = por %p125, %p126
      %s128 = ssub.s32 %s37, %s49
      %p129 = scmp.eq.s32.totalorder %s128, 0
      %s131 = sadd.s32 %s130, 1
      %s132 = scalar_select %p129, %s130, %s131
      %p135 = pneg %p129
      %p136 = scmp.eq.s32.totalorder %s30, 1
      %p137 = por %p135, %p136
      %p138 = scmp.ne.s32.totalorder %s130, %s133
      %p139 = scmp.eq.s32.totalorder %s30, 0
      %p140 = por %p138, %p139
      %p141 = scmp.ne.s32.totalorder %s130, %s133
      %p142 = scmp.eq.s32.totalorder %s35, 1
      %p143 = por %p141, %p142
      %p144 = scmp.ne.s32.totalorder %s133, %s134
      %p145 = scmp.eq.s32.totalorder %s35, 0
      %p146 = por %p144, %p145
      %p147 = scmp.ne.s32.totalorder %s133, %s134
      %p148 = scmp.eq.s32.totalorder %s36, 1
      %p149 = por %p147, %p148
      %p151 = scmp.ne.s32.totalorder %s134, %s150
      %p152 = scmp.eq.s32.totalorder %s36, 0
      %p153 = por %p151, %p152
      %s154 = ssub.s32 %s37, %s49
      %p155 = scmp.eq.s32.totalorder %s154, 0
      %s157 = sadd.s32 %s156, 1
      %s158 = scalar_select %p155, %s156, %s157
      %p161 = pneg %p155
      %p162 = scmp.eq.s32.totalorder %s30, 1
      %p163 = por %p161, %p162
      %p164 = scmp.ne.s32.totalorder %s156, %s159
      %p165 = scmp.eq.s32.totalorder %s30, 0
      %p166 = por %p164, %p165
      %p167 = scmp.ne.s32.totalorder %s156, %s159
      %p168 = scmp.eq.s32.totalorder %s35, 1
      %p169 = por %p167, %p168
      %p170 = scmp.ne.s32.totalorder %s159, %s160
      %p171 = scmp.eq.s32.totalorder %s35, 0
      %p172 = por %p170, %p171
      %p173 = scmp.ne.s32.totalorder %s159, %s160
      %p174 = scmp.eq.s32.totalorder %s36, 1
      %p175 = por %p173, %p174
      %p177 = scmp.ne.s32.totalorder %s160, %s176
      %p178 = scmp.eq.s32.totalorder %s36, 0
      %p179 = por %p177, %p178
      %s180 = ssub.s32 %s37, %s49
      %p181 = scmp.eq.s32.totalorder %s180, 0
      %s183 = sadd.s32 %s182, 1
      %s184 = scalar_select %p181, %s182, %s183
      %p187 = pneg %p181
      %p188 = scmp.eq.s32.totalorder %s30, 1
      %p189 = por %p187, %p188
      %p190 = scmp.ne.s32.totalorder %s182, %s185
      %p191 = scmp.eq.s32.totalorder %s30, 0
      %p192 = por %p190, %p191
      %p193 = scmp.ne.s32.totalorder %s182, %s185
      %p194 = scmp.eq.s32.totalorder %s35, 1
      %p195 = por %p193, %p194
      %p196 = scmp.ne.s32.totalorder %s185, %s186
      %p197 = scmp.eq.s32.totalorder %s35, 0
      %p198 = por %p196, %p197
      %p199 = scmp.ne.s32.totalorder %s185, %s186
      %p200 = scmp.eq.s32.totalorder %s36, 1
      %p201 = por %p199, %p200
      %p203 = scmp.ne.s32.totalorder %s186, %s202
      %p204 = scmp.eq.s32.totalorder %s36, 0
      %p205 = por %p203, %p204
      %s206 = ssub.s32 %s37, %s49
      %p207 = scmp.eq.s32.totalorder %s206, 0
      %s209 = sadd.s32 %s208, 1
      %s210 = scalar_select %p207, %s208, %s209
      %p213 = pneg %p207
      %p214 = scmp.eq.s32.totalorder %s30, 1
      %p215 = por %p213, %p214
      %p216 = scmp.ne.s32.totalorder %s208, %s211
      %p217 = scmp.eq.s32.totalorder %s30, 0
      %p218 = por %p216, %p217
      %p219 = scmp.ne.s32.totalorder %s208, %s211
      %p220 = scmp.eq.s32.totalorder %s35, 1
      %p221 = por %p219, %p220
      %p222 = scmp.ne.s32.totalorder %s211, %s212
      %p223 = scmp.eq.s32.totalorder %s35, 0
      %p224 = por %p222, %p223
      %p225 = scmp.ne.s32.totalorder %s211, %s212
      %p226 = scmp.eq.s32.totalorder %s36, 1
      %p227 = por %p225, %p226
      %p229 = scmp.ne.s32.totalorder %s212, %s228
      %p230 = scmp.eq.s32.totalorder %s36, 0
      %p231 = por %p229, %p230
      %s232 = ssub.s32 %s37, %s49
      %p233 = scmp.eq.s32.totalorder %s232, 0
      %s235 = sadd.s32 %s234, 1
      %s236 = scalar_select %p233, %s234, %s235
      %p239 = pneg %p233
      %p240 = scmp.eq.s32.totalorder %s30, 1
      %p241 = por %p239, %p240
      %p242 = scmp.ne.s32.totalorder %s234, %s237
      %p243 = scmp.eq.s32.totalorder %s30, 0
      %p244 = por %p242, %p243
      %p245 = scmp.ne.s32.totalorder %s234, %s237
      %p246 = scmp.eq.s32.totalorder %s35, 1
      %p247 = por %p245, %p246
      %p248 = scmp.ne.s32.totalorder %s237, %s238
      %p249 = scmp.eq.s32.totalorder %s35, 0
      %p250 = por %p248, %p249
      %p251 = scmp.ne.s32.totalorder %s237, %s238
      %p252 = scmp.eq.s32.totalorder %s36, 1
      %p253 = por %p251, %p252
      %p255 = scmp.ne.s32.totalorder %s238, %s254
      %p256 = scmp.eq.s32.totalorder %s36, 0
      %p257 = por %p255, %p256
      %s258 = ssub.s32 %s37, %s49
      %p259 = scmp.eq.s32.totalorder %s258, 0
      %s261 = sadd.s32 %s260, 1
      %s262 = scalar_select %p259, %s260, %s261
      %p265 = pneg %p259
      %p266 = scmp.eq.s32.totalorder %s30, 1
      %p267 = por %p265, %p266
      %p268 = scmp.ne.s32.totalorder %s260, %s263
      %p269 = scmp.eq.s32.totalorder %s30, 0
      %p270 = por %p268, %p269
      %p271 = scmp.ne.s32.totalorder %s260, %s263
      %p272 = scmp.eq.s32.totalorder %s35, 1
      %p273 = por %p271, %p272
      %p274 = scmp.ne.s32.totalorder %s263, %s264
      %p275 = scmp.eq.s32.totalorder %s35, 0
      %p276 = por %p274, %p275
      %p277 = scmp.ne.s32.totalorder %s263, %s264
      %p278 = scmp.eq.s32.totalorder %s36, 1
      %p279 = por %p277, %p278
      %p281 = scmp.ne.s32.totalorder %s264, %s280
      %p282 = scmp.eq.s32.totalorder %s36, 0
      %p283 = por %p281, %p282
      %s284 = ssub.s32 %s38, %s45
      %s285 = ssub.s32 %s37, %s49
      %s286 = sor.u32 %s284, %s285
      %p287 = scmp.eq.s32.totalorder %s286, 0
      %s289 = sadd.s32 %s288, 1
      %s290 = scalar_select %p287, %s288, %s289
      %p293 = pneg %p287
      %p294 = scmp.eq.s32.totalorder %s30, 1
      %p295 = por %p293, %p294
      %p296 = scmp.ne.s32.totalorder %s288, %s291
      %p297 = scmp.eq.s32.totalorder %s30, 0
      %p298 = por %p296, %p297
      %p299 = scmp.ne.s32.totalorder %s288, %s291
      %p300 = scmp.eq.s32.totalorder %s35, 1
      %p301 = por %p299, %p300
      %p302 = scmp.ne.s32.totalorder %s291, %s292
      %p303 = scmp.eq.s32.totalorder %s35, 0
      %p304 = por %p302, %p303
      %p305 = scmp.ne.s32.totalorder %s291, %s292
      %p306 = scmp.eq.s32.totalorder %s36, 1
      %p307 = por %p305, %p306
      %p309 = scmp.ne.s32.totalorder %s292, %s308
      %p310 = scmp.eq.s32.totalorder %s36, 0
      %p311 = por %p309, %p310
      %s312 = ssub.s32 %s38, %s45
      %s313 = ssub.s32 %s37, %s49
      %s314 = sor.u32 %s312, %s313
      %p315 = scmp.eq.s32.totalorder %s314, 0
      %s317 = sadd.s32 %s316, 1
      %s318 = scalar_select %p315, %s316, %s317
      %p321 = pneg %p315
      %p322 = scmp.eq.s32.totalorder %s30, 1
      %p323 = por %p321, %p322
      %p324 = scmp.ne.s32.totalorder %s316, %s319
      %p325 = scmp.eq.s32.totalorder %s30, 0
      %p326 = por %p324, %p325
      %p327 = scmp.ne.s32.totalorder %s316, %s319
      %p328 = scmp.eq.s32.totalorder %s35, 1
      %p329 = por %p327, %p328
      %p330 = scmp.ne.s32.totalorder %s319, %s320
      %p331 = scmp.eq.s32.totalorder %s35, 0
      %p332 = por %p330, %p331
      %p333 = scmp.ne.s32.totalorder %s319, %s320
      %p334 = scmp.eq.s32.totalorder %s36, 1
      %p335 = por %p333, %p334
      %p337 = scmp.ne.s32.totalorder %s320, %s336
      %p338 = scmp.eq.s32.totalorder %s36, 0
      %p339 = por %p337, %p338
      %p340 = scmp.le.s32.totalorder 1, %s30
      %p341 = scmp.lt.s32.totalorder %s30, 3
      %p342 = pnand %p340, %p341
      %p343 = pneg %p342
      // Predicated region
      $region9: #{tpu_custom_call.1} parent=5 // pred_check
        _
      $region10: #{tpu_custom_call.1} parent=5 // pred_check_branch
        %345 = sbr.rel (%p342) target = $region12
      $region11: #{tpu_custom_call.1} parent=5 // pred_region
        %s346 = ssub.s32 %s30, 1
        // Predicated region
        $region13: #{tpu_custom_call.1} parent=11 // pred_check
          %p347 = pneg %p146
        $region14: #{tpu_custom_call.1} parent=11 // pred_check_branch
          %349 = sbr.rel (%p347) target = $region16
        $region15: #{tpu_custom_call.1} parent=11 // pred_region
          %p350 = scmp.lt.s32.totalorder %s39, 0
          %s351 = scalar_select %p350, %s39, 0
          %s352 = smul.addr %s351, 8
          %s353 = scalar_lea.vmem %s3, %s352
        $region16: #{tpu_custom_call.1} parent=11 // pred_fallthru
          _
        // Predicated region
        $region17: #{tpu_custom_call.1} parent=11 // pred_check
          %p354 = pneg %p172
        $region18: #{tpu_custom_call.1} parent=11 // pred_check_branch
          %356 = sbr.rel (%p354) target = $region20
        $region19: #{tpu_custom_call.1} parent=11 // pred_region
          %s357 = smul.u32 4, %s39
          %s359 = ssub.s32 512, 512
          %360 = vsyncadd [#allocation10], %s359
          %s361 = smul.addr %s357, 128
          %s362 = scalar_lea.hbm %s4, %s361
          %s363 = sshll.u32 [#allocation9], 4
          %s364 = int_to_ptr.vmem [resolvable:$true] %s363
          %369 = dma.hbm_to_vmem [thread:$0]  %s362, 512, %s364, [#allocation10], 128, 128, 8
        $region20: #{tpu_custom_call.1} parent=11 // pred_fallthru
          _
        // Predicated region
        $region21: #{tpu_custom_call.1} parent=11 // pred_check
          %p370 = pneg %p198
        $region22: #{tpu_custom_call.1} parent=11 // pred_check_branch
          %372 = sbr.rel (%p370) target = $region24
        $region23: #{tpu_custom_call.1} parent=11 // pred_region
          %s374 = ssub.s32 512, 512
          %375 = vsyncadd [#allocation10], %s374
          %s376 = smul.addr %s39, 128
          %s377 = scalar_lea.hbm %s5, %s376
          %s378 = sshll.u32 [#allocation11], 4
          %s379 = int_to_ptr.vmem [resolvable:$true] %s378
          %384 = dma.hbm_to_vmem [thread:$0]  %s377, 512, %s379, [#allocation10], 128, 128, 8
        $region24: #{tpu_custom_call.1} parent=11 // pred_fallthru
          _
        // Predicated region
        $region25: #{tpu_custom_call.1} parent=11 // pred_check
          %p385 = pneg %p224
        $region26: #{tpu_custom_call.1} parent=11 // pred_check_branch
          %387 = sbr.rel (%p385) target = $region28
        $region27: #{tpu_custom_call.1} parent=11 // pred_region
          %p388 = scmp.lt.s32.totalorder %s39, 0
          %s389 = scalar_select %p388, %s39, 0
          %s390 = scalar_lea.vmem %s6, %s389
        $region28: #{tpu_custom_call.1} parent=11 // pred_fallthru
          _
        // Predicated region
        $region29: #{tpu_custom_call.1} parent=11 // pred_check
          %p391 = pneg %p250
        $region30: #{tpu_custom_call.1} parent=11 // pred_check_branch
          %393 = sbr.rel (%p391) target = $region32
        $region31: #{tpu_custom_call.1} parent=11 // pred_region
          %s394 = smul.u32 4, %s39
          %p395 = scmp.lt.s32.totalorder %s394, 3
          %s396 = scalar_select %p395, %s394, 3
          %s397 = smul.addr %s396, 8
          %s398 = scalar_lea.vmem %s7, %s397
          %s399 = smul.u32 4, %s39
        $region32: #{tpu_custom_call.1} parent=11 // pred_fallthru
          _
        // Predicated region
        $region33: #{tpu_custom_call.1} parent=11 // pred_check
          %p400 = pneg %p276
        $region34: #{tpu_custom_call.1} parent=11 // pred_check_branch
          %402 = sbr.rel (%p400) target = $region36
        $region35: #{tpu_custom_call.1} parent=11 // pred_region
          %p403 = scmp.lt.s32.totalorder %s39, 0
          %s404 = scalar_select %p403, %s39, 0
          %s405 = scalar_lea.vmem %s8, %s404
        $region36: #{tpu_custom_call.1} parent=11 // pred_fallthru
          _
      $region12: #{tpu_custom_call.1} parent=5 // pred_fallthru
        _
      %p406 = scmp.lt.s32.totalorder %s30, 2
      // Predicated region
      $region37: #{tpu_custom_call.1} parent=5 // pred_check
        %p407 = pneg %p406
      $region38: #{tpu_custom_call.1} parent=5 // pred_check_branch
        %409 = sbr.rel (%p407) target = $region40
      $region39: #{tpu_custom_call.1} parent=5 // pred_region
        // Predicated region
        $region41: #{tpu_custom_call.1} parent=39 // pred_check
          %p410 = pneg %p62
        $region42: #{tpu_custom_call.1} parent=39 // pred_check_branch
          %412 = sbr.rel (%p410) target = $region44
        $region43: #{tpu_custom_call.1} parent=39 // pred_region
          %s413 = sand.u32 %s52, 1
          %s414 = scalar_lea.sflag [#allocation4], %s413
          %s415 = sand.u32 %s52, 1
          %s416 = smul.addr %s415, 8
          %s417 = scalar_lea.vmem [#allocation3], %s416
          %s419 = ssub.s32 128, 128
          %420 = vsyncadd %s414, %s419
          %s421 = smul.addr %s38, 128
          %s422 = scalar_lea.hbm %s0, %s421
          %s424 = sshll.u32 %s417, 4
          %s425 = int_to_ptr.vmem [resolvable:$true] %s424
          %427 = dma.hbm_to_vmem [thread:$0]  %s422, 128, %s425, %s414
        $region44: #{tpu_custom_call.1} parent=39 // pred_fallthru
          _
        // Predicated region
        $region45: #{tpu_custom_call.1} parent=39 // pred_check
          %p428 = pneg %p88
        $region46: #{tpu_custom_call.1} parent=39 // pred_check_branch
          %430 = sbr.rel (%p428) target = $region48
        $region47: #{tpu_custom_call.1} parent=39 // pred_region
          %s431 = sand.u32 %s30, 1
          %s432 = scalar_lea.sflag [#allocation7], %s431
          %s433 = sand.u32 %s78, 1
          %s434 = smul.addr %s433, 8
          %s435 = scalar_lea.vmem [#allocation6], %s434
          %s437 = ssub.s32 128, 128
          %438 = vsyncadd %s432, %s437
          %s439 = smul.addr %s38, 128
          %s440 = scalar_lea.hbm %s1, %s439
          %s442 = sshll.u32 %s435, 4
          %s443 = int_to_ptr.vmem [resolvable:$true] %s442
          %445 = dma.hbm_to_vmem [thread:$0]  %s440, 128, %s443, %s432
        $region48: #{tpu_custom_call.1} parent=39 // pred_fallthru
          _
        // Predicated region
        $region49: #{tpu_custom_call.1} parent=39 // pred_check
          %p446 = pneg %p114
        $region50: #{tpu_custom_call.1} parent=39 // pred_check_branch
          %448 = sbr.rel (%p446) target = $region52
        $region51: #{tpu_custom_call.1} parent=39 // pred_region
          %s449 = sand.u32 %s30, 1
          %s450 = scalar_lea.sflag [#allocation7], %s449
          %s451 = sand.u32 %s104, 1
          %s452 = smul.addr %s451, 8
          %s453 = scalar_lea.vmem [#allocation8], %s452
          %s455 = ssub.s32 128, 128
          %456 = vsyncadd %s450, %s455
          %s457 = smul.addr %s38, 128
          %s458 = scalar_lea.hbm %s2, %s457
          %s460 = sshll.u32 %s453, 4
          %s461 = int_to_ptr.vmem [resolvable:$true] %s460
          %463 = dma.hbm_to_vmem [thread:$0]  %s458, 128, %s461, %s450
        $region52: #{tpu_custom_call.1} parent=39 // pred_fallthru
          _
      $region40: #{tpu_custom_call.1} parent=5 // pred_fallthru
        _
      %p464 = scmp.le.s32.totalorder 1, %s30
      %p465 = scmp.lt.s32.totalorder %s30, 3
      %p466 = pnand %p464, %p465
      %p467 = pneg %p466
      // Predicated region
      $region53: #{tpu_custom_call.1} parent=5 // pred_check
        _
      $region54: #{tpu_custom_call.1} parent=5 // pred_check_branch
        %469 = sbr.rel (%p466) target = $region56
      $region55: #{tpu_custom_call.1} parent=5 // pred_region
        %s470 = ssub.s32 %s30, 1
        %s471 = sand.u32 %s55, 1
        %s472 = scalar_lea.sflag [#allocation4], %s471
        %s473 = sand.u32 %s55, 1
        %s474 = smul.addr %s473, 8
        %s475 = scalar_lea.vmem [#allocation3], %s474
        // Predicated region
        $region57: #{tpu_custom_call.1} parent=55 // pred_check
          %p476 = pneg %p68
        $region58: #{tpu_custom_call.1} parent=55 // pred_check_branch
          %478 = sbr.rel (%p476) target = $region60
        $region59: #{tpu_custom_call.1} parent=55 // pred_region
          %479 = dma.done %s472, 128
        $region60: #{tpu_custom_call.1} parent=55 // pred_fallthru
          _
        %s480 = sand.u32 %s35, 1
        %s481 = scalar_lea.sflag [#allocation7], %s480
        %s482 = sand.u32 %s81, 1
        %s483 = smul.addr %s482, 8
        %s484 = scalar_lea.vmem [#allocation6], %s483
        // Predicated region
        $region61: #{tpu_custom_call.1} parent=55 // pred_check
          %p485 = pneg %p94
        $region62: #{tpu_custom_call.1} parent=55 // pred_check_branch
          %487 = sbr.rel (%p485) target = $region64
        $region63: #{tpu_custom_call.1} parent=55 // pred_region
          %488 = dma.done %s481, 128
        $region64: #{tpu_custom_call.1} parent=55 // pred_fallthru
          _
        %s489 = sand.u32 %s35, 1
        %s490 = scalar_lea.sflag [#allocation7], %s489
        %s491 = sand.u32 %s107, 1
        %s492 = smul.addr %s491, 8
        %s493 = scalar_lea.vmem [#allocation8], %s492
        // Predicated region
        $region65: #{tpu_custom_call.1} parent=55 // pred_check
          %p494 = pneg %p120
        $region66: #{tpu_custom_call.1} parent=55 // pred_check_branch
          %496 = sbr.rel (%p494) target = $region68
        $region67: #{tpu_custom_call.1} parent=55 // pred_region
          %497 = dma.done %s490, 128
        $region68: #{tpu_custom_call.1} parent=55 // pred_fallthru
          _
        // Predicated region
        $region69: #{tpu_custom_call.1} parent=55 // pred_check
          %p498 = pneg %p172
        $region70: #{tpu_custom_call.1} parent=55 // pred_check_branch
          %500 = sbr.rel (%p498) target = $region72
        $region71: #{tpu_custom_call.1} parent=55 // pred_region
          %501 = dma.done [#allocation10], 512
        $region72: #{tpu_custom_call.1} parent=55 // pred_fallthru
          _
        // Predicated region
        $region73: #{tpu_custom_call.1} parent=55 // pred_check
          %p502 = pneg %p198
        $region74: #{tpu_custom_call.1} parent=55 // pred_check_branch
          %504 = sbr.rel (%p502) target = $region76
        $region75: #{tpu_custom_call.1} parent=55 // pred_region
          %505 = dma.done [#allocation10], 512
        $region76: #{tpu_custom_call.1} parent=55 // pred_fallthru
          _
        %s506 = sand.u32 %s55, 1
        %s507 = scalar_lea.sflag [#allocation4], %s506
        %s508 = sand.u32 %s55, 1
        %s509 = smul.addr %s508, 8
        %s510 = scalar_lea.vmem [#allocation3], %s509
        %p511 = pneg %p68
        %p512 = pneg %p65
        %s513 = sand.u32 %s35, 1
        %s514 = scalar_lea.sflag [#allocation7], %s513
        %s515 = sand.u32 %s81, 1
        %s516 = smul.addr %s515, 8
        %s517 = scalar_lea.vmem [#allocation6], %s516
        %p518 = pneg %p94
        %p519 = pneg %p91
        %s520 = sand.u32 %s35, 1
        %s521 = scalar_lea.sflag [#allocation7], %s520
        %s522 = sand.u32 %s107, 1
        %s523 = smul.addr %s522, 8
        %s524 = scalar_lea.vmem [#allocation8], %s523
        %p525 = pneg %p120
        %p526 = pneg %p117
        %p527 = scmp.lt.s32.totalorder %s39, 0
        %s528 = scalar_select %p527, %s39, 0
        %s529 = smul.addr %s528, 8
        %s530 = scalar_lea.vmem %s3, %s529
        %p531 = pneg %p146
        %p532 = pneg %p143
        %p533 = pneg %p172
        %p534 = pneg %p169
        %p535 = pneg %p198
        %p536 = pneg %p195
        %p537 = scmp.lt.s32.totalorder %s39, 0
        %s538 = scalar_select %p537, %s39, 0
        %s539 = scalar_lea.vmem %s6, %s538
        %p540 = pneg %p224
        %p541 = pneg %p221
        %s542 = smul.u32 4, %s39
        %p543 = scmp.lt.s32.totalorder %s542, 3
        %s544 = scalar_select %p543, %s542, 3
        %s545 = smul.addr %s544, 8
        %s546 = scalar_lea.vmem %s7, %s545
        %p547 = pneg %p250
        %p548 = pneg %p247
        %p549 = scmp.lt.s32.totalorder %s39, 0
        %s550 = scalar_select %p549, %s39, 0
        %s551 = scalar_lea.vmem %s8, %s550
        %p552 = pneg %p276
        %p553 = pneg %p273
        %p554 = pneg %p304
        %p555 = pneg %p301
        %s556 = sand.u32 %s291, 1
        %s557 = scalar_lea.sflag [#allocation5], %s556
        %s558 = sand.u32 %s291, 1
        %s559 = smul.addr %s558, 8
        %s560 = scalar_lea.vmem [#allocation12], %s559
        %p561 = pneg %p332
        %p562 = pneg %p329
        %s563 = sand.u32 %s319, 1
        %s564 = scalar_lea.sflag [#allocation14], %s563
        %s565 = sand.u32 %s319, 1
        %s566 = smul.addr %s565, 32
        %s567 = scalar_lea.vmem [#allocation13], %s566
        %p568 = scmp.lt.s32.totalorder %s39, 0
        %s569 = scalar_select %p568, %s39, 0
        %s570 = smul.addr %s569, 8
        %s571 = scalar_lea.vmem %s3, %s570
        %s572 = smul.u32 4, %s39
        %p573 = scmp.lt.s32.totalorder %s39, 0
        %s574 = scalar_select %p573, %s39, 0
        %s575 = scalar_lea.vmem %s6, %s574
        %s576 = smul.u32 4, %s39
        %p577 = scmp.lt.s32.totalorder %s576, 3
        %s578 = scalar_select %p577, %s576, 3
        %s579 = smul.addr %s578, 8
        %s580 = scalar_lea.vmem %s7, %s579
        %s581 = smul.u32 4, %s39
        %p582 = scmp.lt.s32.totalorder %s39, 0
        %s583 = scalar_select %p582, %s39, 0
        %s584 = scalar_lea.vmem %s8, %s583
        %s585 = smul.u32 4, %s39
        %v586 = vld [vmem:[%s475] sm:$0xff]
        %v587 = vld [vmem:[%s571] sm:$0xff]
        %v588 = vld [vmem:[%s571 + $0x8] sm:$0xff]
        %v589 = vld [vmem:[%s571 + $0x10] sm:$0xff]
        %v590 = vld [vmem:[%s571 + $0x18] sm:$0xff]
        %v591 = vld [vmem:[%s575] sm:$0x1]
        %v593 = vlaneseq
        %v594 = vshrl.u32 %v593, 7
        %v595 = vsub.s32 0, %v594
        %v596 = vrot.slane %v591, %v595
        %vm598 = vcmask 261120
        %v600 = vsel %vm598, %v586, 0
        %602 = vmatprep.subr.mxu0 0.0
        %603 = vmatpush1.msra.mxu0 0.0
        %604 = vmatprep.subr.mxu0 0.0
        %605 = vmatpush1.msra.mxu0 0.0
        %606 = vmatprep.subr.mxu0 0.0
        %607 = vmatpush1.msra.mxu0 0.0
        %608 = vmatprep.subr.mxu0 0.0
        %609 = vmatpush1.msra.mxu0 0.0
        %610 = vmatprep.subr.mxu0 0.0
        %611 = vmatpush1.msra.mxu0 0.0
        %612 = vmatprep.subr.mxu0 0.0
        %613 = vmatpush1.msra.mxu0 0.0
        %614 = vmatprep.subr.mxu0 0.0
        %615 = vmatpush1.msra.mxu0 0.0
        %616 = vmatprep.subr.mxu0 0.0
        %617 = vmatpush1.msra.mxu0 0.0
        %618 = vmatprep.subr.mxu0 0.0
        %619 = vmatpush1.msra.mxu0 0.0
        %620 = vmatprep.subr.mxu0 0.0
        %621 = vmatpush1.msra.mxu0 0.0
        %622 = vmatprep.subr.mxu0 0.0
        %623 = vmatpush1.msra.mxu0 0.0
        %624 = vmatprep.subr.mxu0 0.0
        %625 = vmatpush1.msra.mxu0 0.0
        %626 = vmatprep.subr.mxu0 0.0
        %v627 = vand.u32 %v590, 4294901760
        %628 = vmatpush1.msra.mxu0 %v627
        %629 = vmatprep.subr.mxu0 0.0
        %v630 = vand.u32 %v589, 4294901760
        %631 = vmatpush1.msra.mxu0 %v630
        %632 = vmatprep.subr.mxu0 0.0
        %v633 = vand.u32 %v588, 4294901760
        %634 = vmatpush1.msra.mxu0 %v633
        %635 = vmatprep.subr.mxu0 0.0
        %v636 = vand.u32 %v587, 4294901760
        %637 = vmatpush1.msra.mxu0 %v636
        %638 = vmatprep.subr.mxu0 0.0
        %639 = vmatpush2.msra.mxu0 0.0
        %640 = vmatprep.subr.mxu0 0.0
        %641 = vmatpush2.msra.mxu0 0.0
        %642 = vmatprep.subr.mxu0 0.0
        %643 = vmatpush2.msra.mxu0 0.0
        %644 = vmatprep.subr.mxu0 0.0
        %645 = vmatpush2.msra.mxu0 0.0
        %646 = vmatprep.subr.mxu0 0.0
        %647 = vmatpush2.msra.mxu0 0.0
        %648 = vmatprep.subr.mxu0 0.0
        %649 = vmatpush2.msra.mxu0 0.0
        %650 = vmatprep.subr.mxu0 0.0
        %651 = vmatpush2.msra.mxu0 0.0
        %652 = vmatprep.subr.mxu0 0.0
        %653 = vmatpush2.msra.mxu0 0.0
        %654 = vmatprep.subr.mxu0 0.0
        %655 = vmatpush2.msra.mxu0 0.0
        %656 = vmatprep.subr.mxu0 0.0
        %657 = vmatpush2.msra.mxu0 0.0
        %658 = vmatprep.subr.mxu0 0.0
        %659 = vmatpush2.msra.mxu0 0.0
        %660 = vmatprep.subr.mxu0 0.0
        %661 = vmatpush2.msra.mxu0 0.0
        %662 = vmatprep.subr.mxu0 0.0
        %663 = vmatpush2.msra.mxu0 0.0
        %664 = vmatprep.subr.mxu0 0.0
        %665 = vmatpush2.msra.mxu0 0.0
        %666 = vmatprep.subr.mxu0 0.0
        %667 = vmatpush2.msra.mxu0 0.0
        %668 = vmatprep.subr.mxu0 0.0
        %669 = vmatpush2.msra.mxu0 0.0
        %670 = vmatprep.mubr.f32.mxu0 0.0
        %v671 = vand.u32 %v600, 4294901760
        %v672 = vsub.f32 %v600, %v671
        %v673 = vand.u32 %v672, 4294901760
        %v674 = vsub.f32 %v672, %v673
        %v675 = vand.u32 %v674, 4294901760
        %676 = vmatmul.mubr.f32.gmra.mxu0 %v675
        %v677 = vpop.f32.mrf.mxu0
        %v678 = vadd.f32 %v596, %v677
        %v679 = vpop.f32.mrf.mxu0
        %680 = vdwg.mxu0
        %681 = vmatprep.subr.mxu0 0.0
        %682 = vmatpush1.msra.mxu0 0.0
        %683 = vmatprep.subr.mxu0 0.0
        %684 = vmatpush1.msra.mxu0 0.0
        %685 = vmatprep.subr.mxu0 0.0
        %686 = vmatpush1.msra.mxu0 0.0
        %687 = vmatprep.subr.mxu0 0.0
        %688 = vmatpush1.msra.mxu0 0.0
        %689 = vmatprep.subr.mxu0 0.0
        %690 = vmatpush1.msra.mxu0 0.0
        %691 = vmatprep.subr.mxu0 0.0
        %692 = vmatpush1.msra.mxu0 0.0
        %693 = vmatprep.subr.mxu0 0.0
        %694 = vmatpush1.msra.mxu0 0.0
        %695 = vmatprep.subr.mxu0 0.0
        %696 = vmatpush1.msra.mxu0 0.0
        %697 = vmatprep.subr.mxu0 0.0
        %698 = vmatpush1.msra.mxu0 0.0
        %699 = vmatprep.subr.mxu0 0.0
        %700 = vmatpush1.msra.mxu0 0.0
        %701 = vmatprep.subr.mxu0 0.0
        %702 = vmatpush1.msra.mxu0 0.0
        %703 = vmatprep.subr.mxu0 0.0
        %704 = vmatpush1.msra.mxu0 0.0
        %705 = vmatprep.subr.mxu0 0.0
        %v706 = vand.u32 %v590, 4294901760
        %v707 = vsub.f32 %v590, %v706
        %v708 = vand.u32 %v707, 4294901760
        %v709 = vsub.f32 %v707, %v708
        %v710 = vand.u32 %v709, 4294901760
        %711 = vmatpush1.msra.mxu0 %v710
        %712 = vmatprep.subr.mxu0 0.0
        %v713 = vand.u32 %v589, 4294901760
        %v714 = vsub.f32 %v589, %v713
        %v715 = vand.u32 %v714, 4294901760
        %v716 = vsub.f32 %v714, %v715
        %v717 = vand.u32 %v716, 4294901760
        %718 = vmatpush1.msra.mxu0 %v717
        %719 = vmatprep.subr.mxu0 0.0
        %v720 = vand.u32 %v588, 4294901760
        %v721 = vsub.f32 %v588, %v720
        %v722 = vand.u32 %v721, 4294901760
        %v723 = vsub.f32 %v721, %v722
        %v724 = vand.u32 %v723, 4294901760
        %725 = vmatpush1.msra.mxu0 %v724
        %726 = vmatprep.subr.mxu0 0.0
        %v727 = vand.u32 %v587, 4294901760
        %v728 = vsub.f32 %v587, %v727
        %v729 = vand.u32 %v728, 4294901760
        %v730 = vsub.f32 %v728, %v729
        %v731 = vand.u32 %v730, 4294901760
        %732 = vmatpush1.msra.mxu0 %v731
        %733 = vmatprep.subr.mxu0 0.0
        %734 = vmatpush2.msra.mxu0 0.0
        %735 = vmatprep.subr.mxu0 0.0
        %736 = vmatpush2.msra.mxu0 0.0
        %737 = vmatprep.subr.mxu0 0.0
        %738 = vmatpush2.msra.mxu0 0.0
        %739 = vmatprep.subr.mxu0 0.0
        %740 = vmatpush2.msra.mxu0 0.0
        %741 = vmatprep.subr.mxu0 0.0
        %742 = vmatpush2.msra.mxu0 0.0
        %743 = vmatprep.subr.mxu0 0.0
        %744 = vmatpush2.msra.mxu0 0.0
        %745 = vmatprep.subr.mxu0 0.0
        %746 = vmatpush2.msra.mxu0 0.0
        %747 = vmatprep.subr.mxu0 0.0
        %748 = vmatpush2.msra.mxu0 0.0
        %749 = vmatprep.subr.mxu0 0.0
        %750 = vmatpush2.msra.mxu0 0.0
        %751 = vmatprep.subr.mxu0 0.0
        %752 = vmatpush2.msra.mxu0 0.0
        %753 = vmatprep.subr.mxu0 0.0
        %754 = vmatpush2.msra.mxu0 0.0
        %755 = vmatprep.subr.mxu0 0.0
        %756 = vmatpush2.msra.mxu0 0.0
        %757 = vmatprep.subr.mxu0 0.0
        %758 = vmatpush2.msra.mxu0 0.0
        %759 = vmatprep.subr.mxu0 0.0
        %760 = vmatpush2.msra.mxu0 0.0
        %761 = vmatprep.subr.mxu0 0.0
        %762 = vmatpush2.msra.mxu0 0.0
        %763 = vmatprep.subr.mxu0 0.0
        %764 = vmatpush2.msra.mxu0 0.0
        %765 = vmatprep.mubr.f32.mxu0 0.0
        %v766 = vand.u32 %v600, 4294901760
        %767 = vmatmul.mubr.f32.gmra.mxu0 %v766
        %v768 = vpop.f32.mrf.mxu0
        %v769 = vadd.f32 %v678, %v768
        %v770 = vpop.f32.mrf.mxu0
        %771 = vdwg.mxu0
        %772 = vmatprep.subr.mxu0 0.0
        %773 = vmatpush1.msra.mxu0 0.0
        %774 = vmatprep.subr.mxu0 0.0
        %775 = vmatpush1.msra.mxu0 0.0
        %776 = vmatprep.subr.mxu0 0.0
        %777 = vmatpush1.msra.mxu0 0.0
        %778 = vmatprep.subr.mxu0 0.0
        %779 = vmatpush1.msra.mxu0 0.0
        %780 = vmatprep.subr.mxu0 0.0
        %781 = vmatpush1.msra.mxu0 0.0
        %782 = vmatprep.subr.mxu0 0.0
        %783 = vmatpush1.msra.mxu0 0.0
        %784 = vmatprep.subr.mxu0 0.0
        %785 = vmatpush1.msra.mxu0 0.0
        %786 = vmatprep.subr.mxu0 0.0
        %787 = vmatpush1.msra.mxu0 0.0
        %788 = vmatprep.subr.mxu0 0.0
        %789 = vmatpush1.msra.mxu0 0.0
        %790 = vmatprep.subr.mxu0 0.0
        %791 = vmatpush1.msra.mxu0 0.0
        %792 = vmatprep.subr.mxu0 0.0
        %793 = vmatpush1.msra.mxu0 0.0
        %794 = vmatprep.subr.mxu0 0.0
        %795 = vmatpush1.msra.mxu0 0.0
        %796 = vmatprep.subr.mxu0 0.0
        %v797 = vand.u32 %v590, 4294901760
        %v798 = vsub.f32 %v590, %v797
        %799 = vmatpush1.msra.mxu0 %v798
        %800 = vmatprep.subr.mxu0 0.0
        %v801 = vand.u32 %v589, 4294901760
        %v802 = vsub.f32 %v589, %v801
        %803 = vmatpush1.msra.mxu0 %v802
        %804 = vmatprep.subr.mxu0 0.0
        %v805 = vand.u32 %v588, 4294901760
        %v806 = vsub.f32 %v588, %v805
        %807 = vmatpush1.msra.mxu0 %v806
        %808 = vmatprep.subr.mxu0 0.0
        %v809 = vand.u32 %v587, 4294901760
        %v810 = vsub.f32 %v587, %v809
        %811 = vmatpush1.msra.mxu0 %v810
        %812 = vmatprep.subr.mxu0 0.0
        %813 = vmatpush2.msra.mxu0 0.0
        %814 = vmatprep.subr.mxu0 0.0
        %815 = vmatpush2.msra.mxu0 0.0
        %816 = vmatprep.subr.mxu0 0.0
        %817 = vmatpush2.msra.mxu0 0.0
        %818 = vmatprep.subr.mxu0 0.0
        %819 = vmatpush2.msra.mxu0 0.0
        %820 = vmatprep.subr.mxu0 0.0
        %821 = vmatpush2.msra.mxu0 0.0
        %822 = vmatprep.subr.mxu0 0.0
        %823 = vmatpush2.msra.mxu0 0.0
        %824 = vmatprep.subr.mxu0 0.0
        %825 = vmatpush2.msra.mxu0 0.0
        %826 = vmatprep.subr.mxu0 0.0
        %827 = vmatpush2.msra.mxu0 0.0
        %828 = vmatprep.subr.mxu0 0.0
        %829 = vmatpush2.msra.mxu0 0.0
        %830 = vmatprep.subr.mxu0 0.0
        %831 = vmatpush2.msra.mxu0 0.0
        %832 = vmatprep.subr.mxu0 0.0
        %833 = vmatpush2.msra.mxu0 0.0
        %834 = vmatprep.subr.mxu0 0.0
        %835 = vmatpush2.msra.mxu0 0.0
        %836 = vmatprep.subr.mxu0 0.0
        %837 = vmatpush2.msra.mxu0 0.0
        %838 = vmatprep.subr.mxu0 0.0
        %839 = vmatpush2.msra.mxu0 0.0
        %840 = vmatprep.subr.mxu0 0.0
        %841 = vmatpush2.msra.mxu0 0.0
        %842 = vmatprep.subr.mxu0 0.0
        %843 = vmatpush2.msra.mxu0 0.0
        %844 = vmatprep.mubr.f32.mxu0 0.0
        %v845 = vand.u32 %v600, 4294901760
        %v846 = vsub.f32 %v600, %v845
        %847 = vmatmul.mubr.f32.gmra.mxu0 %v846
        %v848 = vpop.f32.mrf.mxu0
        %v849 = vadd.f32 %v769, %v848
        %v850 = vpop.f32.mrf.mxu0
        %851 = vdwg.mxu0
        %852 = vmatprep.subr.mxu0 0.0
        %853 = vmatpush1.msra.mxu0 0.0
        %854 = vmatprep.subr.mxu0 0.0
        %855 = vmatpush1.msra.mxu0 0.0
        %856 = vmatprep.subr.mxu0 0.0
        %857 = vmatpush1.msra.mxu0 0.0
        %858 = vmatprep.subr.mxu0 0.0
        %859 = vmatpush1.msra.mxu0 0.0
        %860 = vmatprep.subr.mxu0 0.0
        %861 = vmatpush1.msra.mxu0 0.0
        %862 = vmatprep.subr.mxu0 0.0
        %863 = vmatpush1.msra.mxu0 0.0
        %864 = vmatprep.subr.mxu0 0.0
        %865 = vmatpush1.msra.mxu0 0.0
        %866 = vmatprep.subr.mxu0 0.0
        %867 = vmatpush1.msra.mxu0 0.0
        %868 = vmatprep.subr.mxu0 0.0
        %869 = vmatpush1.msra.mxu0 0.0
        %870 = vmatprep.subr.mxu0 0.0
        %871 = vmatpush1.msra.mxu0 0.0
        %872 = vmatprep.subr.mxu0 0.0
        %873 = vmatpush1.msra.mxu0 0.0
        %874 = vmatprep.subr.mxu0 0.0
        %875 = vmatpush1.msra.mxu0 0.0
        %876 = vmatprep.subr.mxu0 0.0
        %v877 = vand.u32 %v590, 4294901760
        %878 = vmatpush1.msra.mxu0 %v877
        %879 = vmatprep.subr.mxu0 0.0
        %v880 = vand.u32 %v589, 4294901760
        %881 = vmatpush1.msra.mxu0 %v880
        %882 = vmatprep.subr.mxu0 0.0
        %v883 = vand.u32 %v588, 4294901760
        %884 = vmatpush1.msra.mxu0 %v883
        %885 = vmatprep.subr.mxu0 0.0
        %v886 = vand.u32 %v587, 4294901760
        %887 = vmatpush1.msra.mxu0 %v886
        %888 = vmatprep.subr.mxu0 0.0
        %889 = vmatpush2.msra.mxu0 0.0
        %890 = vmatprep.subr.mxu0 0.0
        %891 = vmatpush2.msra.mxu0 0.0
        %892 = vmatprep.subr.mxu0 0.0
        %893 = vmatpush2.msra.mxu0 0.0
        %894 = vmatprep.subr.mxu0 0.0
        %895 = vmatpush2.msra.mxu0 0.0
        %896 = vmatprep.subr.mxu0 0.0
        %897 = vmatpush2.msra.mxu0 0.0
        %898 = vmatprep.subr.mxu0 0.0
        %899 = vmatpush2.msra.mxu0 0.0
        %900 = vmatprep.subr.mxu0 0.0
        %901 = vmatpush2.msra.mxu0 0.0
        %902 = vmatprep.subr.mxu0 0.0
        %903 = vmatpush2.msra.mxu0 0.0
        %904 = vmatprep.subr.mxu0 0.0
        %905 = vmatpush2.msra.mxu0 0.0
        %906 = vmatprep.subr.mxu0 0.0
        %907 = vmatpush2.msra.mxu0 0.0
        %908 = vmatprep.subr.mxu0 0.0
        %909 = vmatpush2.msra.mxu0 0.0
        %910 = vmatprep.subr.mxu0 0.0
        %911 = vmatpush2.msra.mxu0 0.0
        %912 = vmatprep.subr.mxu0 0.0
        %913 = vmatpush2.msra.mxu0 0.0
        %914 = vmatprep.subr.mxu0 0.0
        %915 = vmatpush2.msra.mxu0 0.0
        %916 = vmatprep.subr.mxu0 0.0
        %917 = vmatpush2.msra.mxu0 0.0
        %918 = vmatprep.subr.mxu0 0.0
        %919 = vmatpush2.msra.mxu0 0.0
        %920 = vmatprep.mubr.f32.mxu0 0.0
        %v921 = vand.u32 %v600, 4294901760
        %v922 = vsub.f32 %v600, %v921
        %v923 = vand.u32 %v922, 4294901760
        %924 = vmatmul.mubr.f32.gmra.mxu0 %v923
        %v925 = vpop.f32.mrf.mxu0
        %v926 = vadd.f32 %v849, %v925
        %v927 = vpop.f32.mrf.mxu0
        %928 = vdwg.mxu0
        %929 = vmatprep.subr.mxu0 0.0
        %930 = vmatpush1.msra.mxu0 0.0
        %931 = vmatprep.subr.mxu0 0.0
        %932 = vmatpush1.msra.mxu0 0.0
        %933 = vmatprep.subr.mxu0 0.0
        %934 = vmatpush1.msra.mxu0 0.0
        %935 = vmatprep.subr.mxu0 0.0
        %936 = vmatpush1.msra.mxu0 0.0
        %937 = vmatprep.subr.mxu0 0.0
        %938 = vmatpush1.msra.mxu0 0.0
        %939 = vmatprep.subr.mxu0 0.0
        %940 = vmatpush1.msra.mxu0 0.0
        %941 = vmatprep.subr.mxu0 0.0
        %942 = vmatpush1.msra.mxu0 0.0
        %943 = vmatprep.subr.mxu0 0.0
        %944 = vmatpush1.msra.mxu0 0.0
        %945 = vmatprep.subr.mxu0 0.0
        %946 = vmatpush1.msra.mxu0 0.0
        %947 = vmatprep.subr.mxu0 0.0
        %948 = vmatpush1.msra.mxu0 0.0
        %949 = vmatprep.subr.mxu0 0.0
        %950 = vmatpush1.msra.mxu0 0.0
        %951 = vmatprep.subr.mxu0 0.0
        %952 = vmatpush1.msra.mxu0 0.0
        %953 = vmatprep.subr.mxu0 0.0
        %v954 = vand.u32 %v590, 4294901760
        %v955 = vsub.f32 %v590, %v954
        %v956 = vand.u32 %v955, 4294901760
        %957 = vmatpush1.msra.mxu0 %v956
        %958 = vmatprep.subr.mxu0 0.0
        %v959 = vand.u32 %v589, 4294901760
        %v960 = vsub.f32 %v589, %v959
        %v961 = vand.u32 %v960, 4294901760
        %962 = vmatpush1.msra.mxu0 %v961
        %963 = vmatprep.subr.mxu0 0.0
        %v964 = vand.u32 %v588, 4294901760
        %v965 = vsub.f32 %v588, %v964
        %v966 = vand.u32 %v965, 4294901760
        %967 = vmatpush1.msra.mxu0 %v966
        %968 = vmatprep.subr.mxu0 0.0
        %v969 = vand.u32 %v587, 4294901760
        %v970 = vsub.f32 %v587, %v969
        %v971 = vand.u32 %v970, 4294901760
        %972 = vmatpush1.msra.mxu0 %v971
        %973 = vmatprep.subr.mxu0 0.0
        %974 = vmatpush2.msra.mxu0 0.0
        %975 = vmatprep.subr.mxu0 0.0
        %976 = vmatpush2.msra.mxu0 0.0
        %977 = vmatprep.subr.mxu0 0.0
        %978 = vmatpush2.msra.mxu0 0.0
        %979 = vmatprep.subr.mxu0 0.0
        %980 = vmatpush2.msra.mxu0 0.0
        %981 = vmatprep.subr.mxu0 0.0
        %982 = vmatpush2.msra.mxu0 0.0
        %983 = vmatprep.subr.mxu0 0.0
        %984 = vmatpush2.msra.mxu0 0.0
        %985 = vmatprep.subr.mxu0 0.0
        %986 = vmatpush2.msra.mxu0 0.0
        %987 = vmatprep.subr.mxu0 0.0
        %988 = vmatpush2.msra.mxu0 0.0
        %989 = vmatprep.subr.mxu0 0.0
        %990 = vmatpush2.msra.mxu0 0.0
        %991 = vmatprep.subr.mxu0 0.0
        %992 = vmatpush2.msra.mxu0 0.0
        %993 = vmatprep.subr.mxu0 0.0
        %994 = vmatpush2.msra.mxu0 0.0
        %995 = vmatprep.subr.mxu0 0.0
        %996 = vmatpush2.msra.mxu0 0.0
        %997 = vmatprep.subr.mxu0 0.0
        %998 = vmatpush2.msra.mxu0 0.0
        %999 = vmatprep.subr.mxu0 0.0
        %1000 = vmatpush2.msra.mxu0 0.0
        %1001 = vmatprep.subr.mxu0 0.0
        %1002 = vmatpush2.msra.mxu0 0.0
        %1003 = vmatprep.subr.mxu0 0.0
        %1004 = vmatpush2.msra.mxu0 0.0
        %1005 = vmatprep.mubr.f32.mxu0 0.0
        %v1006 = vand.u32 %v600, 4294901760
        %1007 = vmatmul.mubr.f32.gmra.mxu0 %v1006
        %v1008 = vpop.f32.mrf.mxu0
        %v1009 = vadd.f32 %v926, %v1008
        %v1010 = vpop.f32.mrf.mxu0
        %1011 = vdwg.mxu0
        %1012 = vmatprep.subr.mxu0 0.0
        %1013 = vmatpush1.msra.mxu0 0.0
        %1014 = vmatprep.subr.mxu0 0.0
        %1015 = vmatpush1.msra.mxu0 0.0
        %1016 = vmatprep.subr.mxu0 0.0
        %1017 = vmatpush1.msra.mxu0 0.0
        %1018 = vmatprep.subr.mxu0 0.0
        %1019 = vmatpush1.msra.mxu0 0.0
        %1020 = vmatprep.subr.mxu0 0.0
        %1021 = vmatpush1.msra.mxu0 0.0
        %1022 = vmatprep.subr.mxu0 0.0
        %1023 = vmatpush1.msra.mxu0 0.0
        %1024 = vmatprep.subr.mxu0 0.0
        %1025 = vmatpush1.msra.mxu0 0.0
        %1026 = vmatprep.subr.mxu0 0.0
        %1027 = vmatpush1.msra.mxu0 0.0
        %1028 = vmatprep.subr.mxu0 0.0
        %1029 = vmatpush1.msra.mxu0 0.0
        %1030 = vmatprep.subr.mxu0 0.0
        %1031 = vmatpush1.msra.mxu0 0.0
        %1032 = vmatprep.subr.mxu0 0.0
        %1033 = vmatpush1.msra.mxu0 0.0
        %1034 = vmatprep.subr.mxu0 0.0
        %1035 = vmatpush1.msra.mxu0 0.0
        %1036 = vmatprep.subr.mxu0 0.0
        %v1037 = vand.u32 %v590, 4294901760
        %1038 = vmatpush1.msra.mxu0 %v1037
        %1039 = vmatprep.subr.mxu0 0.0
        %v1040 = vand.u32 %v589, 4294901760
        %1041 = vmatpush1.msra.mxu0 %v1040
        %1042 = vmatprep.subr.mxu0 0.0
        %v1043 = vand.u32 %v588, 4294901760
        %1044 = vmatpush1.msra.mxu0 %v1043
        %1045 = vmatprep.subr.mxu0 0.0
        %v1046 = vand.u32 %v587, 4294901760
        %1047 = vmatpush1.msra.mxu0 %v1046
        %1048 = vmatprep.subr.mxu0 0.0
        %1049 = vmatpush2.msra.mxu0 0.0
        %1050 = vmatprep.subr.mxu0 0.0
        %1051 = vmatpush2.msra.mxu0 0.0
        %1052 = vmatprep.subr.mxu0 0.0
        %1053 = vmatpush2.msra.mxu0 0.0
        %1054 = vmatprep.subr.mxu0 0.0
        %1055 = vmatpush2.msra.mxu0 0.0
        %1056 = vmatprep.subr.mxu0 0.0
        %1057 = vmatpush2.msra.mxu0 0.0
        %1058 = vmatprep.subr.mxu0 0.0
        %1059 = vmatpush2.msra.mxu0 0.0
        %1060 = vmatprep.subr.mxu0 0.0
        %1061 = vmatpush2.msra.mxu0 0.0
        %1062 = vmatprep.subr.mxu0 0.0
        %1063 = vmatpush2.msra.mxu0 0.0
        %1064 = vmatprep.subr.mxu0 0.0
        %1065 = vmatpush2.msra.mxu0 0.0
        %1066 = vmatprep.subr.mxu0 0.0
        %1067 = vmatpush2.msra.mxu0 0.0
        %1068 = vmatprep.subr.mxu0 0.0
        %1069 = vmatpush2.msra.mxu0 0.0
        %1070 = vmatprep.subr.mxu0 0.0
        %1071 = vmatpush2.msra.mxu0 0.0
        %1072 = vmatprep.subr.mxu0 0.0
        %1073 = vmatpush2.msra.mxu0 0.0
        %1074 = vmatprep.subr.mxu0 0.0
        %1075 = vmatpush2.msra.mxu0 0.0
        %1076 = vmatprep.subr.mxu0 0.0
        %1077 = vmatpush2.msra.mxu0 0.0
        %1078 = vmatprep.subr.mxu0 0.0
        %1079 = vmatpush2.msra.mxu0 0.0
        %1080 = vmatprep.mubr.f32.mxu0 0.0
        %v1081 = vand.u32 %v600, 4294901760
        %1082 = vmatmul.mubr.f32.gmra.mxu0 %v1081
        %v1083 = vpop.f32.mrf.mxu0
        %v1084 = vadd.f32 %v1009, %v1083
        %v1085 = vpop.f32.mrf.mxu0
        %1086 = vdwg.mxu0
        %v1087 = vmul.f32 %v1084, 0.35355338
        %v1088 = vld [vmem:[#allocation9] sm:$0xff]
        %v1089 = vld [vmem:[#allocation9 + $0x8] sm:$0xff]
        %v1090 = vld [vmem:[#allocation9 + $0x10] sm:$0xff]
        %v1091 = vld [vmem:[#allocation9 + $0x18] sm:$0xff]
        %v1092 = vld [vmem:[%s484] sm:$0xff]
        %v1093 = vld [vmem:[%s580] sm:$0xff]
        %v1094 = vld [vmem:[%s580 + $0x8] sm:$0xff]
        %v1095 = vld [vmem:[%s580 + $0x10] sm:$0xff]
        %v1096 = vld [vmem:[%s580 + $0x18] sm:$0xff]
        %1098 = vset.pattern.permute.xlu0 0
        %1099 = vperm.xlu0 %1098, %v1093
        %v1100 = vpop.permute.xlu0 %1099
        %1103 = vset.pattern.permute.xlu0 0
        %1104 = vperm.xlu0 %1103, %v1094
        %v1105 = vpop.permute.xlu0 %1104
        %1108 = vset.pattern.permute.xlu0 0
        %1109 = vperm.xlu0 %1108, %v1095
        %v1110 = vpop.permute.xlu0 %1109
        %1113 = vset.pattern.permute.xlu0 0
        %1114 = vperm.xlu0 %1113, %v1096
        %v1115 = vpop.permute.xlu0 %1114
        %v1118 = vsel %vm598, %v1088, 0
        %v1121 = vsel %vm598, %v1089, 0
        %v1124 = vsel %vm598, %v1090, 0
        %v1127 = vsel %vm598, %v1091, 0
        %v1130 = vsel %vm598, %v1092, 0
        %1132 = vmatprep.subr.mxu0 0.0
        %1133 = vmatpush1.xpose.msra.mxu0 0.0
        %1134 = vmatprep.subr.mxu0 0.0
        %1135 = vmatpush1.xpose.msra.mxu0 0.0
        %1136 = vmatprep.subr.mxu0 0.0
        %1137 = vmatpush1.xpose.msra.mxu0 0.0
        %1138 = vmatprep.subr.mxu0 0.0
        %1139 = vmatpush1.xpose.msra.mxu0 0.0
        %1140 = vmatprep.subr.mxu0 0.0
        %1141 = vmatpush1.xpose.msra.mxu0 0.0
        %1142 = vmatprep.subr.mxu0 0.0
        %1143 = vmatpush1.xpose.msra.mxu0 0.0
        %1144 = vmatprep.subr.mxu0 0.0
        %1145 = vmatpush1.xpose.msra.mxu0 0.0
        %1146 = vmatprep.subr.mxu0 0.0
        %1147 = vmatpush1.xpose.msra.mxu0 0.0
        %1148 = vmatprep.subr.mxu0 0.0
        %1149 = vmatpush1.xpose.msra.mxu0 0.0
        %1150 = vmatprep.subr.mxu0 0.0
        %1151 = vmatpush1.xpose.msra.mxu0 0.0
        %1152 = vmatprep.subr.mxu0 0.0
        %1153 = vmatpush1.xpose.msra.mxu0 0.0
        %1154 = vmatprep.subr.mxu0 0.0
        %1155 = vmatpush1.xpose.msra.mxu0 0.0
        %1156 = vmatprep.subr.mxu0 0.0
        %1157 = vmatpush1.xpose.msra.mxu0 0.0
        %1158 = vmatprep.subr.mxu0 0.0
        %1159 = vmatpush1.xpose.msra.mxu0 0.0
        %1160 = vmatprep.subr.mxu0 0.0
        %1161 = vmatpush1.xpose.msra.mxu0 0.0
        %1162 = vmatprep.subr.mxu0 0.0
        %v1163 = vand.u32 %v1130, 4294901760
        %1164 = vmatpush1.xpose.msra.mxu0 %v1163
        %1165 = vmatprep.subr.mxu0 0.0
        %1166 = vmatpush2.xpose.msra.mxu0 0.0
        %1167 = vmatprep.subr.mxu0 0.0
        %1168 = vmatpush2.xpose.msra.mxu0 0.0
        %1169 = vmatprep.subr.mxu0 0.0
        %1170 = vmatpush2.xpose.msra.mxu0 0.0
        %1171 = vmatprep.subr.mxu0 0.0
        %1172 = vmatpush2.xpose.msra.mxu0 0.0
        %1173 = vmatprep.subr.mxu0 0.0
        %1174 = vmatpush2.xpose.msra.mxu0 0.0
        %1175 = vmatprep.subr.mxu0 0.0
        %1176 = vmatpush2.xpose.msra.mxu0 0.0
        %1177 = vmatprep.subr.mxu0 0.0
        %1178 = vmatpush2.xpose.msra.mxu0 0.0
        %1179 = vmatprep.subr.mxu0 0.0
        %1180 = vmatpush2.xpose.msra.mxu0 0.0
        %1181 = vmatprep.subr.mxu0 0.0
        %1182 = vmatpush2.xpose.msra.mxu0 0.0
        %1183 = vmatprep.subr.mxu0 0.0
        %1184 = vmatpush2.xpose.msra.mxu0 0.0
        %1185 = vmatprep.subr.mxu0 0.0
        %1186 = vmatpush2.xpose.msra.mxu0 0.0
        %1187 = vmatprep.subr.mxu0 0.0
        %1188 = vmatpush2.xpose.msra.mxu0 0.0
        %1189 = vmatprep.subr.mxu0 0.0
        %1190 = vmatpush2.xpose.msra.mxu0 0.0
        %1191 = vmatprep.subr.mxu0 0.0
        %1192 = vmatpush2.xpose.msra.mxu0 0.0
        %1193 = vmatprep.subr.mxu0 0.0
        %1194 = vmatpush2.xpose.msra.mxu0 0.0
        %1195 = vmatprep.subr.mxu0 0.0
        %1196 = vmatpush2.xpose.msra.mxu0 0.0
        %1197 = vmatprep.mubr.f32.mxu0 0.0
        %v1198 = vand.u32 %v1118, 4294901760
        %v1199 = vsub.f32 %v1118, %v1198
        %v1200 = vand.u32 %v1199, 4294901760
        %v1201 = vsub.f32 %v1199, %v1200
        %v1202 = vand.u32 %v1201, 4294901760
        %1203 = vmatmul.mubr.f32.gmra.mxu0 %v1202
        %v1204 = vpop.f32.mrf.mxu0
        %v1205 = vadd.f32 %v1100, %v1204
        %v1206 = vpop.f32.mrf.mxu0
        %1207 = vmatprep.mubr.f32.mxu0 0.0
        %v1208 = vand.u32 %v1121, 4294901760
        %v1209 = vsub.f32 %v1121, %v1208
        %v1210 = vand.u32 %v1209, 4294901760
        %v1211 = vsub.f32 %v1209, %v1210
        %v1212 = vand.u32 %v1211, 4294901760
        %1213 = vmatmul.mubr.f32.gmra.mxu0 %v1212
        %v1214 = vpop.f32.mrf.mxu0
        %v1215 = vadd.f32 %v1105, %v1214
        %v1216 = vpop.f32.mrf.mxu0
        %1217 = vmatprep.mubr.f32.mxu0 0.0
        %v1218 = vand.u32 %v1124, 4294901760
        %v1219 = vsub.f32 %v1124, %v1218
        %v1220 = vand.u32 %v1219, 4294901760
        %v1221 = vsub.f32 %v1219, %v1220
        %v1222 = vand.u32 %v1221, 4294901760
        %1223 = vmatmul.mubr.f32.gmra.mxu0 %v1222
        %v1224 = vpop.f32.mrf.mxu0
        %v1225 = vadd.f32 %v1110, %v1224
        %v1226 = vpop.f32.mrf.mxu0
        %1227 = vmatprep.mubr.f32.mxu0 0.0
        %v1228 = vand.u32 %v1127, 4294901760
        %v1229 = vsub.f32 %v1127, %v1228
        %v1230 = vand.u32 %v1229, 4294901760
        %v1231 = vsub.f32 %v1229, %v1230
        %v1232 = vand.u32 %v1231, 4294901760
        %1233 = vmatmul.mubr.f32.gmra.mxu0 %v1232
        %v1234 = vpop.f32.mrf.mxu0
        %v1235 = vadd.f32 %v1115, %v1234
        %v1236 = vpop.f32.mrf.mxu0
        %1237 = vdwg.mxu0
        %1238 = vmatprep.subr.mxu0 0.0
        %1239 = vmatpush1.xpose.msra.mxu0 0.0
        %1240 = vmatprep.subr.mxu0 0.0
        %1241 = vmatpush1.xpose.msra.mxu0 0.0
        %1242 = vmatprep.subr.mxu0 0.0
        %1243 = vmatpush1.xpose.msra.mxu0 0.0
        %1244 = vmatprep.subr.mxu0 0.0
        %1245 = vmatpush1.xpose.msra.mxu0 0.0
        %1246 = vmatprep.subr.mxu0 0.0
        %1247 = vmatpush1.xpose.msra.mxu0 0.0
        %1248 = vmatprep.subr.mxu0 0.0
        %1249 = vmatpush1.xpose.msra.mxu0 0.0
        %1250 = vmatprep.subr.mxu0 0.0
        %1251 = vmatpush1.xpose.msra.mxu0 0.0
        %1252 = vmatprep.subr.mxu0 0.0
        %1253 = vmatpush1.xpose.msra.mxu0 0.0
        %1254 = vmatprep.subr.mxu0 0.0
        %1255 = vmatpush1.xpose.msra.mxu0 0.0
        %1256 = vmatprep.subr.mxu0 0.0
        %1257 = vmatpush1.xpose.msra.mxu0 0.0
        %1258 = vmatprep.subr.mxu0 0.0
        %1259 = vmatpush1.xpose.msra.mxu0 0.0
        %1260 = vmatprep.subr.mxu0 0.0
        %1261 = vmatpush1.xpose.msra.mxu0 0.0
        %1262 = vmatprep.subr.mxu0 0.0
        %1263 = vmatpush1.xpose.msra.mxu0 0.0
        %1264 = vmatprep.subr.mxu0 0.0
        %1265 = vmatpush1.xpose.msra.mxu0 0.0
        %1266 = vmatprep.subr.mxu0 0.0
        %1267 = vmatpush1.xpose.msra.mxu0 0.0
        %1268 = vmatprep.subr.mxu0 0.0
        %v1269 = vand.u32 %v1130, 4294901760
        %v1270 = vsub.f32 %v1130, %v1269
        %v1271 = vand.u32 %v1270, 4294901760
        %v1272 = vsub.f32 %v1270, %v1271
        %v1273 = vand.u32 %v1272, 4294901760
        %1274 = vmatpush1.xpose.msra.mxu0 %v1273
        %1275 = vmatprep.subr.mxu0 0.0
        %1276 = vmatpush2.xpose.msra.mxu0 0.0
        %1277 = vmatprep.subr.mxu0 0.0
        %1278 = vmatpush2.xpose.msra.mxu0 0.0
        %1279 = vmatprep.subr.mxu0 0.0
        %1280 = vmatpush2.xpose.msra.mxu0 0.0
        %1281 = vmatprep.subr.mxu0 0.0
        %1282 = vmatpush2.xpose.msra.mxu0 0.0
        %1283 = vmatprep.subr.mxu0 0.0
        %1284 = vmatpush2.xpose.msra.mxu0 0.0
        %1285 = vmatprep.subr.mxu0 0.0
        %1286 = vmatpush2.xpose.msra.mxu0 0.0
        %1287 = vmatprep.subr.mxu0 0.0
        %1288 = vmatpush2.xpose.msra.mxu0 0.0
        %1289 = vmatprep.subr.mxu0 0.0
        %1290 = vmatpush2.xpose.msra.mxu0 0.0
        %1291 = vmatprep.subr.mxu0 0.0
        %1292 = vmatpush2.xpose.msra.mxu0 0.0
        %1293 = vmatprep.subr.mxu0 0.0
        %1294 = vmatpush2.xpose.msra.mxu0 0.0
        %1295 = vmatprep.subr.mxu0 0.0
        %1296 = vmatpush2.xpose.msra.mxu0 0.0
        %1297 = vmatprep.subr.mxu0 0.0
        %1298 = vmatpush2.xpose.msra.mxu0 0.0
        %1299 = vmatprep.subr.mxu0 0.0
        %1300 = vmatpush2.xpose.msra.mxu0 0.0
        %1301 = vmatprep.subr.mxu0 0.0
        %1302 = vmatpush2.xpose.msra.mxu0 0.0
        %1303 = vmatprep.subr.mxu0 0.0
        %1304 = vmatpush2.xpose.msra.mxu0 0.0
        %1305 = vmatprep.subr.mxu0 0.0
        %1306 = vmatpush2.xpose.msra.mxu0 0.0
        %1307 = vmatprep.mubr.f32.mxu0 0.0
        %v1308 = vand.u32 %v1118, 4294901760
        %1309 = vmatmul.mubr.f32.gmra.mxu0 %v1308
        %v1310 = vpop.f32.mrf.mxu0
        %v1311 = vadd.f32 %v1205, %v1310
        %v1312 = vpop.f32.mrf.mxu0
        %1313 = vmatprep.mubr.f32.mxu0 0.0
        %v1314 = vand.u32 %v1121, 4294901760
        %1315 = vmatmul.mubr.f32.gmra.mxu0 %v1314
        %v1316 = vpop.f32.mrf.mxu0
        %v1317 = vadd.f32 %v1215, %v1316
        %v1318 = vpop.f32.mrf.mxu0
        %1319 = vmatprep.mubr.f32.mxu0 0.0
        %v1320 = vand.u32 %v1124, 4294901760
        %1321 = vmatmul.mubr.f32.gmra.mxu0 %v1320
        %v1322 = vpop.f32.mrf.mxu0
        %v1323 = vadd.f32 %v1225, %v1322
        %v1324 = vpop.f32.mrf.mxu0
        %1325 = vmatprep.mubr.f32.mxu0 0.0
        %v1326 = vand.u32 %v1127, 4294901760
        %1327 = vmatmul.mubr.f32.gmra.mxu0 %v1326
        %v1328 = vpop.f32.mrf.mxu0
        %v1329 = vadd.f32 %v1235, %v1328
        %v1330 = vpop.f32.mrf.mxu0
        %1331 = vdwg.mxu0
        %1332 = vmatprep.subr.mxu0 0.0
        %1333 = vmatpush1.xpose.msra.mxu0 0.0
        %1334 = vmatprep.subr.mxu0 0.0
        %1335 = vmatpush1.xpose.msra.mxu0 0.0
        %1336 = vmatprep.subr.mxu0 0.0
        %1337 = vmatpush1.xpose.msra.mxu0 0.0
        %1338 = vmatprep.subr.mxu0 0.0
        %1339 = vmatpush1.xpose.msra.mxu0 0.0
        %1340 = vmatprep.subr.mxu0 0.0
        %1341 = vmatpush1.xpose.msra.mxu0 0.0
        %1342 = vmatprep.subr.mxu0 0.0
        %1343 = vmatpush1.xpose.msra.mxu0 0.0
        %1344 = vmatprep.subr.mxu0 0.0
        %1345 = vmatpush1.xpose.msra.mxu0 0.0
        %1346 = vmatprep.subr.mxu0 0.0
        %1347 = vmatpush1.xpose.msra.mxu0 0.0
        %1348 = vmatprep.subr.mxu0 0.0
        %1349 = vmatpush1.xpose.msra.mxu0 0.0
        %1350 = vmatprep.subr.mxu0 0.0
        %1351 = vmatpush1.xpose.msra.mxu0 0.0
        %1352 = vmatprep.subr.mxu0 0.0
        %1353 = vmatpush1.xpose.msra.mxu0 0.0
        %1354 = vmatprep.subr.mxu0 0.0
        %1355 = vmatpush1.xpose.msra.mxu0 0.0
        %1356 = vmatprep.subr.mxu0 0.0
        %1357 = vmatpush1.xpose.msra.mxu0 0.0
        %1358 = vmatprep.subr.mxu0 0.0
        %1359 = vmatpush1.xpose.msra.mxu0 0.0
        %1360 = vmatprep.subr.mxu0 0.0
        %1361 = vmatpush1.xpose.msra.mxu0 0.0
        %1362 = vmatprep.subr.mxu0 0.0
        %v1363 = vand.u32 %v1130, 4294901760
        %v1364 = vsub.f32 %v1130, %v1363
        %1365 = vmatpush1.xpose.msra.mxu0 %v1364
        %1366 = vmatprep.subr.mxu0 0.0
        %1367 = vmatpush2.xpose.msra.mxu0 0.0
        %1368 = vmatprep.subr.mxu0 0.0
        %1369 = vmatpush2.xpose.msra.mxu0 0.0
        %1370 = vmatprep.subr.mxu0 0.0
        %1371 = vmatpush2.xpose.msra.mxu0 0.0
        %1372 = vmatprep.subr.mxu0 0.0
        %1373 = vmatpush2.xpose.msra.mxu0 0.0
        %1374 = vmatprep.subr.mxu0 0.0
        %1375 = vmatpush2.xpose.msra.mxu0 0.0
        %1376 = vmatprep.subr.mxu0 0.0
        %1377 = vmatpush2.xpose.msra.mxu0 0.0
        %1378 = vmatprep.subr.mxu0 0.0
        %1379 = vmatpush2.xpose.msra.mxu0 0.0
        %1380 = vmatprep.subr.mxu0 0.0
        %1381 = vmatpush2.xpose.msra.mxu0 0.0
        %1382 = vmatprep.subr.mxu0 0.0
        %1383 = vmatpush2.xpose.msra.mxu0 0.0
        %1384 = vmatprep.subr.mxu0 0.0
        %1385 = vmatpush2.xpose.msra.mxu0 0.0
        %1386 = vmatprep.subr.mxu0 0.0
        %1387 = vmatpush2.xpose.msra.mxu0 0.0
        %1388 = vmatprep.subr.mxu0 0.0
        %1389 = vmatpush2.xpose.msra.mxu0 0.0
        %1390 = vmatprep.subr.mxu0 0.0
        %1391 = vmatpush2.xpose.msra.mxu0 0.0
        %1392 = vmatprep.subr.mxu0 0.0
        %1393 = vmatpush2.xpose.msra.mxu0 0.0
        %1394 = vmatprep.subr.mxu0 0.0
        %1395 = vmatpush2.xpose.msra.mxu0 0.0
        %1396 = vmatprep.subr.mxu0 0.0
        %1397 = vmatpush2.xpose.msra.mxu0 0.0
        %1398 = vmatprep.mubr.f32.mxu0 0.0
        %v1399 = vand.u32 %v1118, 4294901760
        %v1400 = vsub.f32 %v1118, %v1399
        %1401 = vmatmul.mubr.f32.gmra.mxu0 %v1400
        %v1402 = vpop.f32.mrf.mxu0
        %v1403 = vadd.f32 %v1311, %v1402
        %v1404 = vpop.f32.mrf.mxu0
        %1405 = vmatprep.mubr.f32.mxu0 0.0
        %v1406 = vand.u32 %v1121, 4294901760
        %v1407 = vsub.f32 %v1121, %v1406
        %1408 = vmatmul.mubr.f32.gmra.mxu0 %v1407
        %v1409 = vpop.f32.mrf.mxu0
        %v1410 = vadd.f32 %v1317, %v1409
        %v1411 = vpop.f32.mrf.mxu0
        %1412 = vmatprep.mubr.f32.mxu0 0.0
        %v1413 = vand.u32 %v1124, 4294901760
        %v1414 = vsub.f32 %v1124, %v1413
        %1415 = vmatmul.mubr.f32.gmra.mxu0 %v1414
        %v1416 = vpop.f32.mrf.mxu0
        %v1417 = vadd.f32 %v1323, %v1416
        %v1418 = vpop.f32.mrf.mxu0
        %1419 = vmatprep.mubr.f32.mxu0 0.0
        %v1420 = vand.u32 %v1127, 4294901760
        %v1421 = vsub.f32 %v1127, %v1420
        %1422 = vmatmul.mubr.f32.gmra.mxu0 %v1421
        %v1423 = vpop.f32.mrf.mxu0
        %v1424 = vadd.f32 %v1329, %v1423
        %v1425 = vpop.f32.mrf.mxu0
        %1426 = vdwg.mxu0
        %1427 = vmatprep.subr.mxu0 0.0
        %1428 = vmatpush1.xpose.msra.mxu0 0.0
        %1429 = vmatprep.subr.mxu0 0.0
        %1430 = vmatpush1.xpose.msra.mxu0 0.0
        %1431 = vmatprep.subr.mxu0 0.0
        %1432 = vmatpush1.xpose.msra.mxu0 0.0
        %1433 = vmatprep.subr.mxu0 0.0
        %1434 = vmatpush1.xpose.msra.mxu0 0.0
        %1435 = vmatprep.subr.mxu0 0.0
        %1436 = vmatpush1.xpose.msra.mxu0 0.0
        %1437 = vmatprep.subr.mxu0 0.0
        %1438 = vmatpush1.xpose.msra.mxu0 0.0
        %1439 = vmatprep.subr.mxu0 0.0
        %1440 = vmatpush1.xpose.msra.mxu0 0.0
        %1441 = vmatprep.subr.mxu0 0.0
        %1442 = vmatpush1.xpose.msra.mxu0 0.0
        %1443 = vmatprep.subr.mxu0 0.0
        %1444 = vmatpush1.xpose.msra.mxu0 0.0
        %1445 = vmatprep.subr.mxu0 0.0
        %1446 = vmatpush1.xpose.msra.mxu0 0.0
        %1447 = vmatprep.subr.mxu0 0.0
        %1448 = vmatpush1.xpose.msra.mxu0 0.0
        %1449 = vmatprep.subr.mxu0 0.0
        %1450 = vmatpush1.xpose.msra.mxu0 0.0
        %1451 = vmatprep.subr.mxu0 0.0
        %1452 = vmatpush1.xpose.msra.mxu0 0.0
        %1453 = vmatprep.subr.mxu0 0.0
        %1454 = vmatpush1.xpose.msra.mxu0 0.0
        %1455 = vmatprep.subr.mxu0 0.0
        %1456 = vmatpush1.xpose.msra.mxu0 0.0
        %1457 = vmatprep.subr.mxu0 0.0
        %v1458 = vand.u32 %v1130, 4294901760
        %1459 = vmatpush1.xpose.msra.mxu0 %v1458
        %1460 = vmatprep.subr.mxu0 0.0
        %1461 = vmatpush2.xpose.msra.mxu0 0.0
        %1462 = vmatprep.subr.mxu0 0.0
        %1463 = vmatpush2.xpose.msra.mxu0 0.0
        %1464 = vmatprep.subr.mxu0 0.0
        %1465 = vmatpush2.xpose.msra.mxu0 0.0
        %1466 = vmatprep.subr.mxu0 0.0
        %1467 = vmatpush2.xpose.msra.mxu0 0.0
        %1468 = vmatprep.subr.mxu0 0.0
        %1469 = vmatpush2.xpose.msra.mxu0 0.0
        %1470 = vmatprep.subr.mxu0 0.0
        %1471 = vmatpush2.xpose.msra.mxu0 0.0
        %1472 = vmatprep.subr.mxu0 0.0
        %1473 = vmatpush2.xpose.msra.mxu0 0.0
        %1474 = vmatprep.subr.mxu0 0.0
        %1475 = vmatpush2.xpose.msra.mxu0 0.0
        %1476 = vmatprep.subr.mxu0 0.0
        %1477 = vmatpush2.xpose.msra.mxu0 0.0
        %1478 = vmatprep.subr.mxu0 0.0
        %1479 = vmatpush2.xpose.msra.mxu0 0.0
        %1480 = vmatprep.subr.mxu0 0.0
        %1481 = vmatpush2.xpose.msra.mxu0 0.0
        %1482 = vmatprep.subr.mxu0 0.0
        %1483 = vmatpush2.xpose.msra.mxu0 0.0
        %1484 = vmatprep.subr.mxu0 0.0
        %1485 = vmatpush2.xpose.msra.mxu0 0.0
        %1486 = vmatprep.subr.mxu0 0.0
        %1487 = vmatpush2.xpose.msra.mxu0 0.0
        %1488 = vmatprep.subr.mxu0 0.0
        %1489 = vmatpush2.xpose.msra.mxu0 0.0
        %1490 = vmatprep.subr.mxu0 0.0
        %1491 = vmatpush2.xpose.msra.mxu0 0.0
        %1492 = vmatprep.mubr.f32.mxu0 0.0
        %v1493 = vand.u32 %v1118, 4294901760
        %v1494 = vsub.f32 %v1118, %v1493
        %v1495 = vand.u32 %v1494, 4294901760
        %1496 = vmatmul.mubr.f32.gmra.mxu0 %v1495
        %v1497 = vpop.f32.mrf.mxu0
        %v1498 = vadd.f32 %v1403, %v1497
        %v1499 = vpop.f32.mrf.mxu0
        %1500 = vmatprep.mubr.f32.mxu0 0.0
        %v1501 = vand.u32 %v1121, 4294901760
        %v1502 = vsub.f32 %v1121, %v1501
        %v1503 = vand.u32 %v1502, 4294901760
        %1504 = vmatmul.mubr.f32.gmra.mxu0 %v1503
        %v1505 = vpop.f32.mrf.mxu0
        %v1506 = vadd.f32 %v1410, %v1505
        %v1507 = vpop.f32.mrf.mxu0
        %1508 = vmatprep.mubr.f32.mxu0 0.0
        %v1509 = vand.u32 %v1124, 4294901760
        %v1510 = vsub.f32 %v1124, %v1509
        %v1511 = vand.u32 %v1510, 4294901760
        %1512 = vmatmul.mubr.f32.gmra.mxu0 %v1511
        %v1513 = vpop.f32.mrf.mxu0
        %v1514 = vadd.f32 %v1417, %v1513
        %v1515 = vpop.f32.mrf.mxu0
        %1516 = vmatprep.mubr.f32.mxu0 0.0
        %v1517 = vand.u32 %v1127, 4294901760
        %v1518 = vsub.f32 %v1127, %v1517
        %v1519 = vand.u32 %v1518, 4294901760
        %1520 = vmatmul.mubr.f32.gmra.mxu0 %v1519
        %v1521 = vpop.f32.mrf.mxu0
        %v1522 = vadd.f32 %v1424, %v1521
        %v1523 = vpop.f32.mrf.mxu0
        %1524 = vdwg.mxu0
        %1525 = vmatprep.subr.mxu0 0.0
        %1526 = vmatpush1.xpose.msra.mxu0 0.0
        %1527 = vmatprep.subr.mxu0 0.0
        %1528 = vmatpush1.xpose.msra.mxu0 0.0
        %1529 = vmatprep.subr.mxu0 0.0
        %1530 = vmatpush1.xpose.msra.mxu0 0.0
        %1531 = vmatprep.subr.mxu0 0.0
        %1532 = vmatpush1.xpose.msra.mxu0 0.0
        %1533 = vmatprep.subr.mxu0 0.0
        %1534 = vmatpush1.xpose.msra.mxu0 0.0
        %1535 = vmatprep.subr.mxu0 0.0
        %1536 = vmatpush1.xpose.msra.mxu0 0.0
        %1537 = vmatprep.subr.mxu0 0.0
        %1538 = vmatpush1.xpose.msra.mxu0 0.0
        %1539 = vmatprep.subr.mxu0 0.0
        %1540 = vmatpush1.xpose.msra.mxu0 0.0
        %1541 = vmatprep.subr.mxu0 0.0
        %1542 = vmatpush1.xpose.msra.mxu0 0.0
        %1543 = vmatprep.subr.mxu0 0.0
        %1544 = vmatpush1.xpose.msra.mxu0 0.0
        %1545 = vmatprep.subr.mxu0 0.0
        %1546 = vmatpush1.xpose.msra.mxu0 0.0
        %1547 = vmatprep.subr.mxu0 0.0
        %1548 = vmatpush1.xpose.msra.mxu0 0.0
        %1549 = vmatprep.subr.mxu0 0.0
        %1550 = vmatpush1.xpose.msra.mxu0 0.0
        %1551 = vmatprep.subr.mxu0 0.0
        %1552 = vmatpush1.xpose.msra.mxu0 0.0
        %1553 = vmatprep.subr.mxu0 0.0
        %1554 = vmatpush1.xpose.msra.mxu0 0.0
        %1555 = vmatprep.subr.mxu0 0.0
        %v1556 = vand.u32 %v1130, 4294901760
        %v1557 = vsub.f32 %v1130, %v1556
        %v1558 = vand.u32 %v1557, 4294901760
        %1559 = vmatpush1.xpose.msra.mxu0 %v1558
        %1560 = vmatprep.subr.mxu0 0.0
        %1561 = vmatpush2.xpose.msra.mxu0 0.0
        %1562 = vmatprep.subr.mxu0 0.0
        %1563 = vmatpush2.xpose.msra.mxu0 0.0
        %1564 = vmatprep.subr.mxu0 0.0
        %1565 = vmatpush2.xpose.msra.mxu0 0.0
        %1566 = vmatprep.subr.mxu0 0.0
        %1567 = vmatpush2.xpose.msra.mxu0 0.0
        %1568 = vmatprep.subr.mxu0 0.0
        %1569 = vmatpush2.xpose.msra.mxu0 0.0
        %1570 = vmatprep.subr.mxu0 0.0
        %1571 = vmatpush2.xpose.msra.mxu0 0.0
        %1572 = vmatprep.subr.mxu0 0.0
        %1573 = vmatpush2.xpose.msra.mxu0 0.0
        %1574 = vmatprep.subr.mxu0 0.0
        %1575 = vmatpush2.xpose.msra.mxu0 0.0
        %1576 = vmatprep.subr.mxu0 0.0
        %1577 = vmatpush2.xpose.msra.mxu0 0.0
        %1578 = vmatprep.subr.mxu0 0.0
        %1579 = vmatpush2.xpose.msra.mxu0 0.0
        %1580 = vmatprep.subr.mxu0 0.0
        %1581 = vmatpush2.xpose.msra.mxu0 0.0
        %1582 = vmatprep.subr.mxu0 0.0
        %1583 = vmatpush2.xpose.msra.mxu0 0.0
        %1584 = vmatprep.subr.mxu0 0.0
        %1585 = vmatpush2.xpose.msra.mxu0 0.0
        %1586 = vmatprep.subr.mxu0 0.0
        %1587 = vmatpush2.xpose.msra.mxu0 0.0
        %1588 = vmatprep.subr.mxu0 0.0
        %1589 = vmatpush2.xpose.msra.mxu0 0.0
        %1590 = vmatprep.subr.mxu0 0.0
        %1591 = vmatpush2.xpose.msra.mxu0 0.0
        %1592 = vmatprep.mubr.f32.mxu0 0.0
        %v1593 = vand.u32 %v1118, 4294901760
        %1594 = vmatmul.mubr.f32.gmra.mxu0 %v1593
        %v1595 = vpop.f32.mrf.mxu0
        %v1596 = vadd.f32 %v1498, %v1595
        %v1597 = vpop.f32.mrf.mxu0
        %1598 = vmatprep.mubr.f32.mxu0 0.0
        %v1599 = vand.u32 %v1121, 4294901760
        %1600 = vmatmul.mubr.f32.gmra.mxu0 %v1599
        %v1601 = vpop.f32.mrf.mxu0
        %v1602 = vadd.f32 %v1506, %v1601
        %v1603 = vpop.f32.mrf.mxu0
        %1604 = vmatprep.mubr.f32.mxu0 0.0
        %v1605 = vand.u32 %v1124, 4294901760
        %1606 = vmatmul.mubr.f32.gmra.mxu0 %v1605
        %v1607 = vpop.f32.mrf.mxu0
        %v1608 = vadd.f32 %v1514, %v1607
        %v1609 = vpop.f32.mrf.mxu0
        %1610 = vmatprep.mubr.f32.mxu0 0.0
        %v1611 = vand.u32 %v1127, 4294901760
        %1612 = vmatmul.mubr.f32.gmra.mxu0 %v1611
        %v1613 = vpop.f32.mrf.mxu0
        %v1614 = vadd.f32 %v1522, %v1613
        %v1615 = vpop.f32.mrf.mxu0
        %1616 = vdwg.mxu0
        %1617 = vmatprep.subr.mxu0 0.0
        %1618 = vmatpush1.xpose.msra.mxu0 0.0
        %1619 = vmatprep.subr.mxu0 0.0
        %1620 = vmatpush1.xpose.msra.mxu0 0.0
        %1621 = vmatprep.subr.mxu0 0.0
        %1622 = vmatpush1.xpose.msra.mxu0 0.0
        %1623 = vmatprep.subr.mxu0 0.0
        %1624 = vmatpush1.xpose.msra.mxu0 0.0
        %1625 = vmatprep.subr.mxu0 0.0
        %1626 = vmatpush1.xpose.msra.mxu0 0.0
        %1627 = vmatprep.subr.mxu0 0.0
        %1628 = vmatpush1.xpose.msra.mxu0 0.0
        %1629 = vmatprep.subr.mxu0 0.0
        %1630 = vmatpush1.xpose.msra.mxu0 0.0
        %1631 = vmatprep.subr.mxu0 0.0
        %1632 = vmatpush1.xpose.msra.mxu0 0.0
        %1633 = vmatprep.subr.mxu0 0.0
        %1634 = vmatpush1.xpose.msra.mxu0 0.0
        %1635 = vmatprep.subr.mxu0 0.0
        %1636 = vmatpush1.xpose.msra.mxu0 0.0
        %1637 = vmatprep.subr.mxu0 0.0
        %1638 = vmatpush1.xpose.msra.mxu0 0.0
        %1639 = vmatprep.subr.mxu0 0.0
        %1640 = vmatpush1.xpose.msra.mxu0 0.0
        %1641 = vmatprep.subr.mxu0 0.0
        %1642 = vmatpush1.xpose.msra.mxu0 0.0
        %1643 = vmatprep.subr.mxu0 0.0
        %1644 = vmatpush1.xpose.msra.mxu0 0.0
        %1645 = vmatprep.subr.mxu0 0.0
        %1646 = vmatpush1.xpose.msra.mxu0 0.0
        %1647 = vmatprep.subr.mxu0 0.0
        %v1648 = vand.u32 %v1130, 4294901760
        %1649 = vmatpush1.xpose.msra.mxu0 %v1648
        %1650 = vmatprep.subr.mxu0 0.0
        %1651 = vmatpush2.xpose.msra.mxu0 0.0
        %1652 = vmatprep.subr.mxu0 0.0
        %1653 = vmatpush2.xpose.msra.mxu0 0.0
        %1654 = vmatprep.subr.mxu0 0.0
        %1655 = vmatpush2.xpose.msra.mxu0 0.0
        %1656 = vmatprep.subr.mxu0 0.0
        %1657 = vmatpush2.xpose.msra.mxu0 0.0
        %1658 = vmatprep.subr.mxu0 0.0
        %1659 = vmatpush2.xpose.msra.mxu0 0.0
        %1660 = vmatprep.subr.mxu0 0.0
        %1661 = vmatpush2.xpose.msra.mxu0 0.0
        %1662 = vmatprep.subr.mxu0 0.0
        %1663 = vmatpush2.xpose.msra.mxu0 0.0
        %1664 = vmatprep.subr.mxu0 0.0
        %1665 = vmatpush2.xpose.msra.mxu0 0.0
        %1666 = vmatprep.subr.mxu0 0.0
        %1667 = vmatpush2.xpose.msra.mxu0 0.0
        %1668 = vmatprep.subr.mxu0 0.0
        %1669 = vmatpush2.xpose.msra.mxu0 0.0
        %1670 = vmatprep.subr.mxu0 0.0
        %1671 = vmatpush2.xpose.msra.mxu0 0.0
        %1672 = vmatprep.subr.mxu0 0.0
        %1673 = vmatpush2.xpose.msra.mxu0 0.0
        %1674 = vmatprep.subr.mxu0 0.0
        %1675 = vmatpush2.xpose.msra.mxu0 0.0
        %1676 = vmatprep.subr.mxu0 0.0
        %1677 = vmatpush2.xpose.msra.mxu0 0.0
        %1678 = vmatprep.subr.mxu0 0.0
        %1679 = vmatpush2.xpose.msra.mxu0 0.0
        %1680 = vmatprep.subr.mxu0 0.0
        %1681 = vmatpush2.xpose.msra.mxu0 0.0
        %1682 = vmatprep.mubr.f32.mxu0 0.0
        %v1683 = vand.u32 %v1118, 4294901760
        %1684 = vmatmul.mubr.f32.gmra.mxu0 %v1683
        %v1685 = vpop.f32.mrf.mxu0
        %v1686 = vadd.f32 %v1596, %v1685
        %v1687 = vpop.f32.mrf.mxu0
        %1688 = vmatprep.mubr.f32.mxu0 0.0
        %v1689 = vand.u32 %v1121, 4294901760
        %1690 = vmatmul.mubr.f32.gmra.mxu0 %v1689
        %v1691 = vpop.f32.mrf.mxu0
        %v1692 = vadd.f32 %v1602, %v1691
        %v1693 = vpop.f32.mrf.mxu0
        %1694 = vmatprep.mubr.f32.mxu0 0.0
        %v1695 = vand.u32 %v1124, 4294901760
        %1696 = vmatmul.mubr.f32.gmra.mxu0 %v1695
        %v1697 = vpop.f32.mrf.mxu0
        %v1698 = vadd.f32 %v1608, %v1697
        %v1699 = vpop.f32.mrf.mxu0
        %1700 = vmatprep.mubr.f32.mxu0 0.0
        %v1701 = vand.u32 %v1127, 4294901760
        %1702 = vmatmul.mubr.f32.gmra.mxu0 %v1701
        %v1703 = vpop.f32.mrf.mxu0
        %v1704 = vadd.f32 %v1614, %v1703
        %v1705 = vpop.f32.mrf.mxu0
        %1706 = vdwg.mxu0
        %v1707 = vld [vmem:[%s493] sm:$0xff]
        %v1708 = vld [vmem:[#allocation11] sm:$0xff]
        %v1709 = vld [vmem:[#allocation11 + $0x8] sm:$0xff]
        %v1710 = vld [vmem:[#allocation11 + $0x10] sm:$0xff]
        %v1711 = vld [vmem:[#allocation11 + $0x18] sm:$0xff]
        %v1712 = vld [vmem:[%s584] sm:$0x1]
        %v1714 = vlaneseq
        %v1715 = vshrl.u32 %v1714, 7
        %v1716 = vsub.s32 0, %v1715
        %v1717 = vrot.slane %v1712, %v1716
        %v1720 = vsel %vm598, %v1707, 0
        %1722 = vmatprep.subr.mxu0 0.0
        %1723 = vmatpush1.msra.mxu0 0.0
        %1724 = vmatprep.subr.mxu0 0.0
        %1725 = vmatpush1.msra.mxu0 0.0
        %1726 = vmatprep.subr.mxu0 0.0
        %1727 = vmatpush1.msra.mxu0 0.0
        %1728 = vmatprep.subr.mxu0 0.0
        %1729 = vmatpush1.msra.mxu0 0.0
        %1730 = vmatprep.subr.mxu0 0.0
        %1731 = vmatpush1.msra.mxu0 0.0
        %1732 = vmatprep.subr.mxu0 0.0
        %1733 = vmatpush1.msra.mxu0 0.0
        %1734 = vmatprep.subr.mxu0 0.0
        %1735 = vmatpush1.msra.mxu0 0.0
        %1736 = vmatprep.subr.mxu0 0.0
        %1737 = vmatpush1.msra.mxu0 0.0
        %1738 = vmatprep.subr.mxu0 0.0
        %1739 = vmatpush1.msra.mxu0 0.0
        %1740 = vmatprep.subr.mxu0 0.0
        %1741 = vmatpush1.msra.mxu0 0.0
        %1742 = vmatprep.subr.mxu0 0.0
        %1743 = vmatpush1.msra.mxu0 0.0
        %1744 = vmatprep.subr.mxu0 0.0
        %1745 = vmatpush1.msra.mxu0 0.0
        %1746 = vmatprep.subr.mxu0 0.0
        %v1747 = vand.u32 %v1711, 4294901760
        %1748 = vmatpush1.msra.mxu0 %v1747
        %1749 = vmatprep.subr.mxu0 0.0
        %v1750 = vand.u32 %v1710, 4294901760
        %1751 = vmatpush1.msra.mxu0 %v1750
        %1752 = vmatprep.subr.mxu0 0.0
        %v1753 = vand.u32 %v1709, 4294901760
        %1754 = vmatpush1.msra.mxu0 %v1753
        %1755 = vmatprep.subr.mxu0 0.0
        %v1756 = vand.u32 %v1708, 4294901760
        %1757 = vmatpush1.msra.mxu0 %v1756
        %1758 = vmatprep.subr.mxu0 0.0
        %1759 = vmatpush2.msra.mxu0 0.0
        %1760 = vmatprep.subr.mxu0 0.0
        %1761 = vmatpush2.msra.mxu0 0.0
        %1762 = vmatprep.subr.mxu0 0.0
        %1763 = vmatpush2.msra.mxu0 0.0
        %1764 = vmatprep.subr.mxu0 0.0
        %1765 = vmatpush2.msra.mxu0 0.0
        %1766 = vmatprep.subr.mxu0 0.0
        %1767 = vmatpush2.msra.mxu0 0.0
        %1768 = vmatprep.subr.mxu0 0.0
        %1769 = vmatpush2.msra.mxu0 0.0
        %1770 = vmatprep.subr.mxu0 0.0
        %1771 = vmatpush2.msra.mxu0 0.0
        %1772 = vmatprep.subr.mxu0 0.0
        %1773 = vmatpush2.msra.mxu0 0.0
        %1774 = vmatprep.subr.mxu0 0.0
        %1775 = vmatpush2.msra.mxu0 0.0
        %1776 = vmatprep.subr.mxu0 0.0
        %1777 = vmatpush2.msra.mxu0 0.0
        %1778 = vmatprep.subr.mxu0 0.0
        %1779 = vmatpush2.msra.mxu0 0.0
        %1780 = vmatprep.subr.mxu0 0.0
        %1781 = vmatpush2.msra.mxu0 0.0
        %1782 = vmatprep.subr.mxu0 0.0
        %1783 = vmatpush2.msra.mxu0 0.0
        %1784 = vmatprep.subr.mxu0 0.0
        %1785 = vmatpush2.msra.mxu0 0.0
        %1786 = vmatprep.subr.mxu0 0.0
        %1787 = vmatpush2.msra.mxu0 0.0
        %1788 = vmatprep.subr.mxu0 0.0
        %1789 = vmatpush2.msra.mxu0 0.0
        %1790 = vmatprep.mubr.f32.mxu0 0.0
        %v1791 = vand.u32 %v1720, 4294901760
        %v1792 = vsub.f32 %v1720, %v1791
        %v1793 = vand.u32 %v1792, 4294901760
        %v1794 = vsub.f32 %v1792, %v1793
        %v1795 = vand.u32 %v1794, 4294901760
        %1796 = vmatmul.mubr.f32.gmra.mxu0 %v1795
        %v1797 = vpop.f32.mrf.mxu0
        %v1798 = vadd.f32 %v1717, %v1797
        %v1799 = vpop.f32.mrf.mxu0
        %1800 = vdwg.mxu0
        %1801 = vmatprep.subr.mxu0 0.0
        %1802 = vmatpush1.msra.mxu0 0.0
        %1803 = vmatprep.subr.mxu0 0.0
        %1804 = vmatpush1.msra.mxu0 0.0
        %1805 = vmatprep.subr.mxu0 0.0
        %1806 = vmatpush1.msra.mxu0 0.0
        %1807 = vmatprep.subr.mxu0 0.0
        %1808 = vmatpush1.msra.mxu0 0.0
        %1809 = vmatprep.subr.mxu0 0.0
        %1810 = vmatpush1.msra.mxu0 0.0
        %1811 = vmatprep.subr.mxu0 0.0
        %1812 = vmatpush1.msra.mxu0 0.0
        %1813 = vmatprep.subr.mxu0 0.0
        %1814 = vmatpush1.msra.mxu0 0.0
        %1815 = vmatprep.subr.mxu0 0.0
        %1816 = vmatpush1.msra.mxu0 0.0
        %1817 = vmatprep.subr.mxu0 0.0
        %1818 = vmatpush1.msra.mxu0 0.0
        %1819 = vmatprep.subr.mxu0 0.0
        %1820 = vmatpush1.msra.mxu0 0.0
        %1821 = vmatprep.subr.mxu0 0.0
        %1822 = vmatpush1.msra.mxu0 0.0
        %1823 = vmatprep.subr.mxu0 0.0
        %1824 = vmatpush1.msra.mxu0 0.0
        %1825 = vmatprep.subr.mxu0 0.0
        %v1826 = vand.u32 %v1711, 4294901760
        %v1827 = vsub.f32 %v1711, %v1826
        %v1828 = vand.u32 %v1827, 4294901760
        %v1829 = vsub.f32 %v1827, %v1828
        %v1830 = vand.u32 %v1829, 4294901760
        %1831 = vmatpush1.msra.mxu0 %v1830
        %1832 = vmatprep.subr.mxu0 0.0
        %v1833 = vand.u32 %v1710, 4294901760
        %v1834 = vsub.f32 %v1710, %v1833
        %v1835 = vand.u32 %v1834, 4294901760
        %v1836 = vsub.f32 %v1834, %v1835
        %v1837 = vand.u32 %v1836, 4294901760
        %1838 = vmatpush1.msra.mxu0 %v1837
        %1839 = vmatprep.subr.mxu0 0.0
        %v1840 = vand.u32 %v1709, 4294901760
        %v1841 = vsub.f32 %v1709, %v1840
        %v1842 = vand.u32 %v1841, 4294901760
        %v1843 = vsub.f32 %v1841, %v1842
        %v1844 = vand.u32 %v1843, 4294901760
        %1845 = vmatpush1.msra.mxu0 %v1844
        %1846 = vmatprep.subr.mxu0 0.0
        %v1847 = vand.u32 %v1708, 4294901760
        %v1848 = vsub.f32 %v1708, %v1847
        %v1849 = vand.u32 %v1848, 4294901760
        %v1850 = vsub.f32 %v1848, %v1849
        %v1851 = vand.u32 %v1850, 4294901760
        %1852 = vmatpush1.msra.mxu0 %v1851
        %1853 = vmatprep.subr.mxu0 0.0
        %1854 = vmatpush2.msra.mxu0 0.0
        %1855 = vmatprep.subr.mxu0 0.0
        %1856 = vmatpush2.msra.mxu0 0.0
        %1857 = vmatprep.subr.mxu0 0.0
        %1858 = vmatpush2.msra.mxu0 0.0
        %1859 = vmatprep.subr.mxu0 0.0
        %1860 = vmatpush2.msra.mxu0 0.0
        %1861 = vmatprep.subr.mxu0 0.0
        %1862 = vmatpush2.msra.mxu0 0.0
        %1863 = vmatprep.subr.mxu0 0.0
        %1864 = vmatpush2.msra.mxu0 0.0
        %1865 = vmatprep.subr.mxu0 0.0
        %1866 = vmatpush2.msra.mxu0 0.0
        %1867 = vmatprep.subr.mxu0 0.0
        %1868 = vmatpush2.msra.mxu0 0.0
        %1869 = vmatprep.subr.mxu0 0.0
        %1870 = vmatpush2.msra.mxu0 0.0
        %1871 = vmatprep.subr.mxu0 0.0
        %1872 = vmatpush2.msra.mxu0 0.0
        %1873 = vmatprep.subr.mxu0 0.0
        %1874 = vmatpush2.msra.mxu0 0.0
        %1875 = vmatprep.subr.mxu0 0.0
        %1876 = vmatpush2.msra.mxu0 0.0
        %1877 = vmatprep.subr.mxu0 0.0
        %1878 = vmatpush2.msra.mxu0 0.0
        %1879 = vmatprep.subr.mxu0 0.0
        %1880 = vmatpush2.msra.mxu0 0.0
        %1881 = vmatprep.subr.mxu0 0.0
        %1882 = vmatpush2.msra.mxu0 0.0
        %1883 = vmatprep.subr.mxu0 0.0
        %1884 = vmatpush2.msra.mxu0 0.0
        %1885 = vmatprep.mubr.f32.mxu0 0.0
        %v1886 = vand.u32 %v1720, 4294901760
        %1887 = vmatmul.mubr.f32.gmra.mxu0 %v1886
        %v1888 = vpop.f32.mrf.mxu0
        %v1889 = vadd.f32 %v1798, %v1888
        %v1890 = vpop.f32.mrf.mxu0
        %1891 = vdwg.mxu0
        %1892 = vmatprep.subr.mxu0 0.0
        %1893 = vmatpush1.msra.mxu0 0.0
        %1894 = vmatprep.subr.mxu0 0.0
        %1895 = vmatpush1.msra.mxu0 0.0
        %1896 = vmatprep.subr.mxu0 0.0
        %1897 = vmatpush1.msra.mxu0 0.0
        %1898 = vmatprep.subr.mxu0 0.0
        %1899 = vmatpush1.msra.mxu0 0.0
        %1900 = vmatprep.subr.mxu0 0.0
        %1901 = vmatpush1.msra.mxu0 0.0
        %1902 = vmatprep.subr.mxu0 0.0
        %1903 = vmatpush1.msra.mxu0 0.0
        %1904 = vmatprep.subr.mxu0 0.0
        %1905 = vmatpush1.msra.mxu0 0.0
        %1906 = vmatprep.subr.mxu0 0.0
        %1907 = vmatpush1.msra.mxu0 0.0
        %1908 = vmatprep.subr.mxu0 0.0
        %1909 = vmatpush1.msra.mxu0 0.0
        %1910 = vmatprep.subr.mxu0 0.0
        %1911 = vmatpush1.msra.mxu0 0.0
        %1912 = vmatprep.subr.mxu0 0.0
        %1913 = vmatpush1.msra.mxu0 0.0
        %1914 = vmatprep.subr.mxu0 0.0
        %1915 = vmatpush1.msra.mxu0 0.0
        %1916 = vmatprep.subr.mxu0 0.0
        %v1917 = vand.u32 %v1711, 4294901760
        %v1918 = vsub.f32 %v1711, %v1917
        %1919 = vmatpush1.msra.mxu0 %v1918
        %1920 = vmatprep.subr.mxu0 0.0
        %v1921 = vand.u32 %v1710, 4294901760
        %v1922 = vsub.f32 %v1710, %v1921
        %1923 = vmatpush1.msra.mxu0 %v1922
        %1924 = vmatprep.subr.mxu0 0.0
        %v1925 = vand.u32 %v1709, 4294901760
        %v1926 = vsub.f32 %v1709, %v1925
        %1927 = vmatpush1.msra.mxu0 %v1926
        %1928 = vmatprep.subr.mxu0 0.0
        %v1929 = vand.u32 %v1708, 4294901760
        %v1930 = vsub.f32 %v1708, %v1929
        %1931 = vmatpush1.msra.mxu0 %v1930
        %1932 = vmatprep.subr.mxu0 0.0
        %1933 = vmatpush2.msra.mxu0 0.0
        %1934 = vmatprep.subr.mxu0 0.0
        %1935 = vmatpush2.msra.mxu0 0.0
        %1936 = vmatprep.subr.mxu0 0.0
        %1937 = vmatpush2.msra.mxu0 0.0
        %1938 = vmatprep.subr.mxu0 0.0
        %1939 = vmatpush2.msra.mxu0 0.0
        %1940 = vmatprep.subr.mxu0 0.0
        %1941 = vmatpush2.msra.mxu0 0.0
        %1942 = vmatprep.subr.mxu0 0.0
        %1943 = vmatpush2.msra.mxu0 0.0
        %1944 = vmatprep.subr.mxu0 0.0
        %1945 = vmatpush2.msra.mxu0 0.0
        %1946 = vmatprep.subr.mxu0 0.0
        %1947 = vmatpush2.msra.mxu0 0.0
        %1948 = vmatprep.subr.mxu0 0.0
        %1949 = vmatpush2.msra.mxu0 0.0
        %1950 = vmatprep.subr.mxu0 0.0
        %1951 = vmatpush2.msra.mxu0 0.0
        %1952 = vmatprep.subr.mxu0 0.0
        %1953 = vmatpush2.msra.mxu0 0.0
        %1954 = vmatprep.subr.mxu0 0.0
        %1955 = vmatpush2.msra.mxu0 0.0
        %1956 = vmatprep.subr.mxu0 0.0
        %1957 = vmatpush2.msra.mxu0 0.0
        %1958 = vmatprep.subr.mxu0 0.0
        %1959 = vmatpush2.msra.mxu0 0.0
        %1960 = vmatprep.subr.mxu0 0.0
        %1961 = vmatpush2.msra.mxu0 0.0
        %1962 = vmatprep.subr.mxu0 0.0
        %1963 = vmatpush2.msra.mxu0 0.0
        %1964 = vmatprep.mubr.f32.mxu0 0.0
        %v1965 = vand.u32 %v1720, 4294901760
        %v1966 = vsub.f32 %v1720, %v1965
        %1967 = vmatmul.mubr.f32.gmra.mxu0 %v1966
        %v1968 = vpop.f32.mrf.mxu0
        %v1969 = vadd.f32 %v1889, %v1968
        %v1970 = vpop.f32.mrf.mxu0
        %1971 = vdwg.mxu0
        %1972 = vmatprep.subr.mxu0 0.0
        %1973 = vmatpush1.msra.mxu0 0.0
        %1974 = vmatprep.subr.mxu0 0.0
        %1975 = vmatpush1.msra.mxu0 0.0
        %1976 = vmatprep.subr.mxu0 0.0
        %1977 = vmatpush1.msra.mxu0 0.0
        %1978 = vmatprep.subr.mxu0 0.0
        %1979 = vmatpush1.msra.mxu0 0.0
        %1980 = vmatprep.subr.mxu0 0.0
        %1981 = vmatpush1.msra.mxu0 0.0
        %1982 = vmatprep.subr.mxu0 0.0
        %1983 = vmatpush1.msra.mxu0 0.0
        %1984 = vmatprep.subr.mxu0 0.0
        %1985 = vmatpush1.msra.mxu0 0.0
        %1986 = vmatprep.subr.mxu0 0.0
        %1987 = vmatpush1.msra.mxu0 0.0
        %1988 = vmatprep.subr.mxu0 0.0
        %1989 = vmatpush1.msra.mxu0 0.0
        %1990 = vmatprep.subr.mxu0 0.0
        %1991 = vmatpush1.msra.mxu0 0.0
        %1992 = vmatprep.subr.mxu0 0.0
        %1993 = vmatpush1.msra.mxu0 0.0
        %1994 = vmatprep.subr.mxu0 0.0
        %1995 = vmatpush1.msra.mxu0 0.0
        %1996 = vmatprep.subr.mxu0 0.0
        %v1997 = vand.u32 %v1711, 4294901760
        %1998 = vmatpush1.msra.mxu0 %v1997
        %1999 = vmatprep.subr.mxu0 0.0
        %v2000 = vand.u32 %v1710, 4294901760
        %2001 = vmatpush1.msra.mxu0 %v2000
        %2002 = vmatprep.subr.mxu0 0.0
        %v2003 = vand.u32 %v1709, 4294901760
        %2004 = vmatpush1.msra.mxu0 %v2003
        %2005 = vmatprep.subr.mxu0 0.0
        %v2006 = vand.u32 %v1708, 4294901760
        %2007 = vmatpush1.msra.mxu0 %v2006
        %2008 = vmatprep.subr.mxu0 0.0
        %2009 = vmatpush2.msra.mxu0 0.0
        %2010 = vmatprep.subr.mxu0 0.0
        %2011 = vmatpush2.msra.mxu0 0.0
        %2012 = vmatprep.subr.mxu0 0.0
        %2013 = vmatpush2.msra.mxu0 0.0
        %2014 = vmatprep.subr.mxu0 0.0
        %2015 = vmatpush2.msra.mxu0 0.0
        %2016 = vmatprep.subr.mxu0 0.0
        %2017 = vmatpush2.msra.mxu0 0.0
        %2018 = vmatprep.subr.mxu0 0.0
        %2019 = vmatpush2.msra.mxu0 0.0
        %2020 = vmatprep.subr.mxu0 0.0
        %2021 = vmatpush2.msra.mxu0 0.0
        %2022 = vmatprep.subr.mxu0 0.0
        %2023 = vmatpush2.msra.mxu0 0.0
        %2024 = vmatprep.subr.mxu0 0.0
        %2025 = vmatpush2.msra.mxu0 0.0
        %2026 = vmatprep.subr.mxu0 0.0
        %2027 = vmatpush2.msra.mxu0 0.0
        %2028 = vmatprep.subr.mxu0 0.0
        %2029 = vmatpush2.msra.mxu0 0.0
        %2030 = vmatprep.subr.mxu0 0.0
        %2031 = vmatpush2.msra.mxu0 0.0
        %2032 = vmatprep.subr.mxu0 0.0
        %2033 = vmatpush2.msra.mxu0 0.0
        %2034 = vmatprep.subr.mxu0 0.0
        %2035 = vmatpush2.msra.mxu0 0.0
        %2036 = vmatprep.subr.mxu0 0.0
        %2037 = vmatpush2.msra.mxu0 0.0
        %2038 = vmatprep.subr.mxu0 0.0
        %2039 = vmatpush2.msra.mxu0 0.0
        %2040 = vmatprep.mubr.f32.mxu0 0.0
        %v2041 = vand.u32 %v1720, 4294901760
        %v2042 = vsub.f32 %v1720, %v2041
        %v2043 = vand.u32 %v2042, 4294901760
        %2044 = vmatmul.mubr.f32.gmra.mxu0 %v2043
        %v2045 = vpop.f32.mrf.mxu0
        %v2046 = vadd.f32 %v1969, %v2045
        %v2047 = vpop.f32.mrf.mxu0
        %2048 = vdwg.mxu0
        %2049 = vmatprep.subr.mxu0 0.0
        %2050 = vmatpush1.msra.mxu0 0.0
        %2051 = vmatprep.subr.mxu0 0.0
        %2052 = vmatpush1.msra.mxu0 0.0
        %2053 = vmatprep.subr.mxu0 0.0
        %2054 = vmatpush1.msra.mxu0 0.0
        %2055 = vmatprep.subr.mxu0 0.0
        %2056 = vmatpush1.msra.mxu0 0.0
        %2057 = vmatprep.subr.mxu0 0.0
        %2058 = vmatpush1.msra.mxu0 0.0
        %2059 = vmatprep.subr.mxu0 0.0
        %2060 = vmatpush1.msra.mxu0 0.0
        %2061 = vmatprep.subr.mxu0 0.0
        %2062 = vmatpush1.msra.mxu0 0.0
        %2063 = vmatprep.subr.mxu0 0.0
        %2064 = vmatpush1.msra.mxu0 0.0
        %2065 = vmatprep.subr.mxu0 0.0
        %2066 = vmatpush1.msra.mxu0 0.0
        %2067 = vmatprep.subr.mxu0 0.0
        %2068 = vmatpush1.msra.mxu0 0.0
        %2069 = vmatprep.subr.mxu0 0.0
        %2070 = vmatpush1.msra.mxu0 0.0
        %2071 = vmatprep.subr.mxu0 0.0
        %2072 = vmatpush1.msra.mxu0 0.0
        %2073 = vmatprep.subr.mxu0 0.0
        %v2074 = vand.u32 %v1711, 4294901760
        %v2075 = vsub.f32 %v1711, %v2074
        %v2076 = vand.u32 %v2075, 4294901760
        %2077 = vmatpush1.msra.mxu0 %v2076
        %2078 = vmatprep.subr.mxu0 0.0
        %v2079 = vand.u32 %v1710, 4294901760
        %v2080 = vsub.f32 %v1710, %v2079
        %v2081 = vand.u32 %v2080, 4294901760
        %2082 = vmatpush1.msra.mxu0 %v2081
        %2083 = vmatprep.subr.mxu0 0.0
        %v2084 = vand.u32 %v1709, 4294901760
        %v2085 = vsub.f32 %v1709, %v2084
        %v2086 = vand.u32 %v2085, 4294901760
        %2087 = vmatpush1.msra.mxu0 %v2086
        %2088 = vmatprep.subr.mxu0 0.0
        %v2089 = vand.u32 %v1708, 4294901760
        %v2090 = vsub.f32 %v1708, %v2089
        %v2091 = vand.u32 %v2090, 4294901760
        %2092 = vmatpush1.msra.mxu0 %v2091
        %2093 = vmatprep.subr.mxu0 0.0
        %2094 = vmatpush2.msra.mxu0 0.0
        %2095 = vmatprep.subr.mxu0 0.0
        %2096 = vmatpush2.msra.mxu0 0.0
        %2097 = vmatprep.subr.mxu0 0.0
        %2098 = vmatpush2.msra.mxu0 0.0
        %2099 = vmatprep.subr.mxu0 0.0
        %2100 = vmatpush2.msra.mxu0 0.0
        %2101 = vmatprep.subr.mxu0 0.0
        %2102 = vmatpush2.msra.mxu0 0.0
        %2103 = vmatprep.subr.mxu0 0.0
        %2104 = vmatpush2.msra.mxu0 0.0
        %2105 = vmatprep.subr.mxu0 0.0
        %2106 = vmatpush2.msra.mxu0 0.0
        %2107 = vmatprep.subr.mxu0 0.0
        %2108 = vmatpush2.msra.mxu0 0.0
        %2109 = vmatprep.subr.mxu0 0.0
        %2110 = vmatpush2.msra.mxu0 0.0
        %2111 = vmatprep.subr.mxu0 0.0
        %2112 = vmatpush2.msra.mxu0 0.0
        %2113 = vmatprep.subr.mxu0 0.0
        %2114 = vmatpush2.msra.mxu0 0.0
        %2115 = vmatprep.subr.mxu0 0.0
        %2116 = vmatpush2.msra.mxu0 0.0
        %2117 = vmatprep.subr.mxu0 0.0
        %2118 = vmatpush2.msra.mxu0 0.0
        %2119 = vmatprep.subr.mxu0 0.0
        %2120 = vmatpush2.msra.mxu0 0.0
        %2121 = vmatprep.subr.mxu0 0.0
        %2122 = vmatpush2.msra.mxu0 0.0
        %2123 = vmatprep.subr.mxu0 0.0
        %2124 = vmatpush2.msra.mxu0 0.0
        %2125 = vmatprep.mubr.f32.mxu0 0.0
        %v2126 = vand.u32 %v1720, 4294901760
        %2127 = vmatmul.mubr.f32.gmra.mxu0 %v2126
        %v2128 = vpop.f32.mrf.mxu0
        %v2129 = vadd.f32 %v2046, %v2128
        %v2130 = vpop.f32.mrf.mxu0
        %2131 = vdwg.mxu0
        %2132 = vmatprep.subr.mxu0 0.0
        %2133 = vmatpush1.msra.mxu0 0.0
        %2134 = vmatprep.subr.mxu0 0.0
        %2135 = vmatpush1.msra.mxu0 0.0
        %2136 = vmatprep.subr.mxu0 0.0
        %2137 = vmatpush1.msra.mxu0 0.0
        %2138 = vmatprep.subr.mxu0 0.0
        %2139 = vmatpush1.msra.mxu0 0.0
        %2140 = vmatprep.subr.mxu0 0.0
        %2141 = vmatpush1.msra.mxu0 0.0
        %2142 = vmatprep.subr.mxu0 0.0
        %2143 = vmatpush1.msra.mxu0 0.0
        %2144 = vmatprep.subr.mxu0 0.0
        %2145 = vmatpush1.msra.mxu0 0.0
        %2146 = vmatprep.subr.mxu0 0.0
        %2147 = vmatpush1.msra.mxu0 0.0
        %2148 = vmatprep.subr.mxu0 0.0
        %2149 = vmatpush1.msra.mxu0 0.0
        %2150 = vmatprep.subr.mxu0 0.0
        %2151 = vmatpush1.msra.mxu0 0.0
        %2152 = vmatprep.subr.mxu0 0.0
        %2153 = vmatpush1.msra.mxu0 0.0
        %2154 = vmatprep.subr.mxu0 0.0
        %2155 = vmatpush1.msra.mxu0 0.0
        %2156 = vmatprep.subr.mxu0 0.0
        %v2157 = vand.u32 %v1711, 4294901760
        %2158 = vmatpush1.msra.mxu0 %v2157
        %2159 = vmatprep.subr.mxu0 0.0
        %v2160 = vand.u32 %v1710, 4294901760
        %2161 = vmatpush1.msra.mxu0 %v2160
        %2162 = vmatprep.subr.mxu0 0.0
        %v2163 = vand.u32 %v1709, 4294901760
        %2164 = vmatpush1.msra.mxu0 %v2163
        %2165 = vmatprep.subr.mxu0 0.0
        %v2166 = vand.u32 %v1708, 4294901760
        %2167 = vmatpush1.msra.mxu0 %v2166
        %2168 = vmatprep.subr.mxu0 0.0
        %2169 = vmatpush2.msra.mxu0 0.0
        %2170 = vmatprep.subr.mxu0 0.0
        %2171 = vmatpush2.msra.mxu0 0.0
        %2172 = vmatprep.subr.mxu0 0.0
        %2173 = vmatpush2.msra.mxu0 0.0
        %2174 = vmatprep.subr.mxu0 0.0
        %2175 = vmatpush2.msra.mxu0 0.0
        %2176 = vmatprep.subr.mxu0 0.0
        %2177 = vmatpush2.msra.mxu0 0.0
        %2178 = vmatprep.subr.mxu0 0.0
        %2179 = vmatpush2.msra.mxu0 0.0
        %2180 = vmatprep.subr.mxu0 0.0
        %2181 = vmatpush2.msra.mxu0 0.0
        %2182 = vmatprep.subr.mxu0 0.0
        %2183 = vmatpush2.msra.mxu0 0.0
        %2184 = vmatprep.subr.mxu0 0.0
        %2185 = vmatpush2.msra.mxu0 0.0
        %2186 = vmatprep.subr.mxu0 0.0
        %2187 = vmatpush2.msra.mxu0 0.0
        %2188 = vmatprep.subr.mxu0 0.0
        %2189 = vmatpush2.msra.mxu0 0.0
        %2190 = vmatprep.subr.mxu0 0.0
        %2191 = vmatpush2.msra.mxu0 0.0
        %2192 = vmatprep.subr.mxu0 0.0
        %2193 = vmatpush2.msra.mxu0 0.0
        %2194 = vmatprep.subr.mxu0 0.0
        %2195 = vmatpush2.msra.mxu0 0.0
        %2196 = vmatprep.subr.mxu0 0.0
        %2197 = vmatpush2.msra.mxu0 0.0
        %2198 = vmatprep.subr.mxu0 0.0
        %2199 = vmatpush2.msra.mxu0 0.0
        %2200 = vmatprep.mubr.f32.mxu0 0.0
        %v2201 = vand.u32 %v1720, 4294901760
        %2202 = vmatmul.mubr.f32.gmra.mxu0 %v2201
        %v2203 = vpop.f32.mrf.mxu0
        %v2204 = vadd.f32 %v2129, %v2203
        %v2205 = vpop.f32.mrf.mxu0
        %2206 = vdwg.mxu0
        %vm2207 = vcmask 64512
        %v2209 = vsel %vm2207, %v1087, 0
        %2211 = vmatprep.subr.mxu0 0.0
        %2212 = vmatpush1.msra.mxu0 0.0
        %2213 = vmatprep.subr.mxu0 0.0
        %2214 = vmatpush1.msra.mxu0 0.0
        %2215 = vmatprep.subr.mxu0 0.0
        %2216 = vmatpush1.msra.mxu0 0.0
        %2217 = vmatprep.subr.mxu0 0.0
        %2218 = vmatpush1.msra.mxu0 0.0
        %2219 = vmatprep.subr.mxu0 0.0
        %2220 = vmatpush1.msra.mxu0 0.0
        %2221 = vmatprep.subr.mxu0 0.0
        %2222 = vmatpush1.msra.mxu0 0.0
        %2223 = vmatprep.subr.mxu0 0.0
        %2224 = vmatpush1.msra.mxu0 0.0
        %2225 = vmatprep.subr.mxu0 0.0
        %2226 = vmatpush1.msra.mxu0 0.0
        %2227 = vmatprep.subr.mxu0 0.0
        %2228 = vmatpush1.msra.mxu0 0.0
        %2229 = vmatprep.subr.mxu0 0.0
        %2230 = vmatpush1.msra.mxu0 0.0
        %2231 = vmatprep.subr.mxu0 0.0
        %2232 = vmatpush1.msra.mxu0 0.0
        %2233 = vmatprep.subr.mxu0 0.0
        %2234 = vmatpush1.msra.mxu0 0.0
        %2235 = vmatprep.subr.mxu0 0.0
        %2236 = vmatpush1.msra.mxu0 0.0
        %2237 = vmatprep.subr.mxu0 0.0
        %2238 = vmatpush1.msra.mxu0 0.0
        %2239 = vmatprep.subr.mxu0 0.0
        %2240 = vmatpush1.msra.mxu0 0.0
        %2241 = vmatprep.subr.mxu0 0.0
        %v2242 = vand.u32 %v1686, 4294901760
        %2243 = vmatpush1.msra.mxu0 %v2242
        %2244 = vmatprep.subr.mxu0 0.0
        %2245 = vmatpush2.msra.mxu0 0.0
        %2246 = vmatprep.subr.mxu0 0.0
        %2247 = vmatpush2.msra.mxu0 0.0
        %2248 = vmatprep.subr.mxu0 0.0
        %2249 = vmatpush2.msra.mxu0 0.0
        %2250 = vmatprep.subr.mxu0 0.0
        %2251 = vmatpush2.msra.mxu0 0.0
        %2252 = vmatprep.subr.mxu0 0.0
        %2253 = vmatpush2.msra.mxu0 0.0
        %2254 = vmatprep.subr.mxu0 0.0
        %2255 = vmatpush2.msra.mxu0 0.0
        %2256 = vmatprep.subr.mxu0 0.0
        %2257 = vmatpush2.msra.mxu0 0.0
        %2258 = vmatprep.subr.mxu0 0.0
        %2259 = vmatpush2.msra.mxu0 0.0
        %2260 = vmatprep.subr.mxu0 0.0
        %2261 = vmatpush2.msra.mxu0 0.0
        %2262 = vmatprep.subr.mxu0 0.0
        %2263 = vmatpush2.msra.mxu0 0.0
        %2264 = vmatprep.subr.mxu0 0.0
        %2265 = vmatpush2.msra.mxu0 0.0
        %2266 = vmatprep.subr.mxu0 0.0
        %2267 = vmatpush2.msra.mxu0 0.0
        %2268 = vmatprep.subr.mxu0 0.0
        %2269 = vmatpush2.msra.mxu0 0.0
        %2270 = vmatprep.subr.mxu0 0.0
        %2271 = vmatpush2.msra.mxu0 0.0
        %2272 = vmatprep.subr.mxu0 0.0
        %2273 = vmatpush2.msra.mxu0 0.0
        %2274 = vmatprep.subr.mxu0 0.0
        %2275 = vmatpush2.msra.mxu0 0.0
        %2276 = vmatprep.mubr.f32.mxu0 0.0
        %v2277 = vand.u32 %v2209, 4294901760
        %v2278 = vsub.f32 %v2209, %v2277
        %v2279 = vand.u32 %v2278, 4294901760
        %v2280 = vsub.f32 %v2278, %v2279
        %v2281 = vand.u32 %v2280, 4294901760
        %2282 = vmatmul.mubr.f32.gmra.mxu0 %v2281
        %v2283 = vpop.f32.mrf.mxu0
        %v2284 = vadd.f32 0.0, %v2283
        %v2285 = vpop.f32.mrf.mxu0
        %2286 = vdwg.mxu0
        %2287 = vmatprep.subr.mxu0 0.0
        %2288 = vmatpush1.msra.mxu0 0.0
        %2289 = vmatprep.subr.mxu0 0.0
        %2290 = vmatpush1.msra.mxu0 0.0
        %2291 = vmatprep.subr.mxu0 0.0
        %2292 = vmatpush1.msra.mxu0 0.0
        %2293 = vmatprep.subr.mxu0 0.0
        %2294 = vmatpush1.msra.mxu0 0.0
        %2295 = vmatprep.subr.mxu0 0.0
        %2296 = vmatpush1.msra.mxu0 0.0
        %2297 = vmatprep.subr.mxu0 0.0
        %2298 = vmatpush1.msra.mxu0 0.0
        %2299 = vmatprep.subr.mxu0 0.0
        %2300 = vmatpush1.msra.mxu0 0.0
        %2301 = vmatprep.subr.mxu0 0.0
        %2302 = vmatpush1.msra.mxu0 0.0
        %2303 = vmatprep.subr.mxu0 0.0
        %2304 = vmatpush1.msra.mxu0 0.0
        %2305 = vmatprep.subr.mxu0 0.0
        %2306 = vmatpush1.msra.mxu0 0.0
        %2307 = vmatprep.subr.mxu0 0.0
        %2308 = vmatpush1.msra.mxu0 0.0
        %2309 = vmatprep.subr.mxu0 0.0
        %2310 = vmatpush1.msra.mxu0 0.0
        %2311 = vmatprep.subr.mxu0 0.0
        %2312 = vmatpush1.msra.mxu0 0.0
        %2313 = vmatprep.subr.mxu0 0.0
        %2314 = vmatpush1.msra.mxu0 0.0
        %2315 = vmatprep.subr.mxu0 0.0
        %2316 = vmatpush1.msra.mxu0 0.0
        %2317 = vmatprep.subr.mxu0 0.0
        %v2318 = vand.u32 %v1686, 4294901760
        %v2319 = vsub.f32 %v1686, %v2318
        %v2320 = vand.u32 %v2319, 4294901760
        %v2321 = vsub.f32 %v2319, %v2320
        %v2322 = vand.u32 %v2321, 4294901760
        %2323 = vmatpush1.msra.mxu0 %v2322
        %2324 = vmatprep.subr.mxu0 0.0
        %2325 = vmatpush2.msra.mxu0 0.0
        %2326 = vmatprep.subr.mxu0 0.0
        %2327 = vmatpush2.msra.mxu0 0.0
        %2328 = vmatprep.subr.mxu0 0.0
        %2329 = vmatpush2.msra.mxu0 0.0
        %2330 = vmatprep.subr.mxu0 0.0
        %2331 = vmatpush2.msra.mxu0 0.0
        %2332 = vmatprep.subr.mxu0 0.0
        %2333 = vmatpush2.msra.mxu0 0.0
        %2334 = vmatprep.subr.mxu0 0.0
        %2335 = vmatpush2.msra.mxu0 0.0
        %2336 = vmatprep.subr.mxu0 0.0
        %2337 = vmatpush2.msra.mxu0 0.0
        %2338 = vmatprep.subr.mxu0 0.0
        %2339 = vmatpush2.msra.mxu0 0.0
        %2340 = vmatprep.subr.mxu0 0.0
        %2341 = vmatpush2.msra.mxu0 0.0
        %2342 = vmatprep.subr.mxu0 0.0
        %2343 = vmatpush2.msra.mxu0 0.0
        %2344 = vmatprep.subr.mxu0 0.0
        %2345 = vmatpush2.msra.mxu0 0.0
        %2346 = vmatprep.subr.mxu0 0.0
        %2347 = vmatpush2.msra.mxu0 0.0
        %2348 = vmatprep.subr.mxu0 0.0
        %2349 = vmatpush2.msra.mxu0 0.0
        %2350 = vmatprep.subr.mxu0 0.0
        %2351 = vmatpush2.msra.mxu0 0.0
        %2352 = vmatprep.subr.mxu0 0.0
        %2353 = vmatpush2.msra.mxu0 0.0
        %2354 = vmatprep.subr.mxu0 0.0
        %2355 = vmatpush2.msra.mxu0 0.0
        %2356 = vmatprep.mubr.f32.mxu0 0.0
        %v2357 = vand.u32 %v2209, 4294901760
        %2358 = vmatmul.mubr.f32.gmra.mxu0 %v2357
        %v2359 = vpop.f32.mrf.mxu0
        %v2360 = vadd.f32 %v2284, %v2359
        %v2361 = vpop.f32.mrf.mxu0
        %2362 = vdwg.mxu0
        %2363 = vmatprep.subr.mxu0 0.0
        %2364 = vmatpush1.msra.mxu0 0.0
        %2365 = vmatprep.subr.mxu0 0.0
        %2366 = vmatpush1.msra.mxu0 0.0
        %2367 = vmatprep.subr.mxu0 0.0
        %2368 = vmatpush1.msra.mxu0 0.0
        %2369 = vmatprep.subr.mxu0 0.0
        %2370 = vmatpush1.msra.mxu0 0.0
        %2371 = vmatprep.subr.mxu0 0.0
        %2372 = vmatpush1.msra.mxu0 0.0
        %2373 = vmatprep.subr.mxu0 0.0
        %2374 = vmatpush1.msra.mxu0 0.0
        %2375 = vmatprep.subr.mxu0 0.0
        %2376 = vmatpush1.msra.mxu0 0.0
        %2377 = vmatprep.subr.mxu0 0.0
        %2378 = vmatpush1.msra.mxu0 0.0
        %2379 = vmatprep.subr.mxu0 0.0
        %2380 = vmatpush1.msra.mxu0 0.0
        %2381 = vmatprep.subr.mxu0 0.0
        %2382 = vmatpush1.msra.mxu0 0.0
        %2383 = vmatprep.subr.mxu0 0.0
        %2384 = vmatpush1.msra.mxu0 0.0
        %2385 = vmatprep.subr.mxu0 0.0
        %2386 = vmatpush1.msra.mxu0 0.0
        %2387 = vmatprep.subr.mxu0 0.0
        %2388 = vmatpush1.msra.mxu0 0.0
        %2389 = vmatprep.subr.mxu0 0.0
        %2390 = vmatpush1.msra.mxu0 0.0
        %2391 = vmatprep.subr.mxu0 0.0
        %2392 = vmatpush1.msra.mxu0 0.0
        %2393 = vmatprep.subr.mxu0 0.0
        %v2394 = vand.u32 %v1686, 4294901760
        %v2395 = vsub.f32 %v1686, %v2394
        %2396 = vmatpush1.msra.mxu0 %v2395
        %2397 = vmatprep.subr.mxu0 0.0
        %2398 = vmatpush2.msra.mxu0 0.0
        %2399 = vmatprep.subr.mxu0 0.0
        %2400 = vmatpush2.msra.mxu0 0.0
        %2401 = vmatprep.subr.mxu0 0.0
        %2402 = vmatpush2.msra.mxu0 0.0
        %2403 = vmatprep.subr.mxu0 0.0
        %2404 = vmatpush2.msra.mxu0 0.0
        %2405 = vmatprep.subr.mxu0 0.0
        %2406 = vmatpush2.msra.mxu0 0.0
        %2407 = vmatprep.subr.mxu0 0.0
        %2408 = vmatpush2.msra.mxu0 0.0
        %2409 = vmatprep.subr.mxu0 0.0
        %2410 = vmatpush2.msra.mxu0 0.0
        %2411 = vmatprep.subr.mxu0 0.0
        %2412 = vmatpush2.msra.mxu0 0.0
        %2413 = vmatprep.subr.mxu0 0.0
        %2414 = vmatpush2.msra.mxu0 0.0
        %2415 = vmatprep.subr.mxu0 0.0
        %2416 = vmatpush2.msra.mxu0 0.0
        %2417 = vmatprep.subr.mxu0 0.0
        %2418 = vmatpush2.msra.mxu0 0.0
        %2419 = vmatprep.subr.mxu0 0.0
        %2420 = vmatpush2.msra.mxu0 0.0
        %2421 = vmatprep.subr.mxu0 0.0
        %2422 = vmatpush2.msra.mxu0 0.0
        %2423 = vmatprep.subr.mxu0 0.0
        %2424 = vmatpush2.msra.mxu0 0.0
        %2425 = vmatprep.subr.mxu0 0.0
        %2426 = vmatpush2.msra.mxu0 0.0
        %2427 = vmatprep.subr.mxu0 0.0
        %2428 = vmatpush2.msra.mxu0 0.0
        %2429 = vmatprep.mubr.f32.mxu0 0.0
        %v2430 = vand.u32 %v2209, 4294901760
        %v2431 = vsub.f32 %v2209, %v2430
        %2432 = vmatmul.mubr.f32.gmra.mxu0 %v2431
        %v2433 = vpop.f32.mrf.mxu0
        %v2434 = vadd.f32 %v2360, %v2433
        %v2435 = vpop.f32.mrf.mxu0
        %2436 = vdwg.mxu0
        %2437 = vmatprep.subr.mxu0 0.0
        %2438 = vmatpush1.msra.mxu0 0.0
        %2439 = vmatprep.subr.mxu0 0.0
        %2440 = vmatpush1.msra.mxu0 0.0
        %2441 = vmatprep.subr.mxu0 0.0
        %2442 = vmatpush1.msra.mxu0 0.0
        %2443 = vmatprep.subr.mxu0 0.0
        %2444 = vmatpush1.msra.mxu0 0.0
        %2445 = vmatprep.subr.mxu0 0.0
        %2446 = vmatpush1.msra.mxu0 0.0
        %2447 = vmatprep.subr.mxu0 0.0
        %2448 = vmatpush1.msra.mxu0 0.0
        %2449 = vmatprep.subr.mxu0 0.0
        %2450 = vmatpush1.msra.mxu0 0.0
        %2451 = vmatprep.subr.mxu0 0.0
        %2452 = vmatpush1.msra.mxu0 0.0
        %2453 = vmatprep.subr.mxu0 0.0
        %2454 = vmatpush1.msra.mxu0 0.0
        %2455 = vmatprep.subr.mxu0 0.0
        %2456 = vmatpush1.msra.mxu0 0.0
        %2457 = vmatprep.subr.mxu0 0.0
        %2458 = vmatpush1.msra.mxu0 0.0
        %2459 = vmatprep.subr.mxu0 0.0
        %2460 = vmatpush1.msra.mxu0 0.0
        %2461 = vmatprep.subr.mxu0 0.0
        %2462 = vmatpush1.msra.mxu0 0.0
        %2463 = vmatprep.subr.mxu0 0.0
        %2464 = vmatpush1.msra.mxu0 0.0
        %2465 = vmatprep.subr.mxu0 0.0
        %2466 = vmatpush1.msra.mxu0 0.0
        %2467 = vmatprep.subr.mxu0 0.0
        %v2468 = vand.u32 %v1686, 4294901760
        %2469 = vmatpush1.msra.mxu0 %v2468
        %2470 = vmatprep.subr.mxu0 0.0
        %2471 = vmatpush2.msra.mxu0 0.0
        %2472 = vmatprep.subr.mxu0 0.0
        %2473 = vmatpush2.msra.mxu0 0.0
        %2474 = vmatprep.subr.mxu0 0.0
        %2475 = vmatpush2.msra.mxu0 0.0
        %2476 = vmatprep.subr.mxu0 0.0
        %2477 = vmatpush2.msra.mxu0 0.0
        %2478 = vmatprep.subr.mxu0 0.0
        %2479 = vmatpush2.msra.mxu0 0.0
        %2480 = vmatprep.subr.mxu0 0.0
        %2481 = vmatpush2.msra.mxu0 0.0
        %2482 = vmatprep.subr.mxu0 0.0
        %2483 = vmatpush2.msra.mxu0 0.0
        %2484 = vmatprep.subr.mxu0 0.0
        %2485 = vmatpush2.msra.mxu0 0.0
        %2486 = vmatprep.subr.mxu0 0.0
        %2487 = vmatpush2.msra.mxu0 0.0
        %2488 = vmatprep.subr.mxu0 0.0
        %2489 = vmatpush2.msra.mxu0 0.0
        %2490 = vmatprep.subr.mxu0 0.0
        %2491 = vmatpush2.msra.mxu0 0.0
        %2492 = vmatprep.subr.mxu0 0.0
        %2493 = vmatpush2.msra.mxu0 0.0
        %2494 = vmatprep.subr.mxu0 0.0
        %2495 = vmatpush2.msra.mxu0 0.0
        %2496 = vmatprep.subr.mxu0 0.0
        %2497 = vmatpush2.msra.mxu0 0.0
        %2498 = vmatprep.subr.mxu0 0.0
        %2499 = vmatpush2.msra.mxu0 0.0
        %2500 = vmatprep.subr.mxu0 0.0
        %2501 = vmatpush2.msra.mxu0 0.0
        %2502 = vmatprep.mubr.f32.mxu0 0.0
        %v2503 = vand.u32 %v2209, 4294901760
        %v2504 = vsub.f32 %v2209, %v2503
        %v2505 = vand.u32 %v2504, 4294901760
        %2506 = vmatmul.mubr.f32.gmra.mxu0 %v2505
        %v2507 = vpop.f32.mrf.mxu0
        %v2508 = vadd.f32 %v2434, %v2507
        %v2509 = vpop.f32.mrf.mxu0
        %2510 = vdwg.mxu0
        %2511 = vmatprep.subr.mxu0 0.0
        %2512 = vmatpush1.msra.mxu0 0.0
        %2513 = vmatprep.subr.mxu0 0.0
        %2514 = vmatpush1.msra.mxu0 0.0
        %2515 = vmatprep.subr.mxu0 0.0
        %2516 = vmatpush1.msra.mxu0 0.0
        %2517 = vmatprep.subr.mxu0 0.0
        %2518 = vmatpush1.msra.mxu0 0.0
        %2519 = vmatprep.subr.mxu0 0.0
        %2520 = vmatpush1.msra.mxu0 0.0
        %2521 = vmatprep.subr.mxu0 0.0
        %2522 = vmatpush1.msra.mxu0 0.0
        %2523 = vmatprep.subr.mxu0 0.0
        %2524 = vmatpush1.msra.mxu0 0.0
        %2525 = vmatprep.subr.mxu0 0.0
        %2526 = vmatpush1.msra.mxu0 0.0
        %2527 = vmatprep.subr.mxu0 0.0
        %2528 = vmatpush1.msra.mxu0 0.0
        %2529 = vmatprep.subr.mxu0 0.0
        %2530 = vmatpush1.msra.mxu0 0.0
        %2531 = vmatprep.subr.mxu0 0.0
        %2532 = vmatpush1.msra.mxu0 0.0
        %2533 = vmatprep.subr.mxu0 0.0
        %2534 = vmatpush1.msra.mxu0 0.0
        %2535 = vmatprep.subr.mxu0 0.0
        %2536 = vmatpush1.msra.mxu0 0.0
        %2537 = vmatprep.subr.mxu0 0.0
        %2538 = vmatpush1.msra.mxu0 0.0
        %2539 = vmatprep.subr.mxu0 0.0
        %2540 = vmatpush1.msra.mxu0 0.0
        %2541 = vmatprep.subr.mxu0 0.0
        %v2542 = vand.u32 %v1686, 4294901760
        %v2543 = vsub.f32 %v1686, %v2542
        %v2544 = vand.u32 %v2543, 4294901760
        %2545 = vmatpush1.msra.mxu0 %v2544
        %2546 = vmatprep.subr.mxu0 0.0
        %2547 = vmatpush2.msra.mxu0 0.0
        %2548 = vmatprep.subr.mxu0 0.0
        %2549 = vmatpush2.msra.mxu0 0.0
        %2550 = vmatprep.subr.mxu0 0.0
        %2551 = vmatpush2.msra.mxu0 0.0
        %2552 = vmatprep.subr.mxu0 0.0
        %2553 = vmatpush2.msra.mxu0 0.0
        %2554 = vmatprep.subr.mxu0 0.0
        %2555 = vmatpush2.msra.mxu0 0.0
        %2556 = vmatprep.subr.mxu0 0.0
        %2557 = vmatpush2.msra.mxu0 0.0
        %2558 = vmatprep.subr.mxu0 0.0
        %2559 = vmatpush2.msra.mxu0 0.0
        %2560 = vmatprep.subr.mxu0 0.0
        %2561 = vmatpush2.msra.mxu0 0.0
        %2562 = vmatprep.subr.mxu0 0.0
        %2563 = vmatpush2.msra.mxu0 0.0
        %2564 = vmatprep.subr.mxu0 0.0
        %2565 = vmatpush2.msra.mxu0 0.0
        %2566 = vmatprep.subr.mxu0 0.0
        %2567 = vmatpush2.msra.mxu0 0.0
        %2568 = vmatprep.subr.mxu0 0.0
        %2569 = vmatpush2.msra.mxu0 0.0
        %2570 = vmatprep.subr.mxu0 0.0
        %2571 = vmatpush2.msra.mxu0 0.0
        %2572 = vmatprep.subr.mxu0 0.0
        %2573 = vmatpush2.msra.mxu0 0.0
        %2574 = vmatprep.subr.mxu0 0.0
        %2575 = vmatpush2.msra.mxu0 0.0
        %2576 = vmatprep.subr.mxu0 0.0
        %2577 = vmatpush2.msra.mxu0 0.0
        %2578 = vmatprep.mubr.f32.mxu0 0.0
        %v2579 = vand.u32 %v2209, 4294901760
        %2580 = vmatmul.mubr.f32.gmra.mxu0 %v2579
        %v2581 = vpop.f32.mrf.mxu0
        %v2582 = vadd.f32 %v2508, %v2581
        %v2583 = vpop.f32.mrf.mxu0
        %2584 = vdwg.mxu0
        %2585 = vmatprep.subr.mxu0 0.0
        %2586 = vmatpush1.msra.mxu0 0.0
        %2587 = vmatprep.subr.mxu0 0.0
        %2588 = vmatpush1.msra.mxu0 0.0
        %2589 = vmatprep.subr.mxu0 0.0
        %2590 = vmatpush1.msra.mxu0 0.0
        %2591 = vmatprep.subr.mxu0 0.0
        %2592 = vmatpush1.msra.mxu0 0.0
        %2593 = vmatprep.subr.mxu0 0.0
        %2594 = vmatpush1.msra.mxu0 0.0
        %2595 = vmatprep.subr.mxu0 0.0
        %2596 = vmatpush1.msra.mxu0 0.0
        %2597 = vmatprep.subr.mxu0 0.0
        %2598 = vmatpush1.msra.mxu0 0.0
        %2599 = vmatprep.subr.mxu0 0.0
        %2600 = vmatpush1.msra.mxu0 0.0
        %2601 = vmatprep.subr.mxu0 0.0
        %2602 = vmatpush1.msra.mxu0 0.0
        %2603 = vmatprep.subr.mxu0 0.0
        %2604 = vmatpush1.msra.mxu0 0.0
        %2605 = vmatprep.subr.mxu0 0.0
        %2606 = vmatpush1.msra.mxu0 0.0
        %2607 = vmatprep.subr.mxu0 0.0
        %2608 = vmatpush1.msra.mxu0 0.0
        %2609 = vmatprep.subr.mxu0 0.0
        %2610 = vmatpush1.msra.mxu0 0.0
        %2611 = vmatprep.subr.mxu0 0.0
        %2612 = vmatpush1.msra.mxu0 0.0
        %2613 = vmatprep.subr.mxu0 0.0
        %2614 = vmatpush1.msra.mxu0 0.0
        %2615 = vmatprep.subr.mxu0 0.0
        %v2616 = vand.u32 %v1686, 4294901760
        %2617 = vmatpush1.msra.mxu0 %v2616
        %2618 = vmatprep.subr.mxu0 0.0
        %2619 = vmatpush2.msra.mxu0 0.0
        %2620 = vmatprep.subr.mxu0 0.0
        %2621 = vmatpush2.msra.mxu0 0.0
        %2622 = vmatprep.subr.mxu0 0.0
        %2623 = vmatpush2.msra.mxu0 0.0
        %2624 = vmatprep.subr.mxu0 0.0
        %2625 = vmatpush2.msra.mxu0 0.0
        %2626 = vmatprep.subr.mxu0 0.0
        %2627 = vmatpush2.msra.mxu0 0.0
        %2628 = vmatprep.subr.mxu0 0.0
        %2629 = vmatpush2.msra.mxu0 0.0
        %2630 = vmatprep.subr.mxu0 0.0
        %2631 = vmatpush2.msra.mxu0 0.0
        %2632 = vmatprep.subr.mxu0 0.0
        %2633 = vmatpush2.msra.mxu0 0.0
        %2634 = vmatprep.subr.mxu0 0.0
        %2635 = vmatpush2.msra.mxu0 0.0
        %2636 = vmatprep.subr.mxu0 0.0
        %2637 = vmatpush2.msra.mxu0 0.0
        %2638 = vmatprep.subr.mxu0 0.0
        %2639 = vmatpush2.msra.mxu0 0.0
        %2640 = vmatprep.subr.mxu0 0.0
        %2641 = vmatpush2.msra.mxu0 0.0
        %2642 = vmatprep.subr.mxu0 0.0
        %2643 = vmatpush2.msra.mxu0 0.0
        %2644 = vmatprep.subr.mxu0 0.0
        %2645 = vmatpush2.msra.mxu0 0.0
        %2646 = vmatprep.subr.mxu0 0.0
        %2647 = vmatpush2.msra.mxu0 0.0
        %2648 = vmatprep.subr.mxu0 0.0
        %2649 = vmatpush2.msra.mxu0 0.0
        %2650 = vmatprep.mubr.f32.mxu0 0.0
        %v2651 = vand.u32 %v2209, 4294901760
        %2652 = vmatmul.mubr.f32.gmra.mxu0 %v2651
        %v2653 = vpop.f32.mrf.mxu0
        %v2654 = vadd.f32 %v2582, %v2653
        %v2655 = vpop.f32.mrf.mxu0
        %2656 = vdwg.mxu0
        %v2657 = vsel %vm2207, %v2654, -inf
        %2658 = vmax.xlane.f32.xlu0 %v2657
        %v2659 = vpop.xlane.xlu0 %2658
        %v2660 = vsub.f32 %v2654, %v2659
        %v2661 = vmul.f32 %v2660, 1.442695
        %v2662 = vpow.pop %v2661
        %v2663 = vsel %vm2207, %v2662, 0.0
        %2664 = vadd.xlane.f32.xlu0 %v2663
        %v2665 = vpop.xlane.xlu0 %2664
        %v2666 = vrcp.pop %v2665
        %v2667 = vmul.f32 %v2662, %v2666
        %2668 = vst.msk [vmem:[%s567] sm:$0xff] %vm2207, %v2667
        %v2670 = vsel %vm2207, %v2667, 0
        %2672 = vmatprep.subr.mxu0 0.0
        %2673 = vmatpush1.msra.mxu0 0.0
        %2674 = vmatprep.subr.mxu0 0.0
        %2675 = vmatpush1.msra.mxu0 0.0
        %2676 = vmatprep.subr.mxu0 0.0
        %2677 = vmatpush1.msra.mxu0 0.0
        %2678 = vmatprep.subr.mxu0 0.0
        %2679 = vmatpush1.msra.mxu0 0.0
        %2680 = vmatprep.subr.mxu0 0.0
        %2681 = vmatpush1.msra.mxu0 0.0
        %2682 = vmatprep.subr.mxu0 0.0
        %2683 = vmatpush1.msra.mxu0 0.0
        %2684 = vmatprep.subr.mxu0 0.0
        %2685 = vmatpush1.msra.mxu0 0.0
        %2686 = vmatprep.subr.mxu0 0.0
        %2687 = vmatpush1.msra.mxu0 0.0
        %2688 = vmatprep.subr.mxu0 0.0
        %2689 = vmatpush1.msra.mxu0 0.0
        %2690 = vmatprep.subr.mxu0 0.0
        %2691 = vmatpush1.msra.mxu0 0.0
        %2692 = vmatprep.subr.mxu0 0.0
        %2693 = vmatpush1.msra.mxu0 0.0
        %2694 = vmatprep.subr.mxu0 0.0
        %2695 = vmatpush1.msra.mxu0 0.0
        %2696 = vmatprep.subr.mxu0 0.0
        %2697 = vmatpush1.msra.mxu0 0.0
        %2698 = vmatprep.subr.mxu0 0.0
        %2699 = vmatpush1.msra.mxu0 0.0
        %2700 = vmatprep.subr.mxu0 0.0
        %2701 = vmatpush1.msra.mxu0 0.0
        %2702 = vmatprep.subr.mxu0 0.0
        %v2703 = vand.u32 %v2204, 4294901760
        %2704 = vmatpush1.msra.mxu0 %v2703
        %2705 = vmatprep.subr.mxu0 0.0
        %2706 = vmatpush2.msra.mxu0 0.0
        %2707 = vmatprep.subr.mxu0 0.0
        %2708 = vmatpush2.msra.mxu0 0.0
        %2709 = vmatprep.subr.mxu0 0.0
        %2710 = vmatpush2.msra.mxu0 0.0
        %2711 = vmatprep.subr.mxu0 0.0
        %2712 = vmatpush2.msra.mxu0 0.0
        %2713 = vmatprep.subr.mxu0 0.0
        %2714 = vmatpush2.msra.mxu0 0.0
        %2715 = vmatprep.subr.mxu0 0.0
        %2716 = vmatpush2.msra.mxu0 0.0
        %2717 = vmatprep.subr.mxu0 0.0
        %2718 = vmatpush2.msra.mxu0 0.0
        %2719 = vmatprep.subr.mxu0 0.0
        %2720 = vmatpush2.msra.mxu0 0.0
        %2721 = vmatprep.subr.mxu0 0.0
        %2722 = vmatpush2.msra.mxu0 0.0
        %2723 = vmatprep.subr.mxu0 0.0
        %2724 = vmatpush2.msra.mxu0 0.0
        %2725 = vmatprep.subr.mxu0 0.0
        %2726 = vmatpush2.msra.mxu0 0.0
        %2727 = vmatprep.subr.mxu0 0.0
        %2728 = vmatpush2.msra.mxu0 0.0
        %2729 = vmatprep.subr.mxu0 0.0
        %2730 = vmatpush2.msra.mxu0 0.0
        %2731 = vmatprep.subr.mxu0 0.0
        %2732 = vmatpush2.msra.mxu0 0.0
        %2733 = vmatprep.subr.mxu0 0.0
        %2734 = vmatpush2.msra.mxu0 0.0
        %2735 = vmatprep.subr.mxu0 0.0
        %2736 = vmatpush2.msra.mxu0 0.0
        %2737 = vmatprep.mubr.f32.mxu0 0.0
        %v2738 = vand.u32 %v2670, 4294901760
        %v2739 = vsub.f32 %v2670, %v2738
        %v2740 = vand.u32 %v2739, 4294901760
        %v2741 = vsub.f32 %v2739, %v2740
        %v2742 = vand.u32 %v2741, 4294901760
        %2743 = vmatmul.mubr.f32.gmra.mxu0 %v2742
        %v2744 = vpop.f32.mrf.mxu0
        %v2745 = vadd.f32 0.0, %v2744
        %v2746 = vpop.f32.mrf.mxu0
        %2747 = vdwg.mxu0
        %2748 = vmatprep.subr.mxu0 0.0
        %2749 = vmatpush1.msra.mxu0 0.0
        %2750 = vmatprep.subr.mxu0 0.0
        %2751 = vmatpush1.msra.mxu0 0.0
        %2752 = vmatprep.subr.mxu0 0.0
        %2753 = vmatpush1.msra.mxu0 0.0
        %2754 = vmatprep.subr.mxu0 0.0
        %2755 = vmatpush1.msra.mxu0 0.0
        %2756 = vmatprep.subr.mxu0 0.0
        %2757 = vmatpush1.msra.mxu0 0.0
        %2758 = vmatprep.subr.mxu0 0.0
        %2759 = vmatpush1.msra.mxu0 0.0
        %2760 = vmatprep.subr.mxu0 0.0
        %2761 = vmatpush1.msra.mxu0 0.0
        %2762 = vmatprep.subr.mxu0 0.0
        %2763 = vmatpush1.msra.mxu0 0.0
        %2764 = vmatprep.subr.mxu0 0.0
        %2765 = vmatpush1.msra.mxu0 0.0
        %2766 = vmatprep.subr.mxu0 0.0
        %2767 = vmatpush1.msra.mxu0 0.0
        %2768 = vmatprep.subr.mxu0 0.0
        %2769 = vmatpush1.msra.mxu0 0.0
        %2770 = vmatprep.subr.mxu0 0.0
        %2771 = vmatpush1.msra.mxu0 0.0
        %2772 = vmatprep.subr.mxu0 0.0
        %2773 = vmatpush1.msra.mxu0 0.0
        %2774 = vmatprep.subr.mxu0 0.0
        %2775 = vmatpush1.msra.mxu0 0.0
        %2776 = vmatprep.subr.mxu0 0.0
        %2777 = vmatpush1.msra.mxu0 0.0
        %2778 = vmatprep.subr.mxu0 0.0
        %v2779 = vand.u32 %v2204, 4294901760
        %v2780 = vsub.f32 %v2204, %v2779
        %v2781 = vand.u32 %v2780, 4294901760
        %v2782 = vsub.f32 %v2780, %v2781
        %v2783 = vand.u32 %v2782, 4294901760
        %2784 = vmatpush1.msra.mxu0 %v2783
        %2785 = vmatprep.subr.mxu0 0.0
        %2786 = vmatpush2.msra.mxu0 0.0
        %2787 = vmatprep.subr.mxu0 0.0
        %2788 = vmatpush2.msra.mxu0 0.0
        %2789 = vmatprep.subr.mxu0 0.0
        %2790 = vmatpush2.msra.mxu0 0.0
        %2791 = vmatprep.subr.mxu0 0.0
        %2792 = vmatpush2.msra.mxu0 0.0
        %2793 = vmatprep.subr.mxu0 0.0
        %2794 = vmatpush2.msra.mxu0 0.0
        %2795 = vmatprep.subr.mxu0 0.0
        %2796 = vmatpush2.msra.mxu0 0.0
        %2797 = vmatprep.subr.mxu0 0.0
        %2798 = vmatpush2.msra.mxu0 0.0
        %2799 = vmatprep.subr.mxu0 0.0
        %2800 = vmatpush2.msra.mxu0 0.0
        %2801 = vmatprep.subr.mxu0 0.0
        %2802 = vmatpush2.msra.mxu0 0.0
        %2803 = vmatprep.subr.mxu0 0.0
        %2804 = vmatpush2.msra.mxu0 0.0
        %2805 = vmatprep.subr.mxu0 0.0
        %2806 = vmatpush2.msra.mxu0 0.0
        %2807 = vmatprep.subr.mxu0 0.0
        %2808 = vmatpush2.msra.mxu0 0.0
        %2809 = vmatprep.subr.mxu0 0.0
        %2810 = vmatpush2.msra.mxu0 0.0
        %2811 = vmatprep.subr.mxu0 0.0
        %2812 = vmatpush2.msra.mxu0 0.0
        %2813 = vmatprep.subr.mxu0 0.0
        %2814 = vmatpush2.msra.mxu0 0.0
        %2815 = vmatprep.subr.mxu0 0.0
        %2816 = vmatpush2.msra.mxu0 0.0
        %2817 = vmatprep.mubr.f32.mxu0 0.0
        %v2818 = vand.u32 %v2670, 4294901760
        %2819 = vmatmul.mubr.f32.gmra.mxu0 %v2818
        %v2820 = vpop.f32.mrf.mxu0
        %v2821 = vadd.f32 %v2745, %v2820
        %v2822 = vpop.f32.mrf.mxu0
        %2823 = vdwg.mxu0
        %2824 = vmatprep.subr.mxu0 0.0
        %2825 = vmatpush1.msra.mxu0 0.0
        %2826 = vmatprep.subr.mxu0 0.0
        %2827 = vmatpush1.msra.mxu0 0.0
        %2828 = vmatprep.subr.mxu0 0.0
        %2829 = vmatpush1.msra.mxu0 0.0
        %2830 = vmatprep.subr.mxu0 0.0
        %2831 = vmatpush1.msra.mxu0 0.0
        %2832 = vmatprep.subr.mxu0 0.0
        %2833 = vmatpush1.msra.mxu0 0.0
        %2834 = vmatprep.subr.mxu0 0.0
        %2835 = vmatpush1.msra.mxu0 0.0
        %2836 = vmatprep.subr.mxu0 0.0
        %2837 = vmatpush1.msra.mxu0 0.0
        %2838 = vmatprep.subr.mxu0 0.0
        %2839 = vmatpush1.msra.mxu0 0.0
        %2840 = vmatprep.subr.mxu0 0.0
        %2841 = vmatpush1.msra.mxu0 0.0
        %2842 = vmatprep.subr.mxu0 0.0
        %2843 = vmatpush1.msra.mxu0 0.0
        %2844 = vmatprep.subr.mxu0 0.0
        %2845 = vmatpush1.msra.mxu0 0.0
        %2846 = vmatprep.subr.mxu0 0.0
        %2847 = vmatpush1.msra.mxu0 0.0
        %2848 = vmatprep.subr.mxu0 0.0
        %2849 = vmatpush1.msra.mxu0 0.0
        %2850 = vmatprep.subr.mxu0 0.0
        %2851 = vmatpush1.msra.mxu0 0.0
        %2852 = vmatprep.subr.mxu0 0.0
        %2853 = vmatpush1.msra.mxu0 0.0
        %2854 = vmatprep.subr.mxu0 0.0
        %v2855 = vand.u32 %v2204, 4294901760
        %v2856 = vsub.f32 %v2204, %v2855
        %2857 = vmatpush1.msra.mxu0 %v2856
        %2858 = vmatprep.subr.mxu0 0.0
        %2859 = vmatpush2.msra.mxu0 0.0
        %2860 = vmatprep.subr.mxu0 0.0
        %2861 = vmatpush2.msra.mxu0 0.0
        %2862 = vmatprep.subr.mxu0 0.0
        %2863 = vmatpush2.msra.mxu0 0.0
        %2864 = vmatprep.subr.mxu0 0.0
        %2865 = vmatpush2.msra.mxu0 0.0
        %2866 = vmatprep.subr.mxu0 0.0
        %2867 = vmatpush2.msra.mxu0 0.0
        %2868 = vmatprep.subr.mxu0 0.0
        %2869 = vmatpush2.msra.mxu0 0.0
        %2870 = vmatprep.subr.mxu0 0.0
        %2871 = vmatpush2.msra.mxu0 0.0
        %2872 = vmatprep.subr.mxu0 0.0
        %2873 = vmatpush2.msra.mxu0 0.0
        %2874 = vmatprep.subr.mxu0 0.0
        %2875 = vmatpush2.msra.mxu0 0.0
        %2876 = vmatprep.subr.mxu0 0.0
        %2877 = vmatpush2.msra.mxu0 0.0
        %2878 = vmatprep.subr.mxu0 0.0
        %2879 = vmatpush2.msra.mxu0 0.0
        %2880 = vmatprep.subr.mxu0 0.0
        %2881 = vmatpush2.msra.mxu0 0.0
        %2882 = vmatprep.subr.mxu0 0.0
        %2883 = vmatpush2.msra.mxu0 0.0
        %2884 = vmatprep.subr.mxu0 0.0
        %2885 = vmatpush2.msra.mxu0 0.0
        %2886 = vmatprep.subr.mxu0 0.0
        %2887 = vmatpush2.msra.mxu0 0.0
        %2888 = vmatprep.subr.mxu0 0.0
        %2889 = vmatpush2.msra.mxu0 0.0
        %2890 = vmatprep.mubr.f32.mxu0 0.0
        %v2891 = vand.u32 %v2670, 4294901760
        %v2892 = vsub.f32 %v2670, %v2891
        %2893 = vmatmul.mubr.f32.gmra.mxu0 %v2892
        %v2894 = vpop.f32.mrf.mxu0
        %v2895 = vadd.f32 %v2821, %v2894
        %v2896 = vpop.f32.mrf.mxu0
        %2897 = vdwg.mxu0
        %2898 = vmatprep.subr.mxu0 0.0
        %2899 = vmatpush1.msra.mxu0 0.0
        %2900 = vmatprep.subr.mxu0 0.0
        %2901 = vmatpush1.msra.mxu0 0.0
        %2902 = vmatprep.subr.mxu0 0.0
        %2903 = vmatpush1.msra.mxu0 0.0
        %2904 = vmatprep.subr.mxu0 0.0
        %2905 = vmatpush1.msra.mxu0 0.0
        %2906 = vmatprep.subr.mxu0 0.0
        %2907 = vmatpush1.msra.mxu0 0.0
        %2908 = vmatprep.subr.mxu0 0.0
        %2909 = vmatpush1.msra.mxu0 0.0
        %2910 = vmatprep.subr.mxu0 0.0
        %2911 = vmatpush1.msra.mxu0 0.0
        %2912 = vmatprep.subr.mxu0 0.0
        %2913 = vmatpush1.msra.mxu0 0.0
        %2914 = vmatprep.subr.mxu0 0.0
        %2915 = vmatpush1.msra.mxu0 0.0
        %2916 = vmatprep.subr.mxu0 0.0
        %2917 = vmatpush1.msra.mxu0 0.0
        %2918 = vmatprep.subr.mxu0 0.0
        %2919 = vmatpush1.msra.mxu0 0.0
        %2920 = vmatprep.subr.mxu0 0.0
        %2921 = vmatpush1.msra.mxu0 0.0
        %2922 = vmatprep.subr.mxu0 0.0
        %2923 = vmatpush1.msra.mxu0 0.0
        %2924 = vmatprep.subr.mxu0 0.0
        %2925 = vmatpush1.msra.mxu0 0.0
        %2926 = vmatprep.subr.mxu0 0.0
        %2927 = vmatpush1.msra.mxu0 0.0
        %2928 = vmatprep.subr.mxu0 0.0
        %v2929 = vand.u32 %v2204, 4294901760
        %2930 = vmatpush1.msra.mxu0 %v2929
        %2931 = vmatprep.subr.mxu0 0.0
        %2932 = vmatpush2.msra.mxu0 0.0
        %2933 = vmatprep.subr.mxu0 0.0
        %2934 = vmatpush2.msra.mxu0 0.0
        %2935 = vmatprep.subr.mxu0 0.0
        %2936 = vmatpush2.msra.mxu0 0.0
        %2937 = vmatprep.subr.mxu0 0.0
        %2938 = vmatpush2.msra.mxu0 0.0
        %2939 = vmatprep.subr.mxu0 0.0
        %2940 = vmatpush2.msra.mxu0 0.0
        %2941 = vmatprep.subr.mxu0 0.0
        %2942 = vmatpush2.msra.mxu0 0.0
        %2943 = vmatprep.subr.mxu0 0.0
        %2944 = vmatpush2.msra.mxu0 0.0
        %2945 = vmatprep.subr.mxu0 0.0
        %2946 = vmatpush2.msra.mxu0 0.0
        %2947 = vmatprep.subr.mxu0 0.0
        %2948 = vmatpush2.msra.mxu0 0.0
        %2949 = vmatprep.subr.mxu0 0.0
        %2950 = vmatpush2.msra.mxu0 0.0
        %2951 = vmatprep.subr.mxu0 0.0
        %2952 = vmatpush2.msra.mxu0 0.0
        %2953 = vmatprep.subr.mxu0 0.0
        %2954 = vmatpush2.msra.mxu0 0.0
        %2955 = vmatprep.subr.mxu0 0.0
        %2956 = vmatpush2.msra.mxu0 0.0
        %2957 = vmatprep.subr.mxu0 0.0
        %2958 = vmatpush2.msra.mxu0 0.0
        %2959 = vmatprep.subr.mxu0 0.0
        %2960 = vmatpush2.msra.mxu0 0.0
        %2961 = vmatprep.subr.mxu0 0.0
        %2962 = vmatpush2.msra.mxu0 0.0
        %2963 = vmatprep.mubr.f32.mxu0 0.0
        %v2964 = vand.u32 %v2670, 4294901760
        %v2965 = vsub.f32 %v2670, %v2964
        %v2966 = vand.u32 %v2965, 4294901760
        %2967 = vmatmul.mubr.f32.gmra.mxu0 %v2966
        %v2968 = vpop.f32.mrf.mxu0
        %v2969 = vadd.f32 %v2895, %v2968
        %v2970 = vpop.f32.mrf.mxu0
        %2971 = vdwg.mxu0
        %2972 = vmatprep.subr.mxu0 0.0
        %2973 = vmatpush1.msra.mxu0 0.0
        %2974 = vmatprep.subr.mxu0 0.0
        %2975 = vmatpush1.msra.mxu0 0.0
        %2976 = vmatprep.subr.mxu0 0.0
        %2977 = vmatpush1.msra.mxu0 0.0
        %2978 = vmatprep.subr.mxu0 0.0
        %2979 = vmatpush1.msra.mxu0 0.0
        %2980 = vmatprep.subr.mxu0 0.0
        %2981 = vmatpush1.msra.mxu0 0.0
        %2982 = vmatprep.subr.mxu0 0.0
        %2983 = vmatpush1.msra.mxu0 0.0
        %2984 = vmatprep.subr.mxu0 0.0
        %2985 = vmatpush1.msra.mxu0 0.0
        %2986 = vmatprep.subr.mxu0 0.0
        %2987 = vmatpush1.msra.mxu0 0.0
        %2988 = vmatprep.subr.mxu0 0.0
        %2989 = vmatpush1.msra.mxu0 0.0
        %2990 = vmatprep.subr.mxu0 0.0
        %2991 = vmatpush1.msra.mxu0 0.0
        %2992 = vmatprep.subr.mxu0 0.0
        %2993 = vmatpush1.msra.mxu0 0.0
        %2994 = vmatprep.subr.mxu0 0.0
        %2995 = vmatpush1.msra.mxu0 0.0
        %2996 = vmatprep.subr.mxu0 0.0
        %2997 = vmatpush1.msra.mxu0 0.0
        %2998 = vmatprep.subr.mxu0 0.0
        %2999 = vmatpush1.msra.mxu0 0.0
        %3000 = vmatprep.subr.mxu0 0.0
        %3001 = vmatpush1.msra.mxu0 0.0
        %3002 = vmatprep.subr.mxu0 0.0
        %v3003 = vand.u32 %v2204, 4294901760
        %v3004 = vsub.f32 %v2204, %v3003
        %v3005 = vand.u32 %v3004, 4294901760
        %3006 = vmatpush1.msra.mxu0 %v3005
        %3007 = vmatprep.subr.mxu0 0.0
        %3008 = vmatpush2.msra.mxu0 0.0
        %3009 = vmatprep.subr.mxu0 0.0
        %3010 = vmatpush2.msra.mxu0 0.0
        %3011 = vmatprep.subr.mxu0 0.0
        %3012 = vmatpush2.msra.mxu0 0.0
        %3013 = vmatprep.subr.mxu0 0.0
        %3014 = vmatpush2.msra.mxu0 0.0
        %3015 = vmatprep.subr.mxu0 0.0
        %3016 = vmatpush2.msra.mxu0 0.0
        %3017 = vmatprep.subr.mxu0 0.0
        %3018 = vmatpush2.msra.mxu0 0.0
        %3019 = vmatprep.subr.mxu0 0.0
        %3020 = vmatpush2.msra.mxu0 0.0
        %3021 = vmatprep.subr.mxu0 0.0
        %3022 = vmatpush2.msra.mxu0 0.0
        %3023 = vmatprep.subr.mxu0 0.0
        %3024 = vmatpush2.msra.mxu0 0.0
        %3025 = vmatprep.subr.mxu0 0.0
        %3026 = vmatpush2.msra.mxu0 0.0
        %3027 = vmatprep.subr.mxu0 0.0
        %3028 = vmatpush2.msra.mxu0 0.0
        %3029 = vmatprep.subr.mxu0 0.0
        %3030 = vmatpush2.msra.mxu0 0.0
        %3031 = vmatprep.subr.mxu0 0.0
        %3032 = vmatpush2.msra.mxu0 0.0
        %3033 = vmatprep.subr.mxu0 0.0
        %3034 = vmatpush2.msra.mxu0 0.0
        %3035 = vmatprep.subr.mxu0 0.0
        %3036 = vmatpush2.msra.mxu0 0.0
        %3037 = vmatprep.subr.mxu0 0.0
        %3038 = vmatpush2.msra.mxu0 0.0
        %3039 = vmatprep.mubr.f32.mxu0 0.0
        %v3040 = vand.u32 %v2670, 4294901760
        %3041 = vmatmul.mubr.f32.gmra.mxu0 %v3040
        %v3042 = vpop.f32.mrf.mxu0
        %v3043 = vadd.f32 %v2969, %v3042
        %v3044 = vpop.f32.mrf.mxu0
        %3045 = vdwg.mxu0
        %3046 = vmatprep.subr.mxu0 0.0
        %3047 = vmatpush1.msra.mxu0 0.0
        %3048 = vmatprep.subr.mxu0 0.0
        %3049 = vmatpush1.msra.mxu0 0.0
        %3050 = vmatprep.subr.mxu0 0.0
        %3051 = vmatpush1.msra.mxu0 0.0
        %3052 = vmatprep.subr.mxu0 0.0
        %3053 = vmatpush1.msra.mxu0 0.0
        %3054 = vmatprep.subr.mxu0 0.0
        %3055 = vmatpush1.msra.mxu0 0.0
        %3056 = vmatprep.subr.mxu0 0.0
        %3057 = vmatpush1.msra.mxu0 0.0
        %3058 = vmatprep.subr.mxu0 0.0
        %3059 = vmatpush1.msra.mxu0 0.0
        %3060 = vmatprep.subr.mxu0 0.0
        %3061 = vmatpush1.msra.mxu0 0.0
        %3062 = vmatprep.subr.mxu0 0.0
        %3063 = vmatpush1.msra.mxu0 0.0
        %3064 = vmatprep.subr.mxu0 0.0
        %3065 = vmatpush1.msra.mxu0 0.0
        %3066 = vmatprep.subr.mxu0 0.0
        %3067 = vmatpush1.msra.mxu0 0.0
        %3068 = vmatprep.subr.mxu0 0.0
        %3069 = vmatpush1.msra.mxu0 0.0
        %3070 = vmatprep.subr.mxu0 0.0
        %3071 = vmatpush1.msra.mxu0 0.0
        %3072 = vmatprep.subr.mxu0 0.0
        %3073 = vmatpush1.msra.mxu0 0.0
        %3074 = vmatprep.subr.mxu0 0.0
        %3075 = vmatpush1.msra.mxu0 0.0
        %3076 = vmatprep.subr.mxu0 0.0
        %v3077 = vand.u32 %v2204, 4294901760
        %3078 = vmatpush1.msra.mxu0 %v3077
        %3079 = vmatprep.subr.mxu0 0.0
        %3080 = vmatpush2.msra.mxu0 0.0
        %3081 = vmatprep.subr.mxu0 0.0
        %3082 = vmatpush2.msra.mxu0 0.0
        %3083 = vmatprep.subr.mxu0 0.0
        %3084 = vmatpush2.msra.mxu0 0.0
        %3085 = vmatprep.subr.mxu0 0.0
        %3086 = vmatpush2.msra.mxu0 0.0
        %3087 = vmatprep.subr.mxu0 0.0
        %3088 = vmatpush2.msra.mxu0 0.0
        %3089 = vmatprep.subr.mxu0 0.0
        %3090 = vmatpush2.msra.mxu0 0.0
        %3091 = vmatprep.subr.mxu0 0.0
        %3092 = vmatpush2.msra.mxu0 0.0
        %3093 = vmatprep.subr.mxu0 0.0
        %3094 = vmatpush2.msra.mxu0 0.0
        %3095 = vmatprep.subr.mxu0 0.0
        %3096 = vmatpush2.msra.mxu0 0.0
        %3097 = vmatprep.subr.mxu0 0.0
        %3098 = vmatpush2.msra.mxu0 0.0
        %3099 = vmatprep.subr.mxu0 0.0
        %3100 = vmatpush2.msra.mxu0 0.0
        %3101 = vmatprep.subr.mxu0 0.0
        %3102 = vmatpush2.msra.mxu0 0.0
        %3103 = vmatprep.subr.mxu0 0.0
        %3104 = vmatpush2.msra.mxu0 0.0
        %3105 = vmatprep.subr.mxu0 0.0
        %3106 = vmatpush2.msra.mxu0 0.0
        %3107 = vmatprep.subr.mxu0 0.0
        %3108 = vmatpush2.msra.mxu0 0.0
        %3109 = vmatprep.subr.mxu0 0.0
        %3110 = vmatpush2.msra.mxu0 0.0
        %3111 = vmatprep.mubr.f32.mxu0 0.0
        %v3112 = vand.u32 %v2670, 4294901760
        %3113 = vmatmul.mubr.f32.gmra.mxu0 %v3112
        %v3114 = vpop.f32.mrf.mxu0
        %v3115 = vadd.f32 %v3043, %v3114
        %v3116 = vpop.f32.mrf.mxu0
        %3117 = vdwg.mxu0
        %3118 = vst.msk [vmem:[#allocation2] sm:$0xff] %vm2207, %v3115
        %3119 = vrot.lane.b32.xlu0 %v1087, 120
        %v3120 = vpop.permute.xlu0 %3119
        %v3121 = vsel %vm2207, %v3120, 0
        %3123 = vmatprep.subr.mxu0 0.0
        %3124 = vmatpush1.msra.mxu0 0.0
        %3125 = vmatprep.subr.mxu0 0.0
        %3126 = vmatpush1.msra.mxu0 0.0
        %3127 = vmatprep.subr.mxu0 0.0
        %3128 = vmatpush1.msra.mxu0 0.0
        %3129 = vmatprep.subr.mxu0 0.0
        %3130 = vmatpush1.msra.mxu0 0.0
        %3131 = vmatprep.subr.mxu0 0.0
        %3132 = vmatpush1.msra.mxu0 0.0
        %3133 = vmatprep.subr.mxu0 0.0
        %3134 = vmatpush1.msra.mxu0 0.0
        %3135 = vmatprep.subr.mxu0 0.0
        %3136 = vmatpush1.msra.mxu0 0.0
        %3137 = vmatprep.subr.mxu0 0.0
        %3138 = vmatpush1.msra.mxu0 0.0
        %3139 = vmatprep.subr.mxu0 0.0
        %3140 = vmatpush1.msra.mxu0 0.0
        %3141 = vmatprep.subr.mxu0 0.0
        %3142 = vmatpush1.msra.mxu0 0.0
        %3143 = vmatprep.subr.mxu0 0.0
        %3144 = vmatpush1.msra.mxu0 0.0
        %3145 = vmatprep.subr.mxu0 0.0
        %3146 = vmatpush1.msra.mxu0 0.0
        %3147 = vmatprep.subr.mxu0 0.0
        %3148 = vmatpush1.msra.mxu0 0.0
        %3149 = vmatprep.subr.mxu0 0.0
        %3150 = vmatpush1.msra.mxu0 0.0
        %3151 = vmatprep.subr.mxu0 0.0
        %3152 = vmatpush1.msra.mxu0 0.0
        %3153 = vmatprep.subr.mxu0 0.0
        %v3154 = vand.u32 %v1692, 4294901760
        %3155 = vmatpush1.msra.mxu0 %v3154
        %3156 = vmatprep.subr.mxu0 0.0
        %3157 = vmatpush2.msra.mxu0 0.0
        %3158 = vmatprep.subr.mxu0 0.0
        %3159 = vmatpush2.msra.mxu0 0.0
        %3160 = vmatprep.subr.mxu0 0.0
        %3161 = vmatpush2.msra.mxu0 0.0
        %3162 = vmatprep.subr.mxu0 0.0
        %3163 = vmatpush2.msra.mxu0 0.0
        %3164 = vmatprep.subr.mxu0 0.0
        %3165 = vmatpush2.msra.mxu0 0.0
        %3166 = vmatprep.subr.mxu0 0.0
        %3167 = vmatpush2.msra.mxu0 0.0
        %3168 = vmatprep.subr.mxu0 0.0
        %3169 = vmatpush2.msra.mxu0 0.0
        %3170 = vmatprep.subr.mxu0 0.0
        %3171 = vmatpush2.msra.mxu0 0.0
        %3172 = vmatprep.subr.mxu0 0.0
        %3173 = vmatpush2.msra.mxu0 0.0
        %3174 = vmatprep.subr.mxu0 0.0
        %3175 = vmatpush2.msra.mxu0 0.0
        %3176 = vmatprep.subr.mxu0 0.0
        %3177 = vmatpush2.msra.mxu0 0.0
        %3178 = vmatprep.subr.mxu0 0.0
        %3179 = vmatpush2.msra.mxu0 0.0
        %3180 = vmatprep.subr.mxu0 0.0
        %3181 = vmatpush2.msra.mxu0 0.0
        %3182 = vmatprep.subr.mxu0 0.0
        %3183 = vmatpush2.msra.mxu0 0.0
        %3184 = vmatprep.subr.mxu0 0.0
        %3185 = vmatpush2.msra.mxu0 0.0
        %3186 = vmatprep.subr.mxu0 0.0
        %3187 = vmatpush2.msra.mxu0 0.0
        %3188 = vmatprep.mubr.f32.mxu0 0.0
        %v3189 = vand.u32 %v3121, 4294901760
        %v3190 = vsub.f32 %v3121, %v3189
        %v3191 = vand.u32 %v3190, 4294901760
        %v3192 = vsub.f32 %v3190, %v3191
        %v3193 = vand.u32 %v3192, 4294901760
        %3194 = vmatmul.mubr.f32.gmra.mxu0 %v3193
        %v3195 = vpop.f32.mrf.mxu0
        %v3196 = vadd.f32 0.0, %v3195
        %v3197 = vpop.f32.mrf.mxu0
        %3198 = vdwg.mxu0
        %3199 = vmatprep.subr.mxu0 0.0
        %3200 = vmatpush1.msra.mxu0 0.0
        %3201 = vmatprep.subr.mxu0 0.0
        %3202 = vmatpush1.msra.mxu0 0.0
        %3203 = vmatprep.subr.mxu0 0.0
        %3204 = vmatpush1.msra.mxu0 0.0
        %3205 = vmatprep.subr.mxu0 0.0
        %3206 = vmatpush1.msra.mxu0 0.0
        %3207 = vmatprep.subr.mxu0 0.0
        %3208 = vmatpush1.msra.mxu0 0.0
        %3209 = vmatprep.subr.mxu0 0.0
        %3210 = vmatpush1.msra.mxu0 0.0
        %3211 = vmatprep.subr.mxu0 0.0
        %3212 = vmatpush1.msra.mxu0 0.0
        %3213 = vmatprep.subr.mxu0 0.0
        %3214 = vmatpush1.msra.mxu0 0.0
        %3215 = vmatprep.subr.mxu0 0.0
        %3216 = vmatpush1.msra.mxu0 0.0
        %3217 = vmatprep.subr.mxu0 0.0
        %3218 = vmatpush1.msra.mxu0 0.0
        %3219 = vmatprep.subr.mxu0 0.0
        %3220 = vmatpush1.msra.mxu0 0.0
        %3221 = vmatprep.subr.mxu0 0.0
        %3222 = vmatpush1.msra.mxu0 0.0
        %3223 = vmatprep.subr.mxu0 0.0
        %3224 = vmatpush1.msra.mxu0 0.0
        %3225 = vmatprep.subr.mxu0 0.0
        %3226 = vmatpush1.msra.mxu0 0.0
        %3227 = vmatprep.subr.mxu0 0.0
        %3228 = vmatpush1.msra.mxu0 0.0
        %3229 = vmatprep.subr.mxu0 0.0
        %v3230 = vand.u32 %v1692, 4294901760
        %v3231 = vsub.f32 %v1692, %v3230
        %v3232 = vand.u32 %v3231, 4294901760
        %v3233 = vsub.f32 %v3231, %v3232
        %v3234 = vand.u32 %v3233, 4294901760
        %3235 = vmatpush1.msra.mxu0 %v3234
        %3236 = vmatprep.subr.mxu0 0.0
        %3237 = vmatpush2.msra.mxu0 0.0
        %3238 = vmatprep.subr.mxu0 0.0
        %3239 = vmatpush2.msra.mxu0 0.0
        %3240 = vmatprep.subr.mxu0 0.0
        %3241 = vmatpush2.msra.mxu0 0.0
        %3242 = vmatprep.subr.mxu0 0.0
        %3243 = vmatpush2.msra.mxu0 0.0
        %3244 = vmatprep.subr.mxu0 0.0
        %3245 = vmatpush2.msra.mxu0 0.0
        %3246 = vmatprep.subr.mxu0 0.0
        %3247 = vmatpush2.msra.mxu0 0.0
        %3248 = vmatprep.subr.mxu0 0.0
        %3249 = vmatpush2.msra.mxu0 0.0
        %3250 = vmatprep.subr.mxu0 0.0
        %3251 = vmatpush2.msra.mxu0 0.0
        %3252 = vmatprep.subr.mxu0 0.0
        %3253 = vmatpush2.msra.mxu0 0.0
        %3254 = vmatprep.subr.mxu0 0.0
        %3255 = vmatpush2.msra.mxu0 0.0
        %3256 = vmatprep.subr.mxu0 0.0
        %3257 = vmatpush2.msra.mxu0 0.0
        %3258 = vmatprep.subr.mxu0 0.0
        %3259 = vmatpush2.msra.mxu0 0.0
        %3260 = vmatprep.subr.mxu0 0.0
        %3261 = vmatpush2.msra.mxu0 0.0
        %3262 = vmatprep.subr.mxu0 0.0
        %3263 = vmatpush2.msra.mxu0 0.0
        %3264 = vmatprep.subr.mxu0 0.0
        %3265 = vmatpush2.msra.mxu0 0.0
        %3266 = vmatprep.subr.mxu0 0.0
        %3267 = vmatpush2.msra.mxu0 0.0
        %3268 = vmatprep.mubr.f32.mxu0 0.0
        %v3269 = vand.u32 %v3121, 4294901760
        %3270 = vmatmul.mubr.f32.gmra.mxu0 %v3269
        %v3271 = vpop.f32.mrf.mxu0
        %v3272 = vadd.f32 %v3196, %v3271
        %v3273 = vpop.f32.mrf.mxu0
        %3274 = vdwg.mxu0
        %3275 = vmatprep.subr.mxu0 0.0
        %3276 = vmatpush1.msra.mxu0 0.0
        %3277 = vmatprep.subr.mxu0 0.0
        %3278 = vmatpush1.msra.mxu0 0.0
        %3279 = vmatprep.subr.mxu0 0.0
        %3280 = vmatpush1.msra.mxu0 0.0
        %3281 = vmatprep.subr.mxu0 0.0
        %3282 = vmatpush1.msra.mxu0 0.0
        %3283 = vmatprep.subr.mxu0 0.0
        %3284 = vmatpush1.msra.mxu0 0.0
        %3285 = vmatprep.subr.mxu0 0.0
        %3286 = vmatpush1.msra.mxu0 0.0
        %3287 = vmatprep.subr.mxu0 0.0
        %3288 = vmatpush1.msra.mxu0 0.0
        %3289 = vmatprep.subr.mxu0 0.0
        %3290 = vmatpush1.msra.mxu0 0.0
        %3291 = vmatprep.subr.mxu0 0.0
        %3292 = vmatpush1.msra.mxu0 0.0
        %3293 = vmatprep.subr.mxu0 0.0
        %3294 = vmatpush1.msra.mxu0 0.0
        %3295 = vmatprep.subr.mxu0 0.0
        %3296 = vmatpush1.msra.mxu0 0.0
        %3297 = vmatprep.subr.mxu0 0.0
        %3298 = vmatpush1.msra.mxu0 0.0
        %3299 = vmatprep.subr.mxu0 0.0
        %3300 = vmatpush1.msra.mxu0 0.0
        %3301 = vmatprep.subr.mxu0 0.0
        %3302 = vmatpush1.msra.mxu0 0.0
        %3303 = vmatprep.subr.mxu0 0.0
        %3304 = vmatpush1.msra.mxu0 0.0
        %3305 = vmatprep.subr.mxu0 0.0
        %v3306 = vand.u32 %v1692, 4294901760
        %v3307 = vsub.f32 %v1692, %v3306
        %3308 = vmatpush1.msra.mxu0 %v3307
        %3309 = vmatprep.subr.mxu0 0.0
        %3310 = vmatpush2.msra.mxu0 0.0
        %3311 = vmatprep.subr.mxu0 0.0
        %3312 = vmatpush2.msra.mxu0 0.0
        %3313 = vmatprep.subr.mxu0 0.0
        %3314 = vmatpush2.msra.mxu0 0.0
        %3315 = vmatprep.subr.mxu0 0.0
        %3316 = vmatpush2.msra.mxu0 0.0
        %3317 = vmatprep.subr.mxu0 0.0
        %3318 = vmatpush2.msra.mxu0 0.0
        %3319 = vmatprep.subr.mxu0 0.0
        %3320 = vmatpush2.msra.mxu0 0.0
        %3321 = vmatprep.subr.mxu0 0.0
        %3322 = vmatpush2.msra.mxu0 0.0
        %3323 = vmatprep.subr.mxu0 0.0
        %3324 = vmatpush2.msra.mxu0 0.0
        %3325 = vmatprep.subr.mxu0 0.0
        %3326 = vmatpush2.msra.mxu0 0.0
        %3327 = vmatprep.subr.mxu0 0.0
        %3328 = vmatpush2.msra.mxu0 0.0
        %3329 = vmatprep.subr.mxu0 0.0
        %3330 = vmatpush2.msra.mxu0 0.0
        %3331 = vmatprep.subr.mxu0 0.0
        %3332 = vmatpush2.msra.mxu0 0.0
        %3333 = vmatprep.subr.mxu0 0.0
        %3334 = vmatpush2.msra.mxu0 0.0
        %3335 = vmatprep.subr.mxu0 0.0
        %3336 = vmatpush2.msra.mxu0 0.0
        %3337 = vmatprep.subr.mxu0 0.0
        %3338 = vmatpush2.msra.mxu0 0.0
        %3339 = vmatprep.subr.mxu0 0.0
        %3340 = vmatpush2.msra.mxu0 0.0
        %3341 = vmatprep.mubr.f32.mxu0 0.0
        %v3342 = vand.u32 %v3121, 4294901760
        %v3343 = vsub.f32 %v3121, %v3342
        %3344 = vmatmul.mubr.f32.gmra.mxu0 %v3343
        %v3345 = vpop.f32.mrf.mxu0
        %v3346 = vadd.f32 %v3272, %v3345
        %v3347 = vpop.f32.mrf.mxu0
        %3348 = vdwg.mxu0
        %3349 = vmatprep.subr.mxu0 0.0
        %3350 = vmatpush1.msra.mxu0 0.0
        %3351 = vmatprep.subr.mxu0 0.0
        %3352 = vmatpush1.msra.mxu0 0.0
        %3353 = vmatprep.subr.mxu0 0.0
        %3354 = vmatpush1.msra.mxu0 0.0
        %3355 = vmatprep.subr.mxu0 0.0
        %3356 = vmatpush1.msra.mxu0 0.0
        %3357 = vmatprep.subr.mxu0 0.0
        %3358 = vmatpush1.msra.mxu0 0.0
        %3359 = vmatprep.subr.mxu0 0.0
        %3360 = vmatpush1.msra.mxu0 0.0
        %3361 = vmatprep.subr.mxu0 0.0
        %3362 = vmatpush1.msra.mxu0 0.0
        %3363 = vmatprep.subr.mxu0 0.0
        %3364 = vmatpush1.msra.mxu0 0.0
        %3365 = vmatprep.subr.mxu0 0.0
        %3366 = vmatpush1.msra.mxu0 0.0
        %3367 = vmatprep.subr.mxu0 0.0
        %3368 = vmatpush1.msra.mxu0 0.0
        %3369 = vmatprep.subr.mxu0 0.0
        %3370 = vmatpush1.msra.mxu0 0.0
        %3371 = vmatprep.subr.mxu0 0.0
        %3372 = vmatpush1.msra.mxu0 0.0
        %3373 = vmatprep.subr.mxu0 0.0
        %3374 = vmatpush1.msra.mxu0 0.0
        %3375 = vmatprep.subr.mxu0 0.0
        %3376 = vmatpush1.msra.mxu0 0.0
        %3377 = vmatprep.subr.mxu0 0.0
        %3378 = vmatpush1.msra.mxu0 0.0
        %3379 = vmatprep.subr.mxu0 0.0
        %v3380 = vand.u32 %v1692, 4294901760
        %3381 = vmatpush1.msra.mxu0 %v3380
        %3382 = vmatprep.subr.mxu0 0.0
        %3383 = vmatpush2.msra.mxu0 0.0
        %3384 = vmatprep.subr.mxu0 0.0
        %3385 = vmatpush2.msra.mxu0 0.0
        %3386 = vmatprep.subr.mxu0 0.0
        %3387 = vmatpush2.msra.mxu0 0.0
        %3388 = vmatprep.subr.mxu0 0.0
        %3389 = vmatpush2.msra.mxu0 0.0
        %3390 = vmatprep.subr.mxu0 0.0
        %3391 = vmatpush2.msra.mxu0 0.0
        %3392 = vmatprep.subr.mxu0 0.0
        %3393 = vmatpush2.msra.mxu0 0.0
        %3394 = vmatprep.subr.mxu0 0.0
        %3395 = vmatpush2.msra.mxu0 0.0
        %3396 = vmatprep.subr.mxu0 0.0
        %3397 = vmatpush2.msra.mxu0 0.0
        %3398 = vmatprep.subr.mxu0 0.0
        %3399 = vmatpush2.msra.mxu0 0.0
        %3400 = vmatprep.subr.mxu0 0.0
        %3401 = vmatpush2.msra.mxu0 0.0
        %3402 = vmatprep.subr.mxu0 0.0
        %3403 = vmatpush2.msra.mxu0 0.0
        %3404 = vmatprep.subr.mxu0 0.0
        %3405 = vmatpush2.msra.mxu0 0.0
        %3406 = vmatprep.subr.mxu0 0.0
        %3407 = vmatpush2.msra.mxu0 0.0
        %3408 = vmatprep.subr.mxu0 0.0
        %3409 = vmatpush2.msra.mxu0 0.0
        %3410 = vmatprep.subr.mxu0 0.0
        %3411 = vmatpush2.msra.mxu0 0.0
        %3412 = vmatprep.subr.mxu0 0.0
        %3413 = vmatpush2.msra.mxu0 0.0
        %3414 = vmatprep.mubr.f32.mxu0 0.0
        %v3415 = vand.u32 %v3121, 4294901760
        %v3416 = vsub.f32 %v3121, %v3415
        %v3417 = vand.u32 %v3416, 4294901760
        %3418 = vmatmul.mubr.f32.gmra.mxu0 %v3417
        %v3419 = vpop.f32.mrf.mxu0
        %v3420 = vadd.f32 %v3346, %v3419
        %v3421 = vpop.f32.mrf.mxu0
        %3422 = vdwg.mxu0
        %3423 = vmatprep.subr.mxu0 0.0
        %3424 = vmatpush1.msra.mxu0 0.0
        %3425 = vmatprep.subr.mxu0 0.0
        %3426 = vmatpush1.msra.mxu0 0.0
        %3427 = vmatprep.subr.mxu0 0.0
        %3428 = vmatpush1.msra.mxu0 0.0
        %3429 = vmatprep.subr.mxu0 0.0
        %3430 = vmatpush1.msra.mxu0 0.0
        %3431 = vmatprep.subr.mxu0 0.0
        %3432 = vmatpush1.msra.mxu0 0.0
        %3433 = vmatprep.subr.mxu0 0.0
        %3434 = vmatpush1.msra.mxu0 0.0
        %3435 = vmatprep.subr.mxu0 0.0
        %3436 = vmatpush1.msra.mxu0 0.0
        %3437 = vmatprep.subr.mxu0 0.0
        %3438 = vmatpush1.msra.mxu0 0.0
        %3439 = vmatprep.subr.mxu0 0.0
        %3440 = vmatpush1.msra.mxu0 0.0
        %3441 = vmatprep.subr.mxu0 0.0
        %3442 = vmatpush1.msra.mxu0 0.0
        %3443 = vmatprep.subr.mxu0 0.0
        %3444 = vmatpush1.msra.mxu0 0.0
        %3445 = vmatprep.subr.mxu0 0.0
        %3446 = vmatpush1.msra.mxu0 0.0
        %3447 = vmatprep.subr.mxu0 0.0
        %3448 = vmatpush1.msra.mxu0 0.0
        %3449 = vmatprep.subr.mxu0 0.0
        %3450 = vmatpush1.msra.mxu0 0.0
        %3451 = vmatprep.subr.mxu0 0.0
        %3452 = vmatpush1.msra.mxu0 0.0
        %3453 = vmatprep.subr.mxu0 0.0
        %v3454 = vand.u32 %v1692, 4294901760
        %v3455 = vsub.f32 %v1692, %v3454
        %v3456 = vand.u32 %v3455, 4294901760
        %3457 = vmatpush1.msra.mxu0 %v3456
        %3458 = vmatprep.subr.mxu0 0.0
        %3459 = vmatpush2.msra.mxu0 0.0
        %3460 = vmatprep.subr.mxu0 0.0
        %3461 = vmatpush2.msra.mxu0 0.0
        %3462 = vmatprep.subr.mxu0 0.0
        %3463 = vmatpush2.msra.mxu0 0.0
        %3464 = vmatprep.subr.mxu0 0.0
        %3465 = vmatpush2.msra.mxu0 0.0
        %3466 = vmatprep.subr.mxu0 0.0
        %3467 = vmatpush2.msra.mxu0 0.0
        %3468 = vmatprep.subr.mxu0 0.0
        %3469 = vmatpush2.msra.mxu0 0.0
        %3470 = vmatprep.subr.mxu0 0.0
        %3471 = vmatpush2.msra.mxu0 0.0
        %3472 = vmatprep.subr.mxu0 0.0
        %3473 = vmatpush2.msra.mxu0 0.0
        %3474 = vmatprep.subr.mxu0 0.0
        %3475 = vmatpush2.msra.mxu0 0.0
        %3476 = vmatprep.subr.mxu0 0.0
        %3477 = vmatpush2.msra.mxu0 0.0
        %3478 = vmatprep.subr.mxu0 0.0
        %3479 = vmatpush2.msra.mxu0 0.0
        %3480 = vmatprep.subr.mxu0 0.0
        %3481 = vmatpush2.msra.mxu0 0.0
        %3482 = vmatprep.subr.mxu0 0.0
        %3483 = vmatpush2.msra.mxu0 0.0
        %3484 = vmatprep.subr.mxu0 0.0
        %3485 = vmatpush2.msra.mxu0 0.0
        %3486 = vmatprep.subr.mxu0 0.0
        %3487 = vmatpush2.msra.mxu0 0.0
        %3488 = vmatprep.subr.mxu0 0.0
        %3489 = vmatpush2.msra.mxu0 0.0
        %3490 = vmatprep.mubr.f32.mxu0 0.0
        %v3491 = vand.u32 %v3121, 4294901760
        %3492 = vmatmul.mubr.f32.gmra.mxu0 %v3491
        %v3493 = vpop.f32.mrf.mxu0
        %v3494 = vadd.f32 %v3420, %v3493
        %v3495 = vpop.f32.mrf.mxu0
        %3496 = vdwg.mxu0
        %3497 = vmatprep.subr.mxu0 0.0
        %3498 = vmatpush1.msra.mxu0 0.0
        %3499 = vmatprep.subr.mxu0 0.0
        %3500 = vmatpush1.msra.mxu0 0.0
        %3501 = vmatprep.subr.mxu0 0.0
        %3502 = vmatpush1.msra.mxu0 0.0
        %3503 = vmatprep.subr.mxu0 0.0
        %3504 = vmatpush1.msra.mxu0 0.0
        %3505 = vmatprep.subr.mxu0 0.0
        %3506 = vmatpush1.msra.mxu0 0.0
        %3507 = vmatprep.subr.mxu0 0.0
        %3508 = vmatpush1.msra.mxu0 0.0
        %3509 = vmatprep.subr.mxu0 0.0
        %3510 = vmatpush1.msra.mxu0 0.0
        %3511 = vmatprep.subr.mxu0 0.0
        %3512 = vmatpush1.msra.mxu0 0.0
        %3513 = vmatprep.subr.mxu0 0.0
        %3514 = vmatpush1.msra.mxu0 0.0
        %3515 = vmatprep.subr.mxu0 0.0
        %3516 = vmatpush1.msra.mxu0 0.0
        %3517 = vmatprep.subr.mxu0 0.0
        %3518 = vmatpush1.msra.mxu0 0.0
        %3519 = vmatprep.subr.mxu0 0.0
        %3520 = vmatpush1.msra.mxu0 0.0
        %3521 = vmatprep.subr.mxu0 0.0
        %3522 = vmatpush1.msra.mxu0 0.0
        %3523 = vmatprep.subr.mxu0 0.0
        %3524 = vmatpush1.msra.mxu0 0.0
        %3525 = vmatprep.subr.mxu0 0.0
        %3526 = vmatpush1.msra.mxu0 0.0
        %3527 = vmatprep.subr.mxu0 0.0
        %v3528 = vand.u32 %v1692, 4294901760
        %3529 = vmatpush1.msra.mxu0 %v3528
        %3530 = vmatprep.subr.mxu0 0.0
        %3531 = vmatpush2.msra.mxu0 0.0
        %3532 = vmatprep.subr.mxu0 0.0
        %3533 = vmatpush2.msra.mxu0 0.0
        %3534 = vmatprep.subr.mxu0 0.0
        %3535 = vmatpush2.msra.mxu0 0.0
        %3536 = vmatprep.subr.mxu0 0.0
        %3537 = vmatpush2.msra.mxu0 0.0
        %3538 = vmatprep.subr.mxu0 0.0
        %3539 = vmatpush2.msra.mxu0 0.0
        %3540 = vmatprep.subr.mxu0 0.0
        %3541 = vmatpush2.msra.mxu0 0.0
        %3542 = vmatprep.subr.mxu0 0.0
        %3543 = vmatpush2.msra.mxu0 0.0
        %3544 = vmatprep.subr.mxu0 0.0
        %3545 = vmatpush2.msra.mxu0 0.0
        %3546 = vmatprep.subr.mxu0 0.0
        %3547 = vmatpush2.msra.mxu0 0.0
        %3548 = vmatprep.subr.mxu0 0.0
        %3549 = vmatpush2.msra.mxu0 0.0
        %3550 = vmatprep.subr.mxu0 0.0
        %3551 = vmatpush2.msra.mxu0 0.0
        %3552 = vmatprep.subr.mxu0 0.0
        %3553 = vmatpush2.msra.mxu0 0.0
        %3554 = vmatprep.subr.mxu0 0.0
        %3555 = vmatpush2.msra.mxu0 0.0
        %3556 = vmatprep.subr.mxu0 0.0
        %3557 = vmatpush2.msra.mxu0 0.0
        %3558 = vmatprep.subr.mxu0 0.0
        %3559 = vmatpush2.msra.mxu0 0.0
        %3560 = vmatprep.subr.mxu0 0.0
        %3561 = vmatpush2.msra.mxu0 0.0
        %3562 = vmatprep.mubr.f32.mxu0 0.0
        %v3563 = vand.u32 %v3121, 4294901760
        %3564 = vmatmul.mubr.f32.gmra.mxu0 %v3563
        %v3565 = vpop.f32.mrf.mxu0
        %v3566 = vadd.f32 %v3494, %v3565
        %v3567 = vpop.f32.mrf.mxu0
        %3568 = vdwg.mxu0
        %v3569 = vsel %vm2207, %v3566, -inf
        %3570 = vmax.xlane.f32.xlu0 %v3569
        %v3571 = vpop.xlane.xlu0 %3570
        %v3572 = vsub.f32 %v3566, %v3571
        %v3573 = vmul.f32 %v3572, 1.442695
        %v3574 = vpow.pop %v3573
        %v3575 = vsel %vm2207, %v3574, 0.0
        %3576 = vadd.xlane.f32.xlu0 %v3575
        %v3577 = vpop.xlane.xlu0 %3576
        %v3578 = vrcp.pop %v3577
        %v3579 = vmul.f32 %v3574, %v3578
        %s3580 = scalar_lea.vmem %s567, 8 [#allocation13]
        %3581 = vst.msk [vmem:[%s3580] sm:$0xff] %vm2207, %v3579
        %3583 = vrot.lane.b32.xlu0 %v2204, 120
        %v3584 = vpop.permute.xlu0 %3583
        %v3587 = vsel %vm2207, %v3579, 0
        %3589 = vmatprep.subr.mxu0 0.0
        %3590 = vmatpush1.msra.mxu0 0.0
        %3591 = vmatprep.subr.mxu0 0.0
        %3592 = vmatpush1.msra.mxu0 0.0
        %3593 = vmatprep.subr.mxu0 0.0
        %3594 = vmatpush1.msra.mxu0 0.0
        %3595 = vmatprep.subr.mxu0 0.0
        %3596 = vmatpush1.msra.mxu0 0.0
        %3597 = vmatprep.subr.mxu0 0.0
        %3598 = vmatpush1.msra.mxu0 0.0
        %3599 = vmatprep.subr.mxu0 0.0
        %3600 = vmatpush1.msra.mxu0 0.0
        %3601 = vmatprep.subr.mxu0 0.0
        %3602 = vmatpush1.msra.mxu0 0.0
        %3603 = vmatprep.subr.mxu0 0.0
        %3604 = vmatpush1.msra.mxu0 0.0
        %3605 = vmatprep.subr.mxu0 0.0
        %3606 = vmatpush1.msra.mxu0 0.0
        %3607 = vmatprep.subr.mxu0 0.0
        %3608 = vmatpush1.msra.mxu0 0.0
        %3609 = vmatprep.subr.mxu0 0.0
        %3610 = vmatpush1.msra.mxu0 0.0
        %3611 = vmatprep.subr.mxu0 0.0
        %3612 = vmatpush1.msra.mxu0 0.0
        %3613 = vmatprep.subr.mxu0 0.0
        %3614 = vmatpush1.msra.mxu0 0.0
        %3615 = vmatprep.subr.mxu0 0.0
        %3616 = vmatpush1.msra.mxu0 0.0
        %3617 = vmatprep.subr.mxu0 0.0
        %3618 = vmatpush1.msra.mxu0 0.0
        %3619 = vmatprep.subr.mxu0 0.0
        %v3620 = vand.u32 %v3584, 4294901760
        %3621 = vmatpush1.msra.mxu0 %v3620
        %3622 = vmatprep.subr.mxu0 0.0
        %3623 = vmatpush2.msra.mxu0 0.0
        %3624 = vmatprep.subr.mxu0 0.0
        %3625 = vmatpush2.msra.mxu0 0.0
        %3626 = vmatprep.subr.mxu0 0.0
        %3627 = vmatpush2.msra.mxu0 0.0
        %3628 = vmatprep.subr.mxu0 0.0
        %3629 = vmatpush2.msra.mxu0 0.0
        %3630 = vmatprep.subr.mxu0 0.0
        %3631 = vmatpush2.msra.mxu0 0.0
        %3632 = vmatprep.subr.mxu0 0.0
        %3633 = vmatpush2.msra.mxu0 0.0
        %3634 = vmatprep.subr.mxu0 0.0
        %3635 = vmatpush2.msra.mxu0 0.0
        %3636 = vmatprep.subr.mxu0 0.0
        %3637 = vmatpush2.msra.mxu0 0.0
        %3638 = vmatprep.subr.mxu0 0.0
        %3639 = vmatpush2.msra.mxu0 0.0
        %3640 = vmatprep.subr.mxu0 0.0
        %3641 = vmatpush2.msra.mxu0 0.0
        %3642 = vmatprep.subr.mxu0 0.0
        %3643 = vmatpush2.msra.mxu0 0.0
        %3644 = vmatprep.subr.mxu0 0.0
        %3645 = vmatpush2.msra.mxu0 0.0
        %3646 = vmatprep.subr.mxu0 0.0
        %3647 = vmatpush2.msra.mxu0 0.0
        %3648 = vmatprep.subr.mxu0 0.0
        %3649 = vmatpush2.msra.mxu0 0.0
        %3650 = vmatprep.subr.mxu0 0.0
        %3651 = vmatpush2.msra.mxu0 0.0
        %3652 = vmatprep.subr.mxu0 0.0
        %3653 = vmatpush2.msra.mxu0 0.0
        %3654 = vmatprep.mubr.f32.mxu0 0.0
        %v3655 = vand.u32 %v3587, 4294901760
        %v3656 = vsub.f32 %v3587, %v3655
        %v3657 = vand.u32 %v3656, 4294901760
        %v3658 = vsub.f32 %v3656, %v3657
        %v3659 = vand.u32 %v3658, 4294901760
        %3660 = vmatmul.mubr.f32.gmra.mxu0 %v3659
        %v3661 = vpop.f32.mrf.mxu0
        %v3662 = vadd.f32 0.0, %v3661
        %v3663 = vpop.f32.mrf.mxu0
        %3664 = vdwg.mxu0
        %3665 = vmatprep.subr.mxu0 0.0
        %3666 = vmatpush1.msra.mxu0 0.0
        %3667 = vmatprep.subr.mxu0 0.0
        %3668 = vmatpush1.msra.mxu0 0.0
        %3669 = vmatprep.subr.mxu0 0.0
        %3670 = vmatpush1.msra.mxu0 0.0
        %3671 = vmatprep.subr.mxu0 0.0
        %3672 = vmatpush1.msra.mxu0 0.0
        %3673 = vmatprep.subr.mxu0 0.0
        %3674 = vmatpush1.msra.mxu0 0.0
        %3675 = vmatprep.subr.mxu0 0.0
        %3676 = vmatpush1.msra.mxu0 0.0
        %3677 = vmatprep.subr.mxu0 0.0
        %3678 = vmatpush1.msra.mxu0 0.0
        %3679 = vmatprep.subr.mxu0 0.0
        %3680 = vmatpush1.msra.mxu0 0.0
        %3681 = vmatprep.subr.mxu0 0.0
        %3682 = vmatpush1.msra.mxu0 0.0
        %3683 = vmatprep.subr.mxu0 0.0
        %3684 = vmatpush1.msra.mxu0 0.0
        %3685 = vmatprep.subr.mxu0 0.0
        %3686 = vmatpush1.msra.mxu0 0.0
        %3687 = vmatprep.subr.mxu0 0.0
        %3688 = vmatpush1.msra.mxu0 0.0
        %3689 = vmatprep.subr.mxu0 0.0
        %3690 = vmatpush1.msra.mxu0 0.0
        %3691 = vmatprep.subr.mxu0 0.0
        %3692 = vmatpush1.msra.mxu0 0.0
        %3693 = vmatprep.subr.mxu0 0.0
        %3694 = vmatpush1.msra.mxu0 0.0
        %3695 = vmatprep.subr.mxu0 0.0
        %v3696 = vand.u32 %v3584, 4294901760
        %v3697 = vsub.f32 %v3584, %v3696
        %v3698 = vand.u32 %v3697, 4294901760
        %v3699 = vsub.f32 %v3697, %v3698
        %v3700 = vand.u32 %v3699, 4294901760
        %3701 = vmatpush1.msra.mxu0 %v3700
        %3702 = vmatprep.subr.mxu0 0.0
        %3703 = vmatpush2.msra.mxu0 0.0
        %3704 = vmatprep.subr.mxu0 0.0
        %3705 = vmatpush2.msra.mxu0 0.0
        %3706 = vmatprep.subr.mxu0 0.0
        %3707 = vmatpush2.msra.mxu0 0.0
        %3708 = vmatprep.subr.mxu0 0.0
        %3709 = vmatpush2.msra.mxu0 0.0
        %3710 = vmatprep.subr.mxu0 0.0
        %3711 = vmatpush2.msra.mxu0 0.0
        %3712 = vmatprep.subr.mxu0 0.0
        %3713 = vmatpush2.msra.mxu0 0.0
        %3714 = vmatprep.subr.mxu0 0.0
        %3715 = vmatpush2.msra.mxu0 0.0
        %3716 = vmatprep.subr.mxu0 0.0
        %3717 = vmatpush2.msra.mxu0 0.0
        %3718 = vmatprep.subr.mxu0 0.0
        %3719 = vmatpush2.msra.mxu0 0.0
        %3720 = vmatprep.subr.mxu0 0.0
        %3721 = vmatpush2.msra.mxu0 0.0
        %3722 = vmatprep.subr.mxu0 0.0
        %3723 = vmatpush2.msra.mxu0 0.0
        %3724 = vmatprep.subr.mxu0 0.0
        %3725 = vmatpush2.msra.mxu0 0.0
        %3726 = vmatprep.subr.mxu0 0.0
        %3727 = vmatpush2.msra.mxu0 0.0
        %3728 = vmatprep.subr.mxu0 0.0
        %3729 = vmatpush2.msra.mxu0 0.0
        %3730 = vmatprep.subr.mxu0 0.0
        %3731 = vmatpush2.msra.mxu0 0.0
        %3732 = vmatprep.subr.mxu0 0.0
        %3733 = vmatpush2.msra.mxu0 0.0
        %3734 = vmatprep.mubr.f32.mxu0 0.0
        %v3735 = vand.u32 %v3587, 4294901760
        %3736 = vmatmul.mubr.f32.gmra.mxu0 %v3735
        %v3737 = vpop.f32.mrf.mxu0
        %v3738 = vadd.f32 %v3662, %v3737
        %v3739 = vpop.f32.mrf.mxu0
        %3740 = vdwg.mxu0
        %3741 = vmatprep.subr.mxu0 0.0
        %3742 = vmatpush1.msra.mxu0 0.0
        %3743 = vmatprep.subr.mxu0 0.0
        %3744 = vmatpush1.msra.mxu0 0.0
        %3745 = vmatprep.subr.mxu0 0.0
        %3746 = vmatpush1.msra.mxu0 0.0
        %3747 = vmatprep.subr.mxu0 0.0
        %3748 = vmatpush1.msra.mxu0 0.0
        %3749 = vmatprep.subr.mxu0 0.0
        %3750 = vmatpush1.msra.mxu0 0.0
        %3751 = vmatprep.subr.mxu0 0.0
        %3752 = vmatpush1.msra.mxu0 0.0
        %3753 = vmatprep.subr.mxu0 0.0
        %3754 = vmatpush1.msra.mxu0 0.0
        %3755 = vmatprep.subr.mxu0 0.0
        %3756 = vmatpush1.msra.mxu0 0.0
        %3757 = vmatprep.subr.mxu0 0.0
        %3758 = vmatpush1.msra.mxu0 0.0
        %3759 = vmatprep.subr.mxu0 0.0
        %3760 = vmatpush1.msra.mxu0 0.0
        %3761 = vmatprep.subr.mxu0 0.0
        %3762 = vmatpush1.msra.mxu0 0.0
        %3763 = vmatprep.subr.mxu0 0.0
        %3764 = vmatpush1.msra.mxu0 0.0
        %3765 = vmatprep.subr.mxu0 0.0
        %3766 = vmatpush1.msra.mxu0 0.0
        %3767 = vmatprep.subr.mxu0 0.0
        %3768 = vmatpush1.msra.mxu0 0.0
        %3769 = vmatprep.subr.mxu0 0.0
        %3770 = vmatpush1.msra.mxu0 0.0
        %3771 = vmatprep.subr.mxu0 0.0
        %v3772 = vand.u32 %v3584, 4294901760
        %v3773 = vsub.f32 %v3584, %v3772
        %3774 = vmatpush1.msra.mxu0 %v3773
        %3775 = vmatprep.subr.mxu0 0.0
        %3776 = vmatpush2.msra.mxu0 0.0
        %3777 = vmatprep.subr.mxu0 0.0
        %3778 = vmatpush2.msra.mxu0 0.0
        %3779 = vmatprep.subr.mxu0 0.0
        %3780 = vmatpush2.msra.mxu0 0.0
        %3781 = vmatprep.subr.mxu0 0.0
        %3782 = vmatpush2.msra.mxu0 0.0
        %3783 = vmatprep.subr.mxu0 0.0
        %3784 = vmatpush2.msra.mxu0 0.0
        %3785 = vmatprep.subr.mxu0 0.0
        %3786 = vmatpush2.msra.mxu0 0.0
        %3787 = vmatprep.subr.mxu0 0.0
        %3788 = vmatpush2.msra.mxu0 0.0
        %3789 = vmatprep.subr.mxu0 0.0
        %3790 = vmatpush2.msra.mxu0 0.0
        %3791 = vmatprep.subr.mxu0 0.0
        %3792 = vmatpush2.msra.mxu0 0.0
        %3793 = vmatprep.subr.mxu0 0.0
        %3794 = vmatpush2.msra.mxu0 0.0
        %3795 = vmatprep.subr.mxu0 0.0
        %3796 = vmatpush2.msra.mxu0 0.0
        %3797 = vmatprep.subr.mxu0 0.0
        %3798 = vmatpush2.msra.mxu0 0.0
        %3799 = vmatprep.subr.mxu0 0.0
        %3800 = vmatpush2.msra.mxu0 0.0
        %3801 = vmatprep.subr.mxu0 0.0
        %3802 = vmatpush2.msra.mxu0 0.0
        %3803 = vmatprep.subr.mxu0 0.0
        %3804 = vmatpush2.msra.mxu0 0.0
        %3805 = vmatprep.subr.mxu0 0.0
        %3806 = vmatpush2.msra.mxu0 0.0
        %3807 = vmatprep.mubr.f32.mxu0 0.0
        %v3808 = vand.u32 %v3587, 4294901760
        %v3809 = vsub.f32 %v3587, %v3808
        %3810 = vmatmul.mubr.f32.gmra.mxu0 %v3809
        %v3811 = vpop.f32.mrf.mxu0
        %v3812 = vadd.f32 %v3738, %v3811
        %v3813 = vpop.f32.mrf.mxu0
        %3814 = vdwg.mxu0
        %3815 = vmatprep.subr.mxu0 0.0
        %3816 = vmatpush1.msra.mxu0 0.0
        %3817 = vmatprep.subr.mxu0 0.0
        %3818 = vmatpush1.msra.mxu0 0.0
        %3819 = vmatprep.subr.mxu0 0.0
        %3820 = vmatpush1.msra.mxu0 0.0
        %3821 = vmatprep.subr.mxu0 0.0
        %3822 = vmatpush1.msra.mxu0 0.0
        %3823 = vmatprep.subr.mxu0 0.0
        %3824 = vmatpush1.msra.mxu0 0.0
        %3825 = vmatprep.subr.mxu0 0.0
        %3826 = vmatpush1.msra.mxu0 0.0
        %3827 = vmatprep.subr.mxu0 0.0
        %3828 = vmatpush1.msra.mxu0 0.0
        %3829 = vmatprep.subr.mxu0 0.0
        %3830 = vmatpush1.msra.mxu0 0.0
        %3831 = vmatprep.subr.mxu0 0.0
        %3832 = vmatpush1.msra.mxu0 0.0
        %3833 = vmatprep.subr.mxu0 0.0
        %3834 = vmatpush1.msra.mxu0 0.0
        %3835 = vmatprep.subr.mxu0 0.0
        %3836 = vmatpush1.msra.mxu0 0.0
        %3837 = vmatprep.subr.mxu0 0.0
        %3838 = vmatpush1.msra.mxu0 0.0
        %3839 = vmatprep.subr.mxu0 0.0
        %3840 = vmatpush1.msra.mxu0 0.0
        %3841 = vmatprep.subr.mxu0 0.0
        %3842 = vmatpush1.msra.mxu0 0.0
        %3843 = vmatprep.subr.mxu0 0.0
        %3844 = vmatpush1.msra.mxu0 0.0
        %3845 = vmatprep.subr.mxu0 0.0
        %v3846 = vand.u32 %v3584, 4294901760
        %3847 = vmatpush1.msra.mxu0 %v3846
        %3848 = vmatprep.subr.mxu0 0.0
        %3849 = vmatpush2.msra.mxu0 0.0
        %3850 = vmatprep.subr.mxu0 0.0
        %3851 = vmatpush2.msra.mxu0 0.0
        %3852 = vmatprep.subr.mxu0 0.0
        %3853 = vmatpush2.msra.mxu0 0.0
        %3854 = vmatprep.subr.mxu0 0.0
        %3855 = vmatpush2.msra.mxu0 0.0
        %3856 = vmatprep.subr.mxu0 0.0
        %3857 = vmatpush2.msra.mxu0 0.0
        %3858 = vmatprep.subr.mxu0 0.0
        %3859 = vmatpush2.msra.mxu0 0.0
        %3860 = vmatprep.subr.mxu0 0.0
        %3861 = vmatpush2.msra.mxu0 0.0
        %3862 = vmatprep.subr.mxu0 0.0
        %3863 = vmatpush2.msra.mxu0 0.0
        %3864 = vmatprep.subr.mxu0 0.0
        %3865 = vmatpush2.msra.mxu0 0.0
        %3866 = vmatprep.subr.mxu0 0.0
        %3867 = vmatpush2.msra.mxu0 0.0
        %3868 = vmatprep.subr.mxu0 0.0
        %3869 = vmatpush2.msra.mxu0 0.0
        %3870 = vmatprep.subr.mxu0 0.0
        %3871 = vmatpush2.msra.mxu0 0.0
        %3872 = vmatprep.subr.mxu0 0.0
        %3873 = vmatpush2.msra.mxu0 0.0
        %3874 = vmatprep.subr.mxu0 0.0
        %3875 = vmatpush2.msra.mxu0 0.0
        %3876 = vmatprep.subr.mxu0 0.0
        %3877 = vmatpush2.msra.mxu0 0.0
        %3878 = vmatprep.subr.mxu0 0.0
        %3879 = vmatpush2.msra.mxu0 0.0
        %3880 = vmatprep.mubr.f32.mxu0 0.0
        %v3881 = vand.u32 %v3587, 4294901760
        %v3882 = vsub.f32 %v3587, %v3881
        %v3883 = vand.u32 %v3882, 4294901760
        %3884 = vmatmul.mubr.f32.gmra.mxu0 %v3883
        %v3885 = vpop.f32.mrf.mxu0
        %v3886 = vadd.f32 %v3812, %v3885
        %v3887 = vpop.f32.mrf.mxu0
        %3888 = vdwg.mxu0
        %3889 = vmatprep.subr.mxu0 0.0
        %3890 = vmatpush1.msra.mxu0 0.0
        %3891 = vmatprep.subr.mxu0 0.0
        %3892 = vmatpush1.msra.mxu0 0.0
        %3893 = vmatprep.subr.mxu0 0.0
        %3894 = vmatpush1.msra.mxu0 0.0
        %3895 = vmatprep.subr.mxu0 0.0
        %3896 = vmatpush1.msra.mxu0 0.0
        %3897 = vmatprep.subr.mxu0 0.0
        %3898 = vmatpush1.msra.mxu0 0.0
        %3899 = vmatprep.subr.mxu0 0.0
        %3900 = vmatpush1.msra.mxu0 0.0
        %3901 = vmatprep.subr.mxu0 0.0
        %3902 = vmatpush1.msra.mxu0 0.0
        %3903 = vmatprep.subr.mxu0 0.0
        %3904 = vmatpush1.msra.mxu0 0.0
        %3905 = vmatprep.subr.mxu0 0.0
        %3906 = vmatpush1.msra.mxu0 0.0
        %3907 = vmatprep.subr.mxu0 0.0
        %3908 = vmatpush1.msra.mxu0 0.0
        %3909 = vmatprep.subr.mxu0 0.0
        %3910 = vmatpush1.msra.mxu0 0.0
        %3911 = vmatprep.subr.mxu0 0.0
        %3912 = vmatpush1.msra.mxu0 0.0
        %3913 = vmatprep.subr.mxu0 0.0
        %3914 = vmatpush1.msra.mxu0 0.0
        %3915 = vmatprep.subr.mxu0 0.0
        %3916 = vmatpush1.msra.mxu0 0.0
        %3917 = vmatprep.subr.mxu0 0.0
        %3918 = vmatpush1.msra.mxu0 0.0
        %3919 = vmatprep.subr.mxu0 0.0
        %v3920 = vand.u32 %v3584, 4294901760
        %v3921 = vsub.f32 %v3584, %v3920
        %v3922 = vand.u32 %v3921, 4294901760
        %3923 = vmatpush1.msra.mxu0 %v3922
        %3924 = vmatprep.subr.mxu0 0.0
        %3925 = vmatpush2.msra.mxu0 0.0
        %3926 = vmatprep.subr.mxu0 0.0
        %3927 = vmatpush2.msra.mxu0 0.0
        %3928 = vmatprep.subr.mxu0 0.0
        %3929 = vmatpush2.msra.mxu0 0.0
        %3930 = vmatprep.subr.mxu0 0.0
        %3931 = vmatpush2.msra.mxu0 0.0
        %3932 = vmatprep.subr.mxu0 0.0
        %3933 = vmatpush2.msra.mxu0 0.0
        %3934 = vmatprep.subr.mxu0 0.0
        %3935 = vmatpush2.msra.mxu0 0.0
        %3936 = vmatprep.subr.mxu0 0.0
        %3937 = vmatpush2.msra.mxu0 0.0
        %3938 = vmatprep.subr.mxu0 0.0
        %3939 = vmatpush2.msra.mxu0 0.0
        %3940 = vmatprep.subr.mxu0 0.0
        %3941 = vmatpush2.msra.mxu0 0.0
        %3942 = vmatprep.subr.mxu0 0.0
        %3943 = vmatpush2.msra.mxu0 0.0
        %3944 = vmatprep.subr.mxu0 0.0
        %3945 = vmatpush2.msra.mxu0 0.0
        %3946 = vmatprep.subr.mxu0 0.0
        %3947 = vmatpush2.msra.mxu0 0.0
        %3948 = vmatprep.subr.mxu0 0.0
        %3949 = vmatpush2.msra.mxu0 0.0
        %3950 = vmatprep.subr.mxu0 0.0
        %3951 = vmatpush2.msra.mxu0 0.0
        %3952 = vmatprep.subr.mxu0 0.0
        %3953 = vmatpush2.msra.mxu0 0.0
        %3954 = vmatprep.subr.mxu0 0.0
        %3955 = vmatpush2.msra.mxu0 0.0
        %3956 = vmatprep.mubr.f32.mxu0 0.0
        %v3957 = vand.u32 %v3587, 4294901760
        %3958 = vmatmul.mubr.f32.gmra.mxu0 %v3957
        %v3959 = vpop.f32.mrf.mxu0
        %v3960 = vadd.f32 %v3886, %v3959
        %v3961 = vpop.f32.mrf.mxu0
        %3962 = vdwg.mxu0
        %3963 = vmatprep.subr.mxu0 0.0
        %3964 = vmatpush1.msra.mxu0 0.0
        %3965 = vmatprep.subr.mxu0 0.0
        %3966 = vmatpush1.msra.mxu0 0.0
        %3967 = vmatprep.subr.mxu0 0.0
        %3968 = vmatpush1.msra.mxu0 0.0
        %3969 = vmatprep.subr.mxu0 0.0
        %3970 = vmatpush1.msra.mxu0 0.0
        %3971 = vmatprep.subr.mxu0 0.0
        %3972 = vmatpush1.msra.mxu0 0.0
        %3973 = vmatprep.subr.mxu0 0.0
        %3974 = vmatpush1.msra.mxu0 0.0
        %3975 = vmatprep.subr.mxu0 0.0
        %3976 = vmatpush1.msra.mxu0 0.0
        %3977 = vmatprep.subr.mxu0 0.0
        %3978 = vmatpush1.msra.mxu0 0.0
        %3979 = vmatprep.subr.mxu0 0.0
        %3980 = vmatpush1.msra.mxu0 0.0
        %3981 = vmatprep.subr.mxu0 0.0
        %3982 = vmatpush1.msra.mxu0 0.0
        %3983 = vmatprep.subr.mxu0 0.0
        %3984 = vmatpush1.msra.mxu0 0.0
        %3985 = vmatprep.subr.mxu0 0.0
        %3986 = vmatpush1.msra.mxu0 0.0
        %3987 = vmatprep.subr.mxu0 0.0
        %3988 = vmatpush1.msra.mxu0 0.0
        %3989 = vmatprep.subr.mxu0 0.0
        %3990 = vmatpush1.msra.mxu0 0.0
        %3991 = vmatprep.subr.mxu0 0.0
        %3992 = vmatpush1.msra.mxu0 0.0
        %3993 = vmatprep.subr.mxu0 0.0
        %v3994 = vand.u32 %v3584, 4294901760
        %3995 = vmatpush1.msra.mxu0 %v3994
        %3996 = vmatprep.subr.mxu0 0.0
        %3997 = vmatpush2.msra.mxu0 0.0
        %3998 = vmatprep.subr.mxu0 0.0
        %3999 = vmatpush2.msra.mxu0 0.0
        %4000 = vmatprep.subr.mxu0 0.0
        %4001 = vmatpush2.msra.mxu0 0.0
        %4002 = vmatprep.subr.mxu0 0.0
        %4003 = vmatpush2.msra.mxu0 0.0
        %4004 = vmatprep.subr.mxu0 0.0
        %4005 = vmatpush2.msra.mxu0 0.0
        %4006 = vmatprep.subr.mxu0 0.0
        %4007 = vmatpush2.msra.mxu0 0.0
        %4008 = vmatprep.subr.mxu0 0.0
        %4009 = vmatpush2.msra.mxu0 0.0
        %4010 = vmatprep.subr.mxu0 0.0
        %4011 = vmatpush2.msra.mxu0 0.0
        %4012 = vmatprep.subr.mxu0 0.0
        %4013 = vmatpush2.msra.mxu0 0.0
        %4014 = vmatprep.subr.mxu0 0.0
        %4015 = vmatpush2.msra.mxu0 0.0
        %4016 = vmatprep.subr.mxu0 0.0
        %4017 = vmatpush2.msra.mxu0 0.0
        %4018 = vmatprep.subr.mxu0 0.0
        %4019 = vmatpush2.msra.mxu0 0.0
        %4020 = vmatprep.subr.mxu0 0.0
        %4021 = vmatpush2.msra.mxu0 0.0
        %4022 = vmatprep.subr.mxu0 0.0
        %4023 = vmatpush2.msra.mxu0 0.0
        %4024 = vmatprep.subr.mxu0 0.0
        %4025 = vmatpush2.msra.mxu0 0.0
        %4026 = vmatprep.subr.mxu0 0.0
        %4027 = vmatpush2.msra.mxu0 0.0
        %4028 = vmatprep.mubr.f32.mxu0 0.0
        %v4029 = vand.u32 %v3587, 4294901760
        %4030 = vmatmul.mubr.f32.gmra.mxu0 %v4029
        %v4031 = vpop.f32.mrf.mxu0
        %v4032 = vadd.f32 %v3960, %v4031
        %v4033 = vpop.f32.mrf.mxu0
        %4034 = vdwg.mxu0
        %4036 = vrot.lane.b32.xlu0 %v4032, 8
        %v4037 = vpop.permute.xlu0 %4036
        %vm4039 = vcmask 130112
        %4040 = vst.msk [vmem:[#allocation2] sm:$0xff] %vm4039, %v4037
        %4041 = vrot.lane.b32.xlu0 %v1087, 112
        %v4042 = vpop.permute.xlu0 %4041
        %v4043 = vsel %vm2207, %v4042, 0
        %4045 = vmatprep.subr.mxu0 0.0
        %4046 = vmatpush1.msra.mxu0 0.0
        %4047 = vmatprep.subr.mxu0 0.0
        %4048 = vmatpush1.msra.mxu0 0.0
        %4049 = vmatprep.subr.mxu0 0.0
        %4050 = vmatpush1.msra.mxu0 0.0
        %4051 = vmatprep.subr.mxu0 0.0
        %4052 = vmatpush1.msra.mxu0 0.0
        %4053 = vmatprep.subr.mxu0 0.0
        %4054 = vmatpush1.msra.mxu0 0.0
        %4055 = vmatprep.subr.mxu0 0.0
        %4056 = vmatpush1.msra.mxu0 0.0
        %4057 = vmatprep.subr.mxu0 0.0
        %4058 = vmatpush1.msra.mxu0 0.0
        %4059 = vmatprep.subr.mxu0 0.0
        %4060 = vmatpush1.msra.mxu0 0.0
        %4061 = vmatprep.subr.mxu0 0.0
        %4062 = vmatpush1.msra.mxu0 0.0
        %4063 = vmatprep.subr.mxu0 0.0
        %4064 = vmatpush1.msra.mxu0 0.0
        %4065 = vmatprep.subr.mxu0 0.0
        %4066 = vmatpush1.msra.mxu0 0.0
        %4067 = vmatprep.subr.mxu0 0.0
        %4068 = vmatpush1.msra.mxu0 0.0
        %4069 = vmatprep.subr.mxu0 0.0
        %4070 = vmatpush1.msra.mxu0 0.0
        %4071 = vmatprep.subr.mxu0 0.0
        %4072 = vmatpush1.msra.mxu0 0.0
        %4073 = vmatprep.subr.mxu0 0.0
        %4074 = vmatpush1.msra.mxu0 0.0
        %4075 = vmatprep.subr.mxu0 0.0
        %v4076 = vand.u32 %v1698, 4294901760
        %4077 = vmatpush1.msra.mxu0 %v4076
        %4078 = vmatprep.subr.mxu0 0.0
        %4079 = vmatpush2.msra.mxu0 0.0
        %4080 = vmatprep.subr.mxu0 0.0
        %4081 = vmatpush2.msra.mxu0 0.0
        %4082 = vmatprep.subr.mxu0 0.0
        %4083 = vmatpush2.msra.mxu0 0.0
        %4084 = vmatprep.subr.mxu0 0.0
        %4085 = vmatpush2.msra.mxu0 0.0
        %4086 = vmatprep.subr.mxu0 0.0
        %4087 = vmatpush2.msra.mxu0 0.0
        %4088 = vmatprep.subr.mxu0 0.0
        %4089 = vmatpush2.msra.mxu0 0.0
        %4090 = vmatprep.subr.mxu0 0.0
        %4091 = vmatpush2.msra.mxu0 0.0
        %4092 = vmatprep.subr.mxu0 0.0
        %4093 = vmatpush2.msra.mxu0 0.0
        %4094 = vmatprep.subr.mxu0 0.0
        %4095 = vmatpush2.msra.mxu0 0.0
        %4096 = vmatprep.subr.mxu0 0.0
        %4097 = vmatpush2.msra.mxu0 0.0
        %4098 = vmatprep.subr.mxu0 0.0
        %4099 = vmatpush2.msra.mxu0 0.0
        %4100 = vmatprep.subr.mxu0 0.0
        %4101 = vmatpush2.msra.mxu0 0.0
        %4102 = vmatprep.subr.mxu0 0.0
        %4103 = vmatpush2.msra.mxu0 0.0
        %4104 = vmatprep.subr.mxu0 0.0
        %4105 = vmatpush2.msra.mxu0 0.0
        %4106 = vmatprep.subr.mxu0 0.0
        %4107 = vmatpush2.msra.mxu0 0.0
        %4108 = vmatprep.subr.mxu0 0.0
        %4109 = vmatpush2.msra.mxu0 0.0
        %4110 = vmatprep.mubr.f32.mxu0 0.0
        %v4111 = vand.u32 %v4043, 4294901760
        %v4112 = vsub.f32 %v4043, %v4111
        %v4113 = vand.u32 %v4112, 4294901760
        %v4114 = vsub.f32 %v4112, %v4113
        %v4115 = vand.u32 %v4114, 4294901760
        %4116 = vmatmul.mubr.f32.gmra.mxu0 %v4115
        %v4117 = vpop.f32.mrf.mxu0
        %v4118 = vadd.f32 0.0, %v4117
        %v4119 = vpop.f32.mrf.mxu0
        %4120 = vdwg.mxu0
        %4121 = vmatprep.subr.mxu0 0.0
        %4122 = vmatpush1.msra.mxu0 0.0
        %4123 = vmatprep.subr.mxu0 0.0
        %4124 = vmatpush1.msra.mxu0 0.0
        %4125 = vmatprep.subr.mxu0 0.0
        %4126 = vmatpush1.msra.mxu0 0.0
        %4127 = vmatprep.subr.mxu0 0.0
        %4128 = vmatpush1.msra.mxu0 0.0
        %4129 = vmatprep.subr.mxu0 0.0
        %4130 = vmatpush1.msra.mxu0 0.0
        %4131 = vmatprep.subr.mxu0 0.0
        %4132 = vmatpush1.msra.mxu0 0.0
        %4133 = vmatprep.subr.mxu0 0.0
        %4134 = vmatpush1.msra.mxu0 0.0
        %4135 = vmatprep.subr.mxu0 0.0
        %4136 = vmatpush1.msra.mxu0 0.0
        %4137 = vmatprep.subr.mxu0 0.0
        %4138 = vmatpush1.msra.mxu0 0.0
        %4139 = vmatprep.subr.mxu0 0.0
        %4140 = vmatpush1.msra.mxu0 0.0
        %4141 = vmatprep.subr.mxu0 0.0
        %4142 = vmatpush1.msra.mxu0 0.0
        %4143 = vmatprep.subr.mxu0 0.0
        %4144 = vmatpush1.msra.mxu0 0.0
        %4145 = vmatprep.subr.mxu0 0.0
        %4146 = vmatpush1.msra.mxu0 0.0
        %4147 = vmatprep.subr.mxu0 0.0
        %4148 = vmatpush1.msra.mxu0 0.0
        %4149 = vmatprep.subr.mxu0 0.0
        %4150 = vmatpush1.msra.mxu0 0.0
        %4151 = vmatprep.subr.mxu0 0.0
        %v4152 = vand.u32 %v1698, 4294901760
        %v4153 = vsub.f32 %v1698, %v4152
        %v4154 = vand.u32 %v4153, 4294901760
        %v4155 = vsub.f32 %v4153, %v4154
        %v4156 = vand.u32 %v4155, 4294901760
        %4157 = vmatpush1.msra.mxu0 %v4156
        %4158 = vmatprep.subr.mxu0 0.0
        %4159 = vmatpush2.msra.mxu0 0.0
        %4160 = vmatprep.subr.mxu0 0.0
        %4161 = vmatpush2.msra.mxu0 0.0
        %4162 = vmatprep.subr.mxu0 0.0
        %4163 = vmatpush2.msra.mxu0 0.0
        %4164 = vmatprep.subr.mxu0 0.0
        %4165 = vmatpush2.msra.mxu0 0.0
        %4166 = vmatprep.subr.mxu0 0.0
        %4167 = vmatpush2.msra.mxu0 0.0
        %4168 = vmatprep.subr.mxu0 0.0
        %4169 = vmatpush2.msra.mxu0 0.0
        %4170 = vmatprep.subr.mxu0 0.0
        %4171 = vmatpush2.msra.mxu0 0.0
        %4172 = vmatprep.subr.mxu0 0.0
        %4173 = vmatpush2.msra.mxu0 0.0
        %4174 = vmatprep.subr.mxu0 0.0
        %4175 = vmatpush2.msra.mxu0 0.0
        %4176 = vmatprep.subr.mxu0 0.0
        %4177 = vmatpush2.msra.mxu0 0.0
        %4178 = vmatprep.subr.mxu0 0.0
        %4179 = vmatpush2.msra.mxu0 0.0
        %4180 = vmatprep.subr.mxu0 0.0
        %4181 = vmatpush2.msra.mxu0 0.0
        %4182 = vmatprep.subr.mxu0 0.0
        %4183 = vmatpush2.msra.mxu0 0.0
        %4184 = vmatprep.subr.mxu0 0.0
        %4185 = vmatpush2.msra.mxu0 0.0
        %4186 = vmatprep.subr.mxu0 0.0
        %4187 = vmatpush2.msra.mxu0 0.0
        %4188 = vmatprep.subr.mxu0 0.0
        %4189 = vmatpush2.msra.mxu0 0.0
        %4190 = vmatprep.mubr.f32.mxu0 0.0
        %v4191 = vand.u32 %v4043, 4294901760
        %4192 = vmatmul.mubr.f32.gmra.mxu0 %v4191
        %v4193 = vpop.f32.mrf.mxu0
        %v4194 = vadd.f32 %v4118, %v4193
        %v4195 = vpop.f32.mrf.mxu0
        %4196 = vdwg.mxu0
        %4197 = vmatprep.subr.mxu0 0.0
        %4198 = vmatpush1.msra.mxu0 0.0
        %4199 = vmatprep.subr.mxu0 0.0
        %4200 = vmatpush1.msra.mxu0 0.0
        %4201 = vmatprep.subr.mxu0 0.0
        %4202 = vmatpush1.msra.mxu0 0.0
        %4203 = vmatprep.subr.mxu0 0.0
        %4204 = vmatpush1.msra.mxu0 0.0
        %4205 = vmatprep.subr.mxu0 0.0
        %4206 = vmatpush1.msra.mxu0 0.0
        %4207 = vmatprep.subr.mxu0 0.0
        %4208 = vmatpush1.msra.mxu0 0.0
        %4209 = vmatprep.subr.mxu0 0.0
        %4210 = vmatpush1.msra.mxu0 0.0
        %4211 = vmatprep.subr.mxu0 0.0
        %4212 = vmatpush1.msra.mxu0 0.0
        %4213 = vmatprep.subr.mxu0 0.0
        %4214 = vmatpush1.msra.mxu0 0.0
        %4215 = vmatprep.subr.mxu0 0.0
        %4216 = vmatpush1.msra.mxu0 0.0
        %4217 = vmatprep.subr.mxu0 0.0
        %4218 = vmatpush1.msra.mxu0 0.0
        %4219 = vmatprep.subr.mxu0 0.0
        %4220 = vmatpush1.msra.mxu0 0.0
        %4221 = vmatprep.subr.mxu0 0.0
        %4222 = vmatpush1.msra.mxu0 0.0
        %4223 = vmatprep.subr.mxu0 0.0
        %4224 = vmatpush1.msra.mxu0 0.0
        %4225 = vmatprep.subr.mxu0 0.0
        %4226 = vmatpush1.msra.mxu0 0.0
        %4227 = vmatprep.subr.mxu0 0.0
        %v4228 = vand.u32 %v1698, 4294901760
        %v4229 = vsub.f32 %v1698, %v4228
        %4230 = vmatpush1.msra.mxu0 %v4229
        %4231 = vmatprep.subr.mxu0 0.0
        %4232 = vmatpush2.msra.mxu0 0.0
        %4233 = vmatprep.subr.mxu0 0.0
        %4234 = vmatpush2.msra.mxu0 0.0
        %4235 = vmatprep.subr.mxu0 0.0
        %4236 = vmatpush2.msra.mxu0 0.0
        %4237 = vmatprep.subr.mxu0 0.0
        %4238 = vmatpush2.msra.mxu0 0.0
        %4239 = vmatprep.subr.mxu0 0.0
        %4240 = vmatpush2.msra.mxu0 0.0
        %4241 = vmatprep.subr.mxu0 0.0
        %4242 = vmatpush2.msra.mxu0 0.0
        %4243 = vmatprep.subr.mxu0 0.0
        %4244 = vmatpush2.msra.mxu0 0.0
        %4245 = vmatprep.subr.mxu0 0.0
        %4246 = vmatpush2.msra.mxu0 0.0
        %4247 = vmatprep.subr.mxu0 0.0
        %4248 = vmatpush2.msra.mxu0 0.0
        %4249 = vmatprep.subr.mxu0 0.0
        %4250 = vmatpush2.msra.mxu0 0.0
        %4251 = vmatprep.subr.mxu0 0.0
        %4252 = vmatpush2.msra.mxu0 0.0
        %4253 = vmatprep.subr.mxu0 0.0
        %4254 = vmatpush2.msra.mxu0 0.0
        %4255 = vmatprep.subr.mxu0 0.0
        %4256 = vmatpush2.msra.mxu0 0.0
        %4257 = vmatprep.subr.mxu0 0.0
        %4258 = vmatpush2.msra.mxu0 0.0
        %4259 = vmatprep.subr.mxu0 0.0
        %4260 = vmatpush2.msra.mxu0 0.0
        %4261 = vmatprep.subr.mxu0 0.0
        %4262 = vmatpush2.msra.mxu0 0.0
        %4263 = vmatprep.mubr.f32.mxu0 0.0
        %v4264 = vand.u32 %v4043, 4294901760
        %v4265 = vsub.f32 %v4043, %v4264
        %4266 = vmatmul.mubr.f32.gmra.mxu0 %v4265
        %v4267 = vpop.f32.mrf.mxu0
        %v4268 = vadd.f32 %v4194, %v4267
        %v4269 = vpop.f32.mrf.mxu0
        %4270 = vdwg.mxu0
        %4271 = vmatprep.subr.mxu0 0.0
        %4272 = vmatpush1.msra.mxu0 0.0
        %4273 = vmatprep.subr.mxu0 0.0
        %4274 = vmatpush1.msra.mxu0 0.0
        %4275 = vmatprep.subr.mxu0 0.0
        %4276 = vmatpush1.msra.mxu0 0.0
        %4277 = vmatprep.subr.mxu0 0.0
        %4278 = vmatpush1.msra.mxu0 0.0
        %4279 = vmatprep.subr.mxu0 0.0
        %4280 = vmatpush1.msra.mxu0 0.0
        %4281 = vmatprep.subr.mxu0 0.0
        %4282 = vmatpush1.msra.mxu0 0.0
        %4283 = vmatprep.subr.mxu0 0.0
        %4284 = vmatpush1.msra.mxu0 0.0
        %4285 = vmatprep.subr.mxu0 0.0
        %4286 = vmatpush1.msra.mxu0 0.0
        %4287 = vmatprep.subr.mxu0 0.0
        %4288 = vmatpush1.msra.mxu0 0.0
        %4289 = vmatprep.subr.mxu0 0.0
        %4290 = vmatpush1.msra.mxu0 0.0
        %4291 = vmatprep.subr.mxu0 0.0
        %4292 = vmatpush1.msra.mxu0 0.0
        %4293 = vmatprep.subr.mxu0 0.0
        %4294 = vmatpush1.msra.mxu0 0.0
        %4295 = vmatprep.subr.mxu0 0.0
        %4296 = vmatpush1.msra.mxu0 0.0
        %4297 = vmatprep.subr.mxu0 0.0
        %4298 = vmatpush1.msra.mxu0 0.0
        %4299 = vmatprep.subr.mxu0 0.0
        %4300 = vmatpush1.msra.mxu0 0.0
        %4301 = vmatprep.subr.mxu0 0.0
        %v4302 = vand.u32 %v1698, 4294901760
        %4303 = vmatpush1.msra.mxu0 %v4302
        %4304 = vmatprep.subr.mxu0 0.0
        %4305 = vmatpush2.msra.mxu0 0.0
        %4306 = vmatprep.subr.mxu0 0.0
        %4307 = vmatpush2.msra.mxu0 0.0
        %4308 = vmatprep.subr.mxu0 0.0
        %4309 = vmatpush2.msra.mxu0 0.0
        %4310 = vmatprep.subr.mxu0 0.0
        %4311 = vmatpush2.msra.mxu0 0.0
        %4312 = vmatprep.subr.mxu0 0.0
        %4313 = vmatpush2.msra.mxu0 0.0
        %4314 = vmatprep.subr.mxu0 0.0
        %4315 = vmatpush2.msra.mxu0 0.0
        %4316 = vmatprep.subr.mxu0 0.0
        %4317 = vmatpush2.msra.mxu0 0.0
        %4318 = vmatprep.subr.mxu0 0.0
        %4319 = vmatpush2.msra.mxu0 0.0
        %4320 = vmatprep.subr.mxu0 0.0
        %4321 = vmatpush2.msra.mxu0 0.0
        %4322 = vmatprep.subr.mxu0 0.0
        %4323 = vmatpush2.msra.mxu0 0.0
        %4324 = vmatprep.subr.mxu0 0.0
        %4325 = vmatpush2.msra.mxu0 0.0
        %4326 = vmatprep.subr.mxu0 0.0
        %4327 = vmatpush2.msra.mxu0 0.0
        %4328 = vmatprep.subr.mxu0 0.0
        %4329 = vmatpush2.msra.mxu0 0.0
        %4330 = vmatprep.subr.mxu0 0.0
        %4331 = vmatpush2.msra.mxu0 0.0
        %4332 = vmatprep.subr.mxu0 0.0
        %4333 = vmatpush2.msra.mxu0 0.0
        %4334 = vmatprep.subr.mxu0 0.0
        %4335 = vmatpush2.msra.mxu0 0.0
        %4336 = vmatprep.mubr.f32.mxu0 0.0
        %v4337 = vand.u32 %v4043, 4294901760
        %v4338 = vsub.f32 %v4043, %v4337
        %v4339 = vand.u32 %v4338, 4294901760
        %4340 = vmatmul.mubr.f32.gmra.mxu0 %v4339
        %v4341 = vpop.f32.mrf.mxu0
        %v4342 = vadd.f32 %v4268, %v4341
        %v4343 = vpop.f32.mrf.mxu0
        %4344 = vdwg.mxu0
        %4345 = vmatprep.subr.mxu0 0.0
        %4346 = vmatpush1.msra.mxu0 0.0
        %4347 = vmatprep.subr.mxu0 0.0
        %4348 = vmatpush1.msra.mxu0 0.0
        %4349 = vmatprep.subr.mxu0 0.0
        %4350 = vmatpush1.msra.mxu0 0.0
        %4351 = vmatprep.subr.mxu0 0.0
        %4352 = vmatpush1.msra.mxu0 0.0
        %4353 = vmatprep.subr.mxu0 0.0
        %4354 = vmatpush1.msra.mxu0 0.0
        %4355 = vmatprep.subr.mxu0 0.0
        %4356 = vmatpush1.msra.mxu0 0.0
        %4357 = vmatprep.subr.mxu0 0.0
        %4358 = vmatpush1.msra.mxu0 0.0
        %4359 = vmatprep.subr.mxu0 0.0
        %4360 = vmatpush1.msra.mxu0 0.0
        %4361 = vmatprep.subr.mxu0 0.0
        %4362 = vmatpush1.msra.mxu0 0.0
        %4363 = vmatprep.subr.mxu0 0.0
        %4364 = vmatpush1.msra.mxu0 0.0
        %4365 = vmatprep.subr.mxu0 0.0
        %4366 = vmatpush1.msra.mxu0 0.0
        %4367 = vmatprep.subr.mxu0 0.0
        %4368 = vmatpush1.msra.mxu0 0.0
        %4369 = vmatprep.subr.mxu0 0.0
        %4370 = vmatpush1.msra.mxu0 0.0
        %4371 = vmatprep.subr.mxu0 0.0
        %4372 = vmatpush1.msra.mxu0 0.0
        %4373 = vmatprep.subr.mxu0 0.0
        %4374 = vmatpush1.msra.mxu0 0.0
        %4375 = vmatprep.subr.mxu0 0.0
        %v4376 = vand.u32 %v1698, 4294901760
        %v4377 = vsub.f32 %v1698, %v4376
        %v4378 = vand.u32 %v4377, 4294901760
        %4379 = vmatpush1.msra.mxu0 %v4378
        %4380 = vmatprep.subr.mxu0 0.0
        %4381 = vmatpush2.msra.mxu0 0.0
        %4382 = vmatprep.subr.mxu0 0.0
        %4383 = vmatpush2.msra.mxu0 0.0
        %4384 = vmatprep.subr.mxu0 0.0
        %4385 = vmatpush2.msra.mxu0 0.0
        %4386 = vmatprep.subr.mxu0 0.0
        %4387 = vmatpush2.msra.mxu0 0.0
        %4388 = vmatprep.subr.mxu0 0.0
        %4389 = vmatpush2.msra.mxu0 0.0
        %4390 = vmatprep.subr.mxu0 0.0
        %4391 = vmatpush2.msra.mxu0 0.0
        %4392 = vmatprep.subr.mxu0 0.0
        %4393 = vmatpush2.msra.mxu0 0.0
        %4394 = vmatprep.subr.mxu0 0.0
        %4395 = vmatpush2.msra.mxu0 0.0
        %4396 = vmatprep.subr.mxu0 0.0
        %4397 = vmatpush2.msra.mxu0 0.0
        %4398 = vmatprep.subr.mxu0 0.0
        %4399 = vmatpush2.msra.mxu0 0.0
        %4400 = vmatprep.subr.mxu0 0.0
        %4401 = vmatpush2.msra.mxu0 0.0
        %4402 = vmatprep.subr.mxu0 0.0
        %4403 = vmatpush2.msra.mxu0 0.0
        %4404 = vmatprep.subr.mxu0 0.0
        %4405 = vmatpush2.msra.mxu0 0.0
        %4406 = vmatprep.subr.mxu0 0.0
        %4407 = vmatpush2.msra.mxu0 0.0
        %4408 = vmatprep.subr.mxu0 0.0
        %4409 = vmatpush2.msra.mxu0 0.0
        %4410 = vmatprep.subr.mxu0 0.0
        %4411 = vmatpush2.msra.mxu0 0.0
        %4412 = vmatprep.mubr.f32.mxu0 0.0
        %v4413 = vand.u32 %v4043, 4294901760
        %4414 = vmatmul.mubr.f32.gmra.mxu0 %v4413
        %v4415 = vpop.f32.mrf.mxu0
        %v4416 = vadd.f32 %v4342, %v4415
        %v4417 = vpop.f32.mrf.mxu0
        %4418 = vdwg.mxu0
        %4419 = vmatprep.subr.mxu0 0.0
        %4420 = vmatpush1.msra.mxu0 0.0
        %4421 = vmatprep.subr.mxu0 0.0
        %4422 = vmatpush1.msra.mxu0 0.0
        %4423 = vmatprep.subr.mxu0 0.0
        %4424 = vmatpush1.msra.mxu0 0.0
        %4425 = vmatprep.subr.mxu0 0.0
        %4426 = vmatpush1.msra.mxu0 0.0
        %4427 = vmatprep.subr.mxu0 0.0
        %4428 = vmatpush1.msra.mxu0 0.0
        %4429 = vmatprep.subr.mxu0 0.0
        %4430 = vmatpush1.msra.mxu0 0.0
        %4431 = vmatprep.subr.mxu0 0.0
        %4432 = vmatpush1.msra.mxu0 0.0
        %4433 = vmatprep.subr.mxu0 0.0
        %4434 = vmatpush1.msra.mxu0 0.0
        %4435 = vmatprep.subr.mxu0 0.0
        %4436 = vmatpush1.msra.mxu0 0.0
        %4437 = vmatprep.subr.mxu0 0.0
        %4438 = vmatpush1.msra.mxu0 0.0
        %4439 = vmatprep.subr.mxu0 0.0
        %4440 = vmatpush1.msra.mxu0 0.0
        %4441 = vmatprep.subr.mxu0 0.0
        %4442 = vmatpush1.msra.mxu0 0.0
        %4443 = vmatprep.subr.mxu0 0.0
        %4444 = vmatpush1.msra.mxu0 0.0
        %4445 = vmatprep.subr.mxu0 0.0
        %4446 = vmatpush1.msra.mxu0 0.0
        %4447 = vmatprep.subr.mxu0 0.0
        %4448 = vmatpush1.msra.mxu0 0.0
        %4449 = vmatprep.subr.mxu0 0.0
        %v4450 = vand.u32 %v1698, 4294901760
        %4451 = vmatpush1.msra.mxu0 %v4450
        %4452 = vmatprep.subr.mxu0 0.0
        %4453 = vmatpush2.msra.mxu0 0.0
        %4454 = vmatprep.subr.mxu0 0.0
        %4455 = vmatpush2.msra.mxu0 0.0
        %4456 = vmatprep.subr.mxu0 0.0
        %4457 = vmatpush2.msra.mxu0 0.0
        %4458 = vmatprep.subr.mxu0 0.0
        %4459 = vmatpush2.msra.mxu0 0.0
        %4460 = vmatprep.subr.mxu0 0.0
        %4461 = vmatpush2.msra.mxu0 0.0
        %4462 = vmatprep.subr.mxu0 0.0
        %4463 = vmatpush2.msra.mxu0 0.0
        %4464 = vmatprep.subr.mxu0 0.0
        %4465 = vmatpush2.msra.mxu0 0.0
        %4466 = vmatprep.subr.mxu0 0.0
        %4467 = vmatpush2.msra.mxu0 0.0
        %4468 = vmatprep.subr.mxu0 0.0
        %4469 = vmatpush2.msra.mxu0 0.0
        %4470 = vmatprep.subr.mxu0 0.0
        %4471 = vmatpush2.msra.mxu0 0.0
        %4472 = vmatprep.subr.mxu0 0.0
        %4473 = vmatpush2.msra.mxu0 0.0
        %4474 = vmatprep.subr.mxu0 0.0
        %4475 = vmatpush2.msra.mxu0 0.0
        %4476 = vmatprep.subr.mxu0 0.0
        %4477 = vmatpush2.msra.mxu0 0.0
        %4478 = vmatprep.subr.mxu0 0.0
        %4479 = vmatpush2.msra.mxu0 0.0
        %4480 = vmatprep.subr.mxu0 0.0
        %4481 = vmatpush2.msra.mxu0 0.0
        %4482 = vmatprep.subr.mxu0 0.0
        %4483 = vmatpush2.msra.mxu0 0.0
        %4484 = vmatprep.mubr.f32.mxu0 0.0
        %v4485 = vand.u32 %v4043, 4294901760
        %4486 = vmatmul.mubr.f32.gmra.mxu0 %v4485
        %v4487 = vpop.f32.mrf.mxu0
        %v4488 = vadd.f32 %v4416, %v4487
        %v4489 = vpop.f32.mrf.mxu0
        %4490 = vdwg.mxu0
        %v4491 = vsel %vm2207, %v4488, -inf
        %4492 = vmax.xlane.f32.xlu0 %v4491
        %v4493 = vpop.xlane.xlu0 %4492
        %v4494 = vsub.f32 %v4488, %v4493
        %v4495 = vmul.f32 %v4494, 1.442695
        %v4496 = vpow.pop %v4495
        %v4497 = vsel %vm2207, %v4496, 0.0
        %4498 = vadd.xlane.f32.xlu0 %v4497
        %v4499 = vpop.xlane.xlu0 %4498
        %v4500 = vrcp.pop %v4499
        %v4501 = vmul.f32 %v4496, %v4500
        %s4502 = scalar_lea.vmem %s567, 16 [#allocation13]
        %4503 = vst.msk [vmem:[%s4502] sm:$0xff] %vm2207, %v4501
        %4504 = vrot.lane.b32.xlu0 %v2204, 112
        %v4505 = vpop.permute.xlu0 %4504
        %v4508 = vsel %vm2207, %v4501, 0
        %4510 = vmatprep.subr.mxu0 0.0
        %4511 = vmatpush1.msra.mxu0 0.0
        %4512 = vmatprep.subr.mxu0 0.0
        %4513 = vmatpush1.msra.mxu0 0.0
        %4514 = vmatprep.subr.mxu0 0.0
        %4515 = vmatpush1.msra.mxu0 0.0
        %4516 = vmatprep.subr.mxu0 0.0
        %4517 = vmatpush1.msra.mxu0 0.0
        %4518 = vmatprep.subr.mxu0 0.0
        %4519 = vmatpush1.msra.mxu0 0.0
        %4520 = vmatprep.subr.mxu0 0.0
        %4521 = vmatpush1.msra.mxu0 0.0
        %4522 = vmatprep.subr.mxu0 0.0
        %4523 = vmatpush1.msra.mxu0 0.0
        %4524 = vmatprep.subr.mxu0 0.0
        %4525 = vmatpush1.msra.mxu0 0.0
        %4526 = vmatprep.subr.mxu0 0.0
        %4527 = vmatpush1.msra.mxu0 0.0
        %4528 = vmatprep.subr.mxu0 0.0
        %4529 = vmatpush1.msra.mxu0 0.0
        %4530 = vmatprep.subr.mxu0 0.0
        %4531 = vmatpush1.msra.mxu0 0.0
        %4532 = vmatprep.subr.mxu0 0.0
        %4533 = vmatpush1.msra.mxu0 0.0
        %4534 = vmatprep.subr.mxu0 0.0
        %4535 = vmatpush1.msra.mxu0 0.0
        %4536 = vmatprep.subr.mxu0 0.0
        %4537 = vmatpush1.msra.mxu0 0.0
        %4538 = vmatprep.subr.mxu0 0.0
        %4539 = vmatpush1.msra.mxu0 0.0
        %4540 = vmatprep.subr.mxu0 0.0
        %v4541 = vand.u32 %v4505, 4294901760
        %4542 = vmatpush1.msra.mxu0 %v4541
        %4543 = vmatprep.subr.mxu0 0.0
        %4544 = vmatpush2.msra.mxu0 0.0
        %4545 = vmatprep.subr.mxu0 0.0
        %4546 = vmatpush2.msra.mxu0 0.0
        %4547 = vmatprep.subr.mxu0 0.0
        %4548 = vmatpush2.msra.mxu0 0.0
        %4549 = vmatprep.subr.mxu0 0.0
        %4550 = vmatpush2.msra.mxu0 0.0
        %4551 = vmatprep.subr.mxu0 0.0
        %4552 = vmatpush2.msra.mxu0 0.0
        %4553 = vmatprep.subr.mxu0 0.0
        %4554 = vmatpush2.msra.mxu0 0.0
        %4555 = vmatprep.subr.mxu0 0.0
        %4556 = vmatpush2.msra.mxu0 0.0
        %4557 = vmatprep.subr.mxu0 0.0
        %4558 = vmatpush2.msra.mxu0 0.0
        %4559 = vmatprep.subr.mxu0 0.0
        %4560 = vmatpush2.msra.mxu0 0.0
        %4561 = vmatprep.subr.mxu0 0.0
        %4562 = vmatpush2.msra.mxu0 0.0
        %4563 = vmatprep.subr.mxu0 0.0
        %4564 = vmatpush2.msra.mxu0 0.0
        %4565 = vmatprep.subr.mxu0 0.0
        %4566 = vmatpush2.msra.mxu0 0.0
        %4567 = vmatprep.subr.mxu0 0.0
        %4568 = vmatpush2.msra.mxu0 0.0
        %4569 = vmatprep.subr.mxu0 0.0
        %4570 = vmatpush2.msra.mxu0 0.0
        %4571 = vmatprep.subr.mxu0 0.0
        %4572 = vmatpush2.msra.mxu0 0.0
        %4573 = vmatprep.subr.mxu0 0.0
        %4574 = vmatpush2.msra.mxu0 0.0
        %4575 = vmatprep.mubr.f32.mxu0 0.0
        %v4576 = vand.u32 %v4508, 4294901760
        %v4577 = vsub.f32 %v4508, %v4576
        %v4578 = vand.u32 %v4577, 4294901760
        %v4579 = vsub.f32 %v4577, %v4578
        %v4580 = vand.u32 %v4579, 4294901760
        %4581 = vmatmul.mubr.f32.gmra.mxu0 %v4580
        %v4582 = vpop.f32.mrf.mxu0
        %v4583 = vadd.f32 0.0, %v4582
        %v4584 = vpop.f32.mrf.mxu0
        %4585 = vdwg.mxu0
        %4586 = vmatprep.subr.mxu0 0.0
        %4587 = vmatpush1.msra.mxu0 0.0
        %4588 = vmatprep.subr.mxu0 0.0
        %4589 = vmatpush1.msra.mxu0 0.0
        %4590 = vmatprep.subr.mxu0 0.0
        %4591 = vmatpush1.msra.mxu0 0.0
        %4592 = vmatprep.subr.mxu0 0.0
        %4593 = vmatpush1.msra.mxu0 0.0
        %4594 = vmatprep.subr.mxu0 0.0
        %4595 = vmatpush1.msra.mxu0 0.0
        %4596 = vmatprep.subr.mxu0 0.0
        %4597 = vmatpush1.msra.mxu0 0.0
        %4598 = vmatprep.subr.mxu0 0.0
        %4599 = vmatpush1.msra.mxu0 0.0
        %4600 = vmatprep.subr.mxu0 0.0
        %4601 = vmatpush1.msra.mxu0 0.0
        %4602 = vmatprep.subr.mxu0 0.0
        %4603 = vmatpush1.msra.mxu0 0.0
        %4604 = vmatprep.subr.mxu0 0.0
        %4605 = vmatpush1.msra.mxu0 0.0
        %4606 = vmatprep.subr.mxu0 0.0
        %4607 = vmatpush1.msra.mxu0 0.0
        %4608 = vmatprep.subr.mxu0 0.0
        %4609 = vmatpush1.msra.mxu0 0.0
        %4610 = vmatprep.subr.mxu0 0.0
        %4611 = vmatpush1.msra.mxu0 0.0
        %4612 = vmatprep.subr.mxu0 0.0
        %4613 = vmatpush1.msra.mxu0 0.0
        %4614 = vmatprep.subr.mxu0 0.0
        %4615 = vmatpush1.msra.mxu0 0.0
        %4616 = vmatprep.subr.mxu0 0.0
        %v4617 = vand.u32 %v4505, 4294901760
        %v4618 = vsub.f32 %v4505, %v4617
        %v4619 = vand.u32 %v4618, 4294901760
        %v4620 = vsub.f32 %v4618, %v4619
        %v4621 = vand.u32 %v4620, 4294901760
        %4622 = vmatpush1.msra.mxu0 %v4621
        %4623 = vmatprep.subr.mxu0 0.0
        %4624 = vmatpush2.msra.mxu0 0.0
        %4625 = vmatprep.subr.mxu0 0.0
        %4626 = vmatpush2.msra.mxu0 0.0
        %4627 = vmatprep.subr.mxu0 0.0
        %4628 = vmatpush2.msra.mxu0 0.0
        %4629 = vmatprep.subr.mxu0 0.0
        %4630 = vmatpush2.msra.mxu0 0.0
        %4631 = vmatprep.subr.mxu0 0.0
        %4632 = vmatpush2.msra.mxu0 0.0
        %4633 = vmatprep.subr.mxu0 0.0
        %4634 = vmatpush2.msra.mxu0 0.0
        %4635 = vmatprep.subr.mxu0 0.0
        %4636 = vmatpush2.msra.mxu0 0.0
        %4637 = vmatprep.subr.mxu0 0.0
        %4638 = vmatpush2.msra.mxu0 0.0
        %4639 = vmatprep.subr.mxu0 0.0
        %4640 = vmatpush2.msra.mxu0 0.0
        %4641 = vmatprep.subr.mxu0 0.0
        %4642 = vmatpush2.msra.mxu0 0.0
        %4643 = vmatprep.subr.mxu0 0.0
        %4644 = vmatpush2.msra.mxu0 0.0
        %4645 = vmatprep.subr.mxu0 0.0
        %4646 = vmatpush2.msra.mxu0 0.0
        %4647 = vmatprep.subr.mxu0 0.0
        %4648 = vmatpush2.msra.mxu0 0.0
        %4649 = vmatprep.subr.mxu0 0.0
        %4650 = vmatpush2.msra.mxu0 0.0
        %4651 = vmatprep.subr.mxu0 0.0
        %4652 = vmatpush2.msra.mxu0 0.0
        %4653 = vmatprep.subr.mxu0 0.0
        %4654 = vmatpush2.msra.mxu0 0.0
        %4655 = vmatprep.mubr.f32.mxu0 0.0
        %v4656 = vand.u32 %v4508, 4294901760
        %4657 = vmatmul.mubr.f32.gmra.mxu0 %v4656
        %v4658 = vpop.f32.mrf.mxu0
        %v4659 = vadd.f32 %v4583, %v4658
        %v4660 = vpop.f32.mrf.mxu0
        %4661 = vdwg.mxu0
        %4662 = vmatprep.subr.mxu0 0.0
        %4663 = vmatpush1.msra.mxu0 0.0
        %4664 = vmatprep.subr.mxu0 0.0
        %4665 = vmatpush1.msra.mxu0 0.0
        %4666 = vmatprep.subr.mxu0 0.0
        %4667 = vmatpush1.msra.mxu0 0.0
        %4668 = vmatprep.subr.mxu0 0.0
        %4669 = vmatpush1.msra.mxu0 0.0
        %4670 = vmatprep.subr.mxu0 0.0
        %4671 = vmatpush1.msra.mxu0 0.0
        %4672 = vmatprep.subr.mxu0 0.0
        %4673 = vmatpush1.msra.mxu0 0.0
        %4674 = vmatprep.subr.mxu0 0.0
        %4675 = vmatpush1.msra.mxu0 0.0
        %4676 = vmatprep.subr.mxu0 0.0
        %4677 = vmatpush1.msra.mxu0 0.0
        %4678 = vmatprep.subr.mxu0 0.0
        %4679 = vmatpush1.msra.mxu0 0.0
        %4680 = vmatprep.subr.mxu0 0.0
        %4681 = vmatpush1.msra.mxu0 0.0
        %4682 = vmatprep.subr.mxu0 0.0
        %4683 = vmatpush1.msra.mxu0 0.0
        %4684 = vmatprep.subr.mxu0 0.0
        %4685 = vmatpush1.msra.mxu0 0.0
        %4686 = vmatprep.subr.mxu0 0.0
        %4687 = vmatpush1.msra.mxu0 0.0
        %4688 = vmatprep.subr.mxu0 0.0
        %4689 = vmatpush1.msra.mxu0 0.0
        %4690 = vmatprep.subr.mxu0 0.0
        %4691 = vmatpush1.msra.mxu0 0.0
        %4692 = vmatprep.subr.mxu0 0.0
        %v4693 = vand.u32 %v4505, 4294901760
        %v4694 = vsub.f32 %v4505, %v4693
        %4695 = vmatpush1.msra.mxu0 %v4694
        %4696 = vmatprep.subr.mxu0 0.0
        %4697 = vmatpush2.msra.mxu0 0.0
        %4698 = vmatprep.subr.mxu0 0.0
        %4699 = vmatpush2.msra.mxu0 0.0
        %4700 = vmatprep.subr.mxu0 0.0
        %4701 = vmatpush2.msra.mxu0 0.0
        %4702 = vmatprep.subr.mxu0 0.0
        %4703 = vmatpush2.msra.mxu0 0.0
        %4704 = vmatprep.subr.mxu0 0.0
        %4705 = vmatpush2.msra.mxu0 0.0
        %4706 = vmatprep.subr.mxu0 0.0
        %4707 = vmatpush2.msra.mxu0 0.0
        %4708 = vmatprep.subr.mxu0 0.0
        %4709 = vmatpush2.msra.mxu0 0.0
        %4710 = vmatprep.subr.mxu0 0.0
        %4711 = vmatpush2.msra.mxu0 0.0
        %4712 = vmatprep.subr.mxu0 0.0
        %4713 = vmatpush2.msra.mxu0 0.0
        %4714 = vmatprep.subr.mxu0 0.0
        %4715 = vmatpush2.msra.mxu0 0.0
        %4716 = vmatprep.subr.mxu0 0.0
        %4717 = vmatpush2.msra.mxu0 0.0
        %4718 = vmatprep.subr.mxu0 0.0
        %4719 = vmatpush2.msra.mxu0 0.0
        %4720 = vmatprep.subr.mxu0 0.0
        %4721 = vmatpush2.msra.mxu0 0.0
        %4722 = vmatprep.subr.mxu0 0.0
        %4723 = vmatpush2.msra.mxu0 0.0
        %4724 = vmatprep.subr.mxu0 0.0
        %4725 = vmatpush2.msra.mxu0 0.0
        %4726 = vmatprep.subr.mxu0 0.0
        %4727 = vmatpush2.msra.mxu0 0.0
        %4728 = vmatprep.mubr.f32.mxu0 0.0
        %v4729 = vand.u32 %v4508, 4294901760
        %v4730 = vsub.f32 %v4508, %v4729
        %4731 = vmatmul.mubr.f32.gmra.mxu0 %v4730
        %v4732 = vpop.f32.mrf.mxu0
        %v4733 = vadd.f32 %v4659, %v4732
        %v4734 = vpop.f32.mrf.mxu0
        %4735 = vdwg.mxu0
        %4736 = vmatprep.subr.mxu0 0.0
        %4737 = vmatpush1.msra.mxu0 0.0
        %4738 = vmatprep.subr.mxu0 0.0
        %4739 = vmatpush1.msra.mxu0 0.0
        %4740 = vmatprep.subr.mxu0 0.0
        %4741 = vmatpush1.msra.mxu0 0.0
        %4742 = vmatprep.subr.mxu0 0.0
        %4743 = vmatpush1.msra.mxu0 0.0
        %4744 = vmatprep.subr.mxu0 0.0
        %4745 = vmatpush1.msra.mxu0 0.0
        %4746 = vmatprep.subr.mxu0 0.0
        %4747 = vmatpush1.msra.mxu0 0.0
        %4748 = vmatprep.subr.mxu0 0.0
        %4749 = vmatpush1.msra.mxu0 0.0
        %4750 = vmatprep.subr.mxu0 0.0
        %4751 = vmatpush1.msra.mxu0 0.0
        %4752 = vmatprep.subr.mxu0 0.0
        %4753 = vmatpush1.msra.mxu0 0.0
        %4754 = vmatprep.subr.mxu0 0.0
        %4755 = vmatpush1.msra.mxu0 0.0
        %4756 = vmatprep.subr.mxu0 0.0
        %4757 = vmatpush1.msra.mxu0 0.0
        %4758 = vmatprep.subr.mxu0 0.0
        %4759 = vmatpush1.msra.mxu0 0.0
        %4760 = vmatprep.subr.mxu0 0.0
        %4761 = vmatpush1.msra.mxu0 0.0
        %4762 = vmatprep.subr.mxu0 0.0
        %4763 = vmatpush1.msra.mxu0 0.0
        %4764 = vmatprep.subr.mxu0 0.0
        %4765 = vmatpush1.msra.mxu0 0.0
        %4766 = vmatprep.subr.mxu0 0.0
        %v4767 = vand.u32 %v4505, 4294901760
        %4768 = vmatpush1.msra.mxu0 %v4767
        %4769 = vmatprep.subr.mxu0 0.0
        %4770 = vmatpush2.msra.mxu0 0.0
        %4771 = vmatprep.subr.mxu0 0.0
        %4772 = vmatpush2.msra.mxu0 0.0
        %4773 = vmatprep.subr.mxu0 0.0
        %4774 = vmatpush2.msra.mxu0 0.0
        %4775 = vmatprep.subr.mxu0 0.0
        %4776 = vmatpush2.msra.mxu0 0.0
        %4777 = vmatprep.subr.mxu0 0.0
        %4778 = vmatpush2.msra.mxu0 0.0
        %4779 = vmatprep.subr.mxu0 0.0
        %4780 = vmatpush2.msra.mxu0 0.0
        %4781 = vmatprep.subr.mxu0 0.0
        %4782 = vmatpush2.msra.mxu0 0.0
        %4783 = vmatprep.subr.mxu0 0.0
        %4784 = vmatpush2.msra.mxu0 0.0
        %4785 = vmatprep.subr.mxu0 0.0
        %4786 = vmatpush2.msra.mxu0 0.0
        %4787 = vmatprep.subr.mxu0 0.0
        %4788 = vmatpush2.msra.mxu0 0.0
        %4789 = vmatprep.subr.mxu0 0.0
        %4790 = vmatpush2.msra.mxu0 0.0
        %4791 = vmatprep.subr.mxu0 0.0
        %4792 = vmatpush2.msra.mxu0 0.0
        %4793 = vmatprep.subr.mxu0 0.0
        %4794 = vmatpush2.msra.mxu0 0.0
        %4795 = vmatprep.subr.mxu0 0.0
        %4796 = vmatpush2.msra.mxu0 0.0
        %4797 = vmatprep.subr.mxu0 0.0
        %4798 = vmatpush2.msra.mxu0 0.0
        %4799 = vmatprep.subr.mxu0 0.0
        %4800 = vmatpush2.msra.mxu0 0.0
        %4801 = vmatprep.mubr.f32.mxu0 0.0
        %v4802 = vand.u32 %v4508, 4294901760
        %v4803 = vsub.f32 %v4508, %v4802
        %v4804 = vand.u32 %v4803, 4294901760
        %4805 = vmatmul.mubr.f32.gmra.mxu0 %v4804
        %v4806 = vpop.f32.mrf.mxu0
        %v4807 = vadd.f32 %v4733, %v4806
        %v4808 = vpop.f32.mrf.mxu0
        %4809 = vdwg.mxu0
        %4810 = vmatprep.subr.mxu0 0.0
        %4811 = vmatpush1.msra.mxu0 0.0
        %4812 = vmatprep.subr.mxu0 0.0
        %4813 = vmatpush1.msra.mxu0 0.0
        %4814 = vmatprep.subr.mxu0 0.0
        %4815 = vmatpush1.msra.mxu0 0.0
        %4816 = vmatprep.subr.mxu0 0.0
        %4817 = vmatpush1.msra.mxu0 0.0
        %4818 = vmatprep.subr.mxu0 0.0
        %4819 = vmatpush1.msra.mxu0 0.0
        %4820 = vmatprep.subr.mxu0 0.0
        %4821 = vmatpush1.msra.mxu0 0.0
        %4822 = vmatprep.subr.mxu0 0.0
        %4823 = vmatpush1.msra.mxu0 0.0
        %4824 = vmatprep.subr.mxu0 0.0
        %4825 = vmatpush1.msra.mxu0 0.0
        %4826 = vmatprep.subr.mxu0 0.0
        %4827 = vmatpush1.msra.mxu0 0.0
        %4828 = vmatprep.subr.mxu0 0.0
        %4829 = vmatpush1.msra.mxu0 0.0
        %4830 = vmatprep.subr.mxu0 0.0
        %4831 = vmatpush1.msra.mxu0 0.0
        %4832 = vmatprep.subr.mxu0 0.0
        %4833 = vmatpush1.msra.mxu0 0.0
        %4834 = vmatprep.subr.mxu0 0.0
        %4835 = vmatpush1.msra.mxu0 0.0
        %4836 = vmatprep.subr.mxu0 0.0
        %4837 = vmatpush1.msra.mxu0 0.0
        %4838 = vmatprep.subr.mxu0 0.0
        %4839 = vmatpush1.msra.mxu0 0.0
        %4840 = vmatprep.subr.mxu0 0.0
        %v4841 = vand.u32 %v4505, 4294901760
        %v4842 = vsub.f32 %v4505, %v4841
        %v4843 = vand.u32 %v4842, 4294901760
        %4844 = vmatpush1.msra.mxu0 %v4843
        %4845 = vmatprep.subr.mxu0 0.0
        %4846 = vmatpush2.msra.mxu0 0.0
        %4847 = vmatprep.subr.mxu0 0.0
        %4848 = vmatpush2.msra.mxu0 0.0
        %4849 = vmatprep.subr.mxu0 0.0
        %4850 = vmatpush2.msra.mxu0 0.0
        %4851 = vmatprep.subr.mxu0 0.0
        %4852 = vmatpush2.msra.mxu0 0.0
        %4853 = vmatprep.subr.mxu0 0.0
        %4854 = vmatpush2.msra.mxu0 0.0
        %4855 = vmatprep.subr.mxu0 0.0
        %4856 = vmatpush2.msra.mxu0 0.0
        %4857 = vmatprep.subr.mxu0 0.0
        %4858 = vmatpush2.msra.mxu0 0.0
        %4859 = vmatprep.subr.mxu0 0.0
        %4860 = vmatpush2.msra.mxu0 0.0
        %4861 = vmatprep.subr.mxu0 0.0
        %4862 = vmatpush2.msra.mxu0 0.0
        %4863 = vmatprep.subr.mxu0 0.0
        %4864 = vmatpush2.msra.mxu0 0.0
        %4865 = vmatprep.subr.mxu0 0.0
        %4866 = vmatpush2.msra.mxu0 0.0
        %4867 = vmatprep.subr.mxu0 0.0
        %4868 = vmatpush2.msra.mxu0 0.0
        %4869 = vmatprep.subr.mxu0 0.0
        %4870 = vmatpush2.msra.mxu0 0.0
        %4871 = vmatprep.subr.mxu0 0.0
        %4872 = vmatpush2.msra.mxu0 0.0
        %4873 = vmatprep.subr.mxu0 0.0
        %4874 = vmatpush2.msra.mxu0 0.0
        %4875 = vmatprep.subr.mxu0 0.0
        %4876 = vmatpush2.msra.mxu0 0.0
        %4877 = vmatprep.mubr.f32.mxu0 0.0
        %v4878 = vand.u32 %v4508, 4294901760
        %4879 = vmatmul.mubr.f32.gmra.mxu0 %v4878
        %v4880 = vpop.f32.mrf.mxu0
        %v4881 = vadd.f32 %v4807, %v4880
        %v4882 = vpop.f32.mrf.mxu0
        %4883 = vdwg.mxu0
        %4884 = vmatprep.subr.mxu0 0.0
        %4885 = vmatpush1.msra.mxu0 0.0
        %4886 = vmatprep.subr.mxu0 0.0
        %4887 = vmatpush1.msra.mxu0 0.0
        %4888 = vmatprep.subr.mxu0 0.0
        %4889 = vmatpush1.msra.mxu0 0.0
        %4890 = vmatprep.subr.mxu0 0.0
        %4891 = vmatpush1.msra.mxu0 0.0
        %4892 = vmatprep.subr.mxu0 0.0
        %4893 = vmatpush1.msra.mxu0 0.0
        %4894 = vmatprep.subr.mxu0 0.0
        %4895 = vmatpush1.msra.mxu0 0.0
        %4896 = vmatprep.subr.mxu0 0.0
        %4897 = vmatpush1.msra.mxu0 0.0
        %4898 = vmatprep.subr.mxu0 0.0
        %4899 = vmatpush1.msra.mxu0 0.0
        %4900 = vmatprep.subr.mxu0 0.0
        %4901 = vmatpush1.msra.mxu0 0.0
        %4902 = vmatprep.subr.mxu0 0.0
        %4903 = vmatpush1.msra.mxu0 0.0
        %4904 = vmatprep.subr.mxu0 0.0
        %4905 = vmatpush1.msra.mxu0 0.0
        %4906 = vmatprep.subr.mxu0 0.0
        %4907 = vmatpush1.msra.mxu0 0.0
        %4908 = vmatprep.subr.mxu0 0.0
        %4909 = vmatpush1.msra.mxu0 0.0
        %4910 = vmatprep.subr.mxu0 0.0
        %4911 = vmatpush1.msra.mxu0 0.0
        %4912 = vmatprep.subr.mxu0 0.0
        %4913 = vmatpush1.msra.mxu0 0.0
        %4914 = vmatprep.subr.mxu0 0.0
        %v4915 = vand.u32 %v4505, 4294901760
        %4916 = vmatpush1.msra.mxu0 %v4915
        %4917 = vmatprep.subr.mxu0 0.0
        %4918 = vmatpush2.msra.mxu0 0.0
        %4919 = vmatprep.subr.mxu0 0.0
        %4920 = vmatpush2.msra.mxu0 0.0
        %4921 = vmatprep.subr.mxu0 0.0
        %4922 = vmatpush2.msra.mxu0 0.0
        %4923 = vmatprep.subr.mxu0 0.0
        %4924 = vmatpush2.msra.mxu0 0.0
        %4925 = vmatprep.subr.mxu0 0.0
        %4926 = vmatpush2.msra.mxu0 0.0
        %4927 = vmatprep.subr.mxu0 0.0
        %4928 = vmatpush2.msra.mxu0 0.0
        %4929 = vmatprep.subr.mxu0 0.0
        %4930 = vmatpush2.msra.mxu0 0.0
        %4931 = vmatprep.subr.mxu0 0.0
        %4932 = vmatpush2.msra.mxu0 0.0
        %4933 = vmatprep.subr.mxu0 0.0
        %4934 = vmatpush2.msra.mxu0 0.0
        %4935 = vmatprep.subr.mxu0 0.0
        %4936 = vmatpush2.msra.mxu0 0.0
        %4937 = vmatprep.subr.mxu0 0.0
        %4938 = vmatpush2.msra.mxu0 0.0
        %4939 = vmatprep.subr.mxu0 0.0
        %4940 = vmatpush2.msra.mxu0 0.0
        %4941 = vmatprep.subr.mxu0 0.0
        %4942 = vmatpush2.msra.mxu0 0.0
        %4943 = vmatprep.subr.mxu0 0.0
        %4944 = vmatpush2.msra.mxu0 0.0
        %4945 = vmatprep.subr.mxu0 0.0
        %4946 = vmatpush2.msra.mxu0 0.0
        %4947 = vmatprep.subr.mxu0 0.0
        %4948 = vmatpush2.msra.mxu0 0.0
        %4949 = vmatprep.mubr.f32.mxu0 0.0
        %v4950 = vand.u32 %v4508, 4294901760
        %4951 = vmatmul.mubr.f32.gmra.mxu0 %v4950
        %v4952 = vpop.f32.mrf.mxu0
        %v4953 = vadd.f32 %v4881, %v4952
        %v4954 = vpop.f32.mrf.mxu0
        %4955 = vdwg.mxu0
        %4957 = vrot.lane.b32.xlu0 %v4953, 16
        %v4958 = vpop.permute.xlu0 %4957
        %vm4960 = vcmask 195712
        %4961 = vst.msk [vmem:[#allocation2] sm:$0xff] %vm4960, %v4958
        %4962 = vrot.lane.b32.xlu0 %v1087, 104
        %v4963 = vpop.permute.xlu0 %4962
        %v4964 = vsel %vm2207, %v4963, 0
        %4966 = vmatprep.subr.mxu0 0.0
        %4967 = vmatpush1.msra.mxu0 0.0
        %4968 = vmatprep.subr.mxu0 0.0
        %4969 = vmatpush1.msra.mxu0 0.0
        %4970 = vmatprep.subr.mxu0 0.0
        %4971 = vmatpush1.msra.mxu0 0.0
        %4972 = vmatprep.subr.mxu0 0.0
        %4973 = vmatpush1.msra.mxu0 0.0
        %4974 = vmatprep.subr.mxu0 0.0
        %4975 = vmatpush1.msra.mxu0 0.0
        %4976 = vmatprep.subr.mxu0 0.0
        %4977 = vmatpush1.msra.mxu0 0.0
        %4978 = vmatprep.subr.mxu0 0.0
        %4979 = vmatpush1.msra.mxu0 0.0
        %4980 = vmatprep.subr.mxu0 0.0
        %4981 = vmatpush1.msra.mxu0 0.0
        %4982 = vmatprep.subr.mxu0 0.0
        %4983 = vmatpush1.msra.mxu0 0.0
        %4984 = vmatprep.subr.mxu0 0.0
        %4985 = vmatpush1.msra.mxu0 0.0
        %4986 = vmatprep.subr.mxu0 0.0
        %4987 = vmatpush1.msra.mxu0 0.0
        %4988 = vmatprep.subr.mxu0 0.0
        %4989 = vmatpush1.msra.mxu0 0.0
        %4990 = vmatprep.subr.mxu0 0.0
        %4991 = vmatpush1.msra.mxu0 0.0
        %4992 = vmatprep.subr.mxu0 0.0
        %4993 = vmatpush1.msra.mxu0 0.0
        %4994 = vmatprep.subr.mxu0 0.0
        %4995 = vmatpush1.msra.mxu0 0.0
        %4996 = vmatprep.subr.mxu0 0.0
        %v4997 = vand.u32 %v1704, 4294901760
        %4998 = vmatpush1.msra.mxu0 %v4997
        %4999 = vmatprep.subr.mxu0 0.0
        %5000 = vmatpush2.msra.mxu0 0.0
        %5001 = vmatprep.subr.mxu0 0.0
        %5002 = vmatpush2.msra.mxu0 0.0
        %5003 = vmatprep.subr.mxu0 0.0
        %5004 = vmatpush2.msra.mxu0 0.0
        %5005 = vmatprep.subr.mxu0 0.0
        %5006 = vmatpush2.msra.mxu0 0.0
        %5007 = vmatprep.subr.mxu0 0.0
        %5008 = vmatpush2.msra.mxu0 0.0
        %5009 = vmatprep.subr.mxu0 0.0
        %5010 = vmatpush2.msra.mxu0 0.0
        %5011 = vmatprep.subr.mxu0 0.0
        %5012 = vmatpush2.msra.mxu0 0.0
        %5013 = vmatprep.subr.mxu0 0.0
        %5014 = vmatpush2.msra.mxu0 0.0
        %5015 = vmatprep.subr.mxu0 0.0
        %5016 = vmatpush2.msra.mxu0 0.0
        %5017 = vmatprep.subr.mxu0 0.0
        %5018 = vmatpush2.msra.mxu0 0.0
        %5019 = vmatprep.subr.mxu0 0.0
        %5020 = vmatpush2.msra.mxu0 0.0
        %5021 = vmatprep.subr.mxu0 0.0
        %5022 = vmatpush2.msra.mxu0 0.0
        %5023 = vmatprep.subr.mxu0 0.0
        %5024 = vmatpush2.msra.mxu0 0.0
        %5025 = vmatprep.subr.mxu0 0.0
        %5026 = vmatpush2.msra.mxu0 0.0
        %5027 = vmatprep.subr.mxu0 0.0
        %5028 = vmatpush2.msra.mxu0 0.0
        %5029 = vmatprep.subr.mxu0 0.0
        %5030 = vmatpush2.msra.mxu0 0.0
        %5031 = vmatprep.mubr.f32.mxu0 0.0
        %v5032 = vand.u32 %v4964, 4294901760
        %v5033 = vsub.f32 %v4964, %v5032
        %v5034 = vand.u32 %v5033, 4294901760
        %v5035 = vsub.f32 %v5033, %v5034
        %v5036 = vand.u32 %v5035, 4294901760
        %5037 = vmatmul.mubr.f32.gmra.mxu0 %v5036
        %v5038 = vpop.f32.mrf.mxu0
        %v5039 = vadd.f32 0.0, %v5038
        %v5040 = vpop.f32.mrf.mxu0
        %5041 = vdwg.mxu0
        %5042 = vmatprep.subr.mxu0 0.0
        %5043 = vmatpush1.msra.mxu0 0.0
        %5044 = vmatprep.subr.mxu0 0.0
        %5045 = vmatpush1.msra.mxu0 0.0
        %5046 = vmatprep.subr.mxu0 0.0
        %5047 = vmatpush1.msra.mxu0 0.0
        %5048 = vmatprep.subr.mxu0 0.0
        %5049 = vmatpush1.msra.mxu0 0.0
        %5050 = vmatprep.subr.mxu0 0.0
        %5051 = vmatpush1.msra.mxu0 0.0
        %5052 = vmatprep.subr.mxu0 0.0
        %5053 = vmatpush1.msra.mxu0 0.0
        %5054 = vmatprep.subr.mxu0 0.0
        %5055 = vmatpush1.msra.mxu0 0.0
        %5056 = vmatprep.subr.mxu0 0.0
        %5057 = vmatpush1.msra.mxu0 0.0
        %5058 = vmatprep.subr.mxu0 0.0
        %5059 = vmatpush1.msra.mxu0 0.0
        %5060 = vmatprep.subr.mxu0 0.0
        %5061 = vmatpush1.msra.mxu0 0.0
        %5062 = vmatprep.subr.mxu0 0.0
        %5063 = vmatpush1.msra.mxu0 0.0
        %5064 = vmatprep.subr.mxu0 0.0
        %5065 = vmatpush1.msra.mxu0 0.0
        %5066 = vmatprep.subr.mxu0 0.0
        %5067 = vmatpush1.msra.mxu0 0.0
        %5068 = vmatprep.subr.mxu0 0.0
        %5069 = vmatpush1.msra.mxu0 0.0
        %5070 = vmatprep.subr.mxu0 0.0
        %5071 = vmatpush1.msra.mxu0 0.0
        %5072 = vmatprep.subr.mxu0 0.0
        %v5073 = vand.u32 %v1704, 4294901760
        %v5074 = vsub.f32 %v1704, %v5073
        %v5075 = vand.u32 %v5074, 4294901760
        %v5076 = vsub.f32 %v5074, %v5075
        %v5077 = vand.u32 %v5076, 4294901760
        %5078 = vmatpush1.msra.mxu0 %v5077
        %5079 = vmatprep.subr.mxu0 0.0
        %5080 = vmatpush2.msra.mxu0 0.0
        %5081 = vmatprep.subr.mxu0 0.0
        %5082 = vmatpush2.msra.mxu0 0.0
        %5083 = vmatprep.subr.mxu0 0.0
        %5084 = vmatpush2.msra.mxu0 0.0
        %5085 = vmatprep.subr.mxu0 0.0
        %5086 = vmatpush2.msra.mxu0 0.0
        %5087 = vmatprep.subr.mxu0 0.0
        %5088 = vmatpush2.msra.mxu0 0.0
        %5089 = vmatprep.subr.mxu0 0.0
        %5090 = vmatpush2.msra.mxu0 0.0
        %5091 = vmatprep.subr.mxu0 0.0
        %5092 = vmatpush2.msra.mxu0 0.0
        %5093 = vmatprep.subr.mxu0 0.0
        %5094 = vmatpush2.msra.mxu0 0.0
        %5095 = vmatprep.subr.mxu0 0.0
        %5096 = vmatpush2.msra.mxu0 0.0
        %5097 = vmatprep.subr.mxu0 0.0
        %5098 = vmatpush2.msra.mxu0 0.0
        %5099 = vmatprep.subr.mxu0 0.0
        %5100 = vmatpush2.msra.mxu0 0.0
        %5101 = vmatprep.subr.mxu0 0.0
        %5102 = vmatpush2.msra.mxu0 0.0
        %5103 = vmatprep.subr.mxu0 0.0
        %5104 = vmatpush2.msra.mxu0 0.0
        %5105 = vmatprep.subr.mxu0 0.0
        %5106 = vmatpush2.msra.mxu0 0.0
        %5107 = vmatprep.subr.mxu0 0.0
        %5108 = vmatpush2.msra.mxu0 0.0
        %5109 = vmatprep.subr.mxu0 0.0
        %5110 = vmatpush2.msra.mxu0 0.0
        %5111 = vmatprep.mubr.f32.mxu0 0.0
        %v5112 = vand.u32 %v4964, 4294901760
        %5113 = vmatmul.mubr.f32.gmra.mxu0 %v5112
        %v5114 = vpop.f32.mrf.mxu0
        %v5115 = vadd.f32 %v5039, %v5114
        %v5116 = vpop.f32.mrf.mxu0
        %5117 = vdwg.mxu0
        %5118 = vmatprep.subr.mxu0 0.0
        %5119 = vmatpush1.msra.mxu0 0.0
        %5120 = vmatprep.subr.mxu0 0.0
        %5121 = vmatpush1.msra.mxu0 0.0
        %5122 = vmatprep.subr.mxu0 0.0
        %5123 = vmatpush1.msra.mxu0 0.0
        %5124 = vmatprep.subr.mxu0 0.0
        %5125 = vmatpush1.msra.mxu0 0.0
        %5126 = vmatprep.subr.mxu0 0.0
        %5127 = vmatpush1.msra.mxu0 0.0
        %5128 = vmatprep.subr.mxu0 0.0
        %5129 = vmatpush1.msra.mxu0 0.0
        %5130 = vmatprep.subr.mxu0 0.0
        %5131 = vmatpush1.msra.mxu0 0.0
        %5132 = vmatprep.subr.mxu0 0.0
        %5133 = vmatpush1.msra.mxu0 0.0
        %5134 = vmatprep.subr.mxu0 0.0
        %5135 = vmatpush1.msra.mxu0 0.0
        %5136 = vmatprep.subr.mxu0 0.0
        %5137 = vmatpush1.msra.mxu0 0.0
        %5138 = vmatprep.subr.mxu0 0.0
        %5139 = vmatpush1.msra.mxu0 0.0
        %5140 = vmatprep.subr.mxu0 0.0
        %5141 = vmatpush1.msra.mxu0 0.0
        %5142 = vmatprep.subr.mxu0 0.0
        %5143 = vmatpush1.msra.mxu0 0.0
        %5144 = vmatprep.subr.mxu0 0.0
        %5145 = vmatpush1.msra.mxu0 0.0
        %5146 = vmatprep.subr.mxu0 0.0
        %5147 = vmatpush1.msra.mxu0 0.0
        %5148 = vmatprep.subr.mxu0 0.0
        %v5149 = vand.u32 %v1704, 4294901760
        %v5150 = vsub.f32 %v1704, %v5149
        %5151 = vmatpush1.msra.mxu0 %v5150
        %5152 = vmatprep.subr.mxu0 0.0
        %5153 = vmatpush2.msra.mxu0 0.0
        %5154 = vmatprep.subr.mxu0 0.0
        %5155 = vmatpush2.msra.mxu0 0.0
        %5156 = vmatprep.subr.mxu0 0.0
        %5157 = vmatpush2.msra.mxu0 0.0
        %5158 = vmatprep.subr.mxu0 0.0
        %5159 = vmatpush2.msra.mxu0 0.0
        %5160 = vmatprep.subr.mxu0 0.0
        %5161 = vmatpush2.msra.mxu0 0.0
        %5162 = vmatprep.subr.mxu0 0.0
        %5163 = vmatpush2.msra.mxu0 0.0
        %5164 = vmatprep.subr.mxu0 0.0
        %5165 = vmatpush2.msra.mxu0 0.0
        %5166 = vmatprep.subr.mxu0 0.0
        %5167 = vmatpush2.msra.mxu0 0.0
        %5168 = vmatprep.subr.mxu0 0.0
        %5169 = vmatpush2.msra.mxu0 0.0
        %5170 = vmatprep.subr.mxu0 0.0
        %5171 = vmatpush2.msra.mxu0 0.0
        %5172 = vmatprep.subr.mxu0 0.0
        %5173 = vmatpush2.msra.mxu0 0.0
        %5174 = vmatprep.subr.mxu0 0.0
        %5175 = vmatpush2.msra.mxu0 0.0
        %5176 = vmatprep.subr.mxu0 0.0
        %5177 = vmatpush2.msra.mxu0 0.0
        %5178 = vmatprep.subr.mxu0 0.0
        %5179 = vmatpush2.msra.mxu0 0.0
        %5180 = vmatprep.subr.mxu0 0.0
        %5181 = vmatpush2.msra.mxu0 0.0
        %5182 = vmatprep.subr.mxu0 0.0
        %5183 = vmatpush2.msra.mxu0 0.0
        %5184 = vmatprep.mubr.f32.mxu0 0.0
        %v5185 = vand.u32 %v4964, 4294901760
        %v5186 = vsub.f32 %v4964, %v5185
        %5187 = vmatmul.mubr.f32.gmra.mxu0 %v5186
        %v5188 = vpop.f32.mrf.mxu0
        %v5189 = vadd.f32 %v5115, %v5188
        %v5190 = vpop.f32.mrf.mxu0
        %5191 = vdwg.mxu0
        %5192 = vmatprep.subr.mxu0 0.0
        %5193 = vmatpush1.msra.mxu0 0.0
        %5194 = vmatprep.subr.mxu0 0.0
        %5195 = vmatpush1.msra.mxu0 0.0
        %5196 = vmatprep.subr.mxu0 0.0
        %5197 = vmatpush1.msra.mxu0 0.0
        %5198 = vmatprep.subr.mxu0 0.0
        %5199 = vmatpush1.msra.mxu0 0.0
        %5200 = vmatprep.subr.mxu0 0.0
        %5201 = vmatpush1.msra.mxu0 0.0
        %5202 = vmatprep.subr.mxu0 0.0
        %5203 = vmatpush1.msra.mxu0 0.0
        %5204 = vmatprep.subr.mxu0 0.0
        %5205 = vmatpush1.msra.mxu0 0.0
        %5206 = vmatprep.subr.mxu0 0.0
        %5207 = vmatpush1.msra.mxu0 0.0
        %5208 = vmatprep.subr.mxu0 0.0
        %5209 = vmatpush1.msra.mxu0 0.0
        %5210 = vmatprep.subr.mxu0 0.0
        %5211 = vmatpush1.msra.mxu0 0.0
        %5212 = vmatprep.subr.mxu0 0.0
        %5213 = vmatpush1.msra.mxu0 0.0
        %5214 = vmatprep.subr.mxu0 0.0
        %5215 = vmatpush1.msra.mxu0 0.0
        %5216 = vmatprep.subr.mxu0 0.0
        %5217 = vmatpush1.msra.mxu0 0.0
        %5218 = vmatprep.subr.mxu0 0.0
        %5219 = vmatpush1.msra.mxu0 0.0
        %5220 = vmatprep.subr.mxu0 0.0
        %5221 = vmatpush1.msra.mxu0 0.0
        %5222 = vmatprep.subr.mxu0 0.0
        %v5223 = vand.u32 %v1704, 4294901760
        %5224 = vmatpush1.msra.mxu0 %v5223
        %5225 = vmatprep.subr.mxu0 0.0
        %5226 = vmatpush2.msra.mxu0 0.0
        %5227 = vmatprep.subr.mxu0 0.0
        %5228 = vmatpush2.msra.mxu0 0.0
        %5229 = vmatprep.subr.mxu0 0.0
        %5230 = vmatpush2.msra.mxu0 0.0
        %5231 = vmatprep.subr.mxu0 0.0
        %5232 = vmatpush2.msra.mxu0 0.0
        %5233 = vmatprep.subr.mxu0 0.0
        %5234 = vmatpush2.msra.mxu0 0.0
        %5235 = vmatprep.subr.mxu0 0.0
        %5236 = vmatpush2.msra.mxu0 0.0
        %5237 = vmatprep.subr.mxu0 0.0
        %5238 = vmatpush2.msra.mxu0 0.0
        %5239 = vmatprep.subr.mxu0 0.0
        %5240 = vmatpush2.msra.mxu0 0.0
        %5241 = vmatprep.subr.mxu0 0.0
        %5242 = vmatpush2.msra.mxu0 0.0
        %5243 = vmatprep.subr.mxu0 0.0
        %5244 = vmatpush2.msra.mxu0 0.0
        %5245 = vmatprep.subr.mxu0 0.0
        %5246 = vmatpush2.msra.mxu0 0.0
        %5247 = vmatprep.subr.mxu0 0.0
        %5248 = vmatpush2.msra.mxu0 0.0
        %5249 = vmatprep.subr.mxu0 0.0
        %5250 = vmatpush2.msra.mxu0 0.0
        %5251 = vmatprep.subr.mxu0 0.0
        %5252 = vmatpush2.msra.mxu0 0.0
        %5253 = vmatprep.subr.mxu0 0.0
        %5254 = vmatpush2.msra.mxu0 0.0
        %5255 = vmatprep.subr.mxu0 0.0
        %5256 = vmatpush2.msra.mxu0 0.0
        %5257 = vmatprep.mubr.f32.mxu0 0.0
        %v5258 = vand.u32 %v4964, 4294901760
        %v5259 = vsub.f32 %v4964, %v5258
        %v5260 = vand.u32 %v5259, 4294901760
        %5261 = vmatmul.mubr.f32.gmra.mxu0 %v5260
        %v5262 = vpop.f32.mrf.mxu0
        %v5263 = vadd.f32 %v5189, %v5262
        %v5264 = vpop.f32.mrf.mxu0
        %5265 = vdwg.mxu0
        %5266 = vmatprep.subr.mxu0 0.0
        %5267 = vmatpush1.msra.mxu0 0.0
        %5268 = vmatprep.subr.mxu0 0.0
        %5269 = vmatpush1.msra.mxu0 0.0
        %5270 = vmatprep.subr.mxu0 0.0
        %5271 = vmatpush1.msra.mxu0 0.0
        %5272 = vmatprep.subr.mxu0 0.0
        %5273 = vmatpush1.msra.mxu0 0.0
        %5274 = vmatprep.subr.mxu0 0.0
        %5275 = vmatpush1.msra.mxu0 0.0
        %5276 = vmatprep.subr.mxu0 0.0
        %5277 = vmatpush1.msra.mxu0 0.0
        %5278 = vmatprep.subr.mxu0 0.0
        %5279 = vmatpush1.msra.mxu0 0.0
        %5280 = vmatprep.subr.mxu0 0.0
        %5281 = vmatpush1.msra.mxu0 0.0
        %5282 = vmatprep.subr.mxu0 0.0
        %5283 = vmatpush1.msra.mxu0 0.0
        %5284 = vmatprep.subr.mxu0 0.0
        %5285 = vmatpush1.msra.mxu0 0.0
        %5286 = vmatprep.subr.mxu0 0.0
        %5287 = vmatpush1.msra.mxu0 0.0
        %5288 = vmatprep.subr.mxu0 0.0
        %5289 = vmatpush1.msra.mxu0 0.0
        %5290 = vmatprep.subr.mxu0 0.0
        %5291 = vmatpush1.msra.mxu0 0.0
        %5292 = vmatprep.subr.mxu0 0.0
        %5293 = vmatpush1.msra.mxu0 0.0
        %5294 = vmatprep.subr.mxu0 0.0
        %5295 = vmatpush1.msra.mxu0 0.0
        %5296 = vmatprep.subr.mxu0 0.0
        %v5297 = vand.u32 %v1704, 4294901760
        %v5298 = vsub.f32 %v1704, %v5297
        %v5299 = vand.u32 %v5298, 4294901760
        %5300 = vmatpush1.msra.mxu0 %v5299
        %5301 = vmatprep.subr.mxu0 0.0
        %5302 = vmatpush2.msra.mxu0 0.0
        %5303 = vmatprep.subr.mxu0 0.0
        %5304 = vmatpush2.msra.mxu0 0.0
        %5305 = vmatprep.subr.mxu0 0.0
        %5306 = vmatpush2.msra.mxu0 0.0
        %5307 = vmatprep.subr.mxu0 0.0
        %5308 = vmatpush2.msra.mxu0 0.0
        %5309 = vmatprep.subr.mxu0 0.0
        %5310 = vmatpush2.msra.mxu0 0.0
        %5311 = vmatprep.subr.mxu0 0.0
        %5312 = vmatpush2.msra.mxu0 0.0
        %5313 = vmatprep.subr.mxu0 0.0
        %5314 = vmatpush2.msra.mxu0 0.0
        %5315 = vmatprep.subr.mxu0 0.0
        %5316 = vmatpush2.msra.mxu0 0.0
        %5317 = vmatprep.subr.mxu0 0.0
        %5318 = vmatpush2.msra.mxu0 0.0
        %5319 = vmatprep.subr.mxu0 0.0
        %5320 = vmatpush2.msra.mxu0 0.0
        %5321 = vmatprep.subr.mxu0 0.0
        %5322 = vmatpush2.msra.mxu0 0.0
        %5323 = vmatprep.subr.mxu0 0.0
        %5324 = vmatpush2.msra.mxu0 0.0
        %5325 = vmatprep.subr.mxu0 0.0
        %5326 = vmatpush2.msra.mxu0 0.0
        %5327 = vmatprep.subr.mxu0 0.0
        %5328 = vmatpush2.msra.mxu0 0.0
        %5329 = vmatprep.subr.mxu0 0.0
        %5330 = vmatpush2.msra.mxu0 0.0
        %5331 = vmatprep.subr.mxu0 0.0
        %5332 = vmatpush2.msra.mxu0 0.0
        %5333 = vmatprep.mubr.f32.mxu0 0.0
        %v5334 = vand.u32 %v4964, 4294901760
        %5335 = vmatmul.mubr.f32.gmra.mxu0 %v5334
        %v5336 = vpop.f32.mrf.mxu0
        %v5337 = vadd.f32 %v5263, %v5336
        %v5338 = vpop.f32.mrf.mxu0
        %5339 = vdwg.mxu0
        %5340 = vmatprep.subr.mxu0 0.0
        %5341 = vmatpush1.msra.mxu0 0.0
        %5342 = vmatprep.subr.mxu0 0.0
        %5343 = vmatpush1.msra.mxu0 0.0
        %5344 = vmatprep.subr.mxu0 0.0
        %5345 = vmatpush1.msra.mxu0 0.0
        %5346 = vmatprep.subr.mxu0 0.0
        %5347 = vmatpush1.msra.mxu0 0.0
        %5348 = vmatprep.subr.mxu0 0.0
        %5349 = vmatpush1.msra.mxu0 0.0
        %5350 = vmatprep.subr.mxu0 0.0
        %5351 = vmatpush1.msra.mxu0 0.0
        %5352 = vmatprep.subr.mxu0 0.0
        %5353 = vmatpush1.msra.mxu0 0.0
        %5354 = vmatprep.subr.mxu0 0.0
        %5355 = vmatpush1.msra.mxu0 0.0
        %5356 = vmatprep.subr.mxu0 0.0
        %5357 = vmatpush1.msra.mxu0 0.0
        %5358 = vmatprep.subr.mxu0 0.0
        %5359 = vmatpush1.msra.mxu0 0.0
        %5360 = vmatprep.subr.mxu0 0.0
        %5361 = vmatpush1.msra.mxu0 0.0
        %5362 = vmatprep.subr.mxu0 0.0
        %5363 = vmatpush1.msra.mxu0 0.0
        %5364 = vmatprep.subr.mxu0 0.0
        %5365 = vmatpush1.msra.mxu0 0.0
        %5366 = vmatprep.subr.mxu0 0.0
        %5367 = vmatpush1.msra.mxu0 0.0
        %5368 = vmatprep.subr.mxu0 0.0
        %5369 = vmatpush1.msra.mxu0 0.0
        %5370 = vmatprep.subr.mxu0 0.0
        %v5371 = vand.u32 %v1704, 4294901760
        %5372 = vmatpush1.msra.mxu0 %v5371
        %5373 = vmatprep.subr.mxu0 0.0
        %5374 = vmatpush2.msra.mxu0 0.0
        %5375 = vmatprep.subr.mxu0 0.0
        %5376 = vmatpush2.msra.mxu0 0.0
        %5377 = vmatprep.subr.mxu0 0.0
        %5378 = vmatpush2.msra.mxu0 0.0
        %5379 = vmatprep.subr.mxu0 0.0
        %5380 = vmatpush2.msra.mxu0 0.0
        %5381 = vmatprep.subr.mxu0 0.0
        %5382 = vmatpush2.msra.mxu0 0.0
        %5383 = vmatprep.subr.mxu0 0.0
        %5384 = vmatpush2.msra.mxu0 0.0
        %5385 = vmatprep.subr.mxu0 0.0
        %5386 = vmatpush2.msra.mxu0 0.0
        %5387 = vmatprep.subr.mxu0 0.0
        %5388 = vmatpush2.msra.mxu0 0.0
        %5389 = vmatprep.subr.mxu0 0.0
        %5390 = vmatpush2.msra.mxu0 0.0
        %5391 = vmatprep.subr.mxu0 0.0
        %5392 = vmatpush2.msra.mxu0 0.0
        %5393 = vmatprep.subr.mxu0 0.0
        %5394 = vmatpush2.msra.mxu0 0.0
        %5395 = vmatprep.subr.mxu0 0.0
        %5396 = vmatpush2.msra.mxu0 0.0
        %5397 = vmatprep.subr.mxu0 0.0
        %5398 = vmatpush2.msra.mxu0 0.0
        %5399 = vmatprep.subr.mxu0 0.0
        %5400 = vmatpush2.msra.mxu0 0.0
        %5401 = vmatprep.subr.mxu0 0.0
        %5402 = vmatpush2.msra.mxu0 0.0
        %5403 = vmatprep.subr.mxu0 0.0
        %5404 = vmatpush2.msra.mxu0 0.0
        %5405 = vmatprep.mubr.f32.mxu0 0.0
        %v5406 = vand.u32 %v4964, 4294901760
        %5407 = vmatmul.mubr.f32.gmra.mxu0 %v5406
        %v5408 = vpop.f32.mrf.mxu0
        %v5409 = vadd.f32 %v5337, %v5408
        %v5410 = vpop.f32.mrf.mxu0
        %5411 = vdwg.mxu0
        %v5412 = vsel %vm2207, %v5409, -inf
        %5413 = vmax.xlane.f32.xlu0 %v5412
        %v5414 = vpop.xlane.xlu0 %5413
        %v5415 = vsub.f32 %v5409, %v5414
        %v5416 = vmul.f32 %v5415, 1.442695
        %v5417 = vpow.pop %v5416
        %v5418 = vsel %vm2207, %v5417, 0.0
        %5419 = vadd.xlane.f32.xlu0 %v5418
        %v5420 = vpop.xlane.xlu0 %5419
        %v5421 = vrcp.pop %v5420
        %v5422 = vmul.f32 %v5417, %v5421
        %s5423 = scalar_lea.vmem %s567, 24 [#allocation13]
        %5424 = vst.msk [vmem:[%s5423] sm:$0xff] %vm2207, %v5422
        %5425 = vrot.lane.b32.xlu0 %v2204, 104
        %v5426 = vpop.permute.xlu0 %5425
        %v5429 = vsel %vm2207, %v5422, 0
        %5431 = vmatprep.subr.mxu0 0.0
        %5432 = vmatpush1.msra.mxu0 0.0
        %5433 = vmatprep.subr.mxu0 0.0
        %5434 = vmatpush1.msra.mxu0 0.0
        %5435 = vmatprep.subr.mxu0 0.0
        %5436 = vmatpush1.msra.mxu0 0.0
        %5437 = vmatprep.subr.mxu0 0.0
        %5438 = vmatpush1.msra.mxu0 0.0
        %5439 = vmatprep.subr.mxu0 0.0
        %5440 = vmatpush1.msra.mxu0 0.0
        %5441 = vmatprep.subr.mxu0 0.0
        %5442 = vmatpush1.msra.mxu0 0.0
        %5443 = vmatprep.subr.mxu0 0.0
        %5444 = vmatpush1.msra.mxu0 0.0
        %5445 = vmatprep.subr.mxu0 0.0
        %5446 = vmatpush1.msra.mxu0 0.0
        %5447 = vmatprep.subr.mxu0 0.0
        %5448 = vmatpush1.msra.mxu0 0.0
        %5449 = vmatprep.subr.mxu0 0.0
        %5450 = vmatpush1.msra.mxu0 0.0
        %5451 = vmatprep.subr.mxu0 0.0
        %5452 = vmatpush1.msra.mxu0 0.0
        %5453 = vmatprep.subr.mxu0 0.0
        %5454 = vmatpush1.msra.mxu0 0.0
        %5455 = vmatprep.subr.mxu0 0.0
        %5456 = vmatpush1.msra.mxu0 0.0
        %5457 = vmatprep.subr.mxu0 0.0
        %5458 = vmatpush1.msra.mxu0 0.0
        %5459 = vmatprep.subr.mxu0 0.0
        %5460 = vmatpush1.msra.mxu0 0.0
        %5461 = vmatprep.subr.mxu0 0.0
        %v5462 = vand.u32 %v5426, 4294901760
        %5463 = vmatpush1.msra.mxu0 %v5462
        %5464 = vmatprep.subr.mxu0 0.0
        %5465 = vmatpush2.msra.mxu0 0.0
        %5466 = vmatprep.subr.mxu0 0.0
        %5467 = vmatpush2.msra.mxu0 0.0
        %5468 = vmatprep.subr.mxu0 0.0
        %5469 = vmatpush2.msra.mxu0 0.0
        %5470 = vmatprep.subr.mxu0 0.0
        %5471 = vmatpush2.msra.mxu0 0.0
        %5472 = vmatprep.subr.mxu0 0.0
        %5473 = vmatpush2.msra.mxu0 0.0
        %5474 = vmatprep.subr.mxu0 0.0
        %5475 = vmatpush2.msra.mxu0 0.0
        %5476 = vmatprep.subr.mxu0 0.0
        %5477 = vmatpush2.msra.mxu0 0.0
        %5478 = vmatprep.subr.mxu0 0.0
        %5479 = vmatpush2.msra.mxu0 0.0
        %5480 = vmatprep.subr.mxu0 0.0
        %5481 = vmatpush2.msra.mxu0 0.0
        %5482 = vmatprep.subr.mxu0 0.0
        %5483 = vmatpush2.msra.mxu0 0.0
        %5484 = vmatprep.subr.mxu0 0.0
        %5485 = vmatpush2.msra.mxu0 0.0
        %5486 = vmatprep.subr.mxu0 0.0
        %5487 = vmatpush2.msra.mxu0 0.0
        %5488 = vmatprep.subr.mxu0 0.0
        %5489 = vmatpush2.msra.mxu0 0.0
        %5490 = vmatprep.subr.mxu0 0.0
        %5491 = vmatpush2.msra.mxu0 0.0
        %5492 = vmatprep.subr.mxu0 0.0
        %5493 = vmatpush2.msra.mxu0 0.0
        %5494 = vmatprep.subr.mxu0 0.0
        %5495 = vmatpush2.msra.mxu0 0.0
        %5496 = vmatprep.mubr.f32.mxu0 0.0
        %v5497 = vand.u32 %v5429, 4294901760
        %v5498 = vsub.f32 %v5429, %v5497
        %v5499 = vand.u32 %v5498, 4294901760
        %v5500 = vsub.f32 %v5498, %v5499
        %v5501 = vand.u32 %v5500, 4294901760
        %5502 = vmatmul.mubr.f32.gmra.mxu0 %v5501
        %v5503 = vpop.f32.mrf.mxu0
        %v5504 = vadd.f32 0.0, %v5503
        %v5505 = vpop.f32.mrf.mxu0
        %5506 = vdwg.mxu0
        %5507 = vmatprep.subr.mxu0 0.0
        %5508 = vmatpush1.msra.mxu0 0.0
        %5509 = vmatprep.subr.mxu0 0.0
        %5510 = vmatpush1.msra.mxu0 0.0
        %5511 = vmatprep.subr.mxu0 0.0
        %5512 = vmatpush1.msra.mxu0 0.0
        %5513 = vmatprep.subr.mxu0 0.0
        %5514 = vmatpush1.msra.mxu0 0.0
        %5515 = vmatprep.subr.mxu0 0.0
        %5516 = vmatpush1.msra.mxu0 0.0
        %5517 = vmatprep.subr.mxu0 0.0
        %5518 = vmatpush1.msra.mxu0 0.0
        %5519 = vmatprep.subr.mxu0 0.0
        %5520 = vmatpush1.msra.mxu0 0.0
        %5521 = vmatprep.subr.mxu0 0.0
        %5522 = vmatpush1.msra.mxu0 0.0
        %5523 = vmatprep.subr.mxu0 0.0
        %5524 = vmatpush1.msra.mxu0 0.0
        %5525 = vmatprep.subr.mxu0 0.0
        %5526 = vmatpush1.msra.mxu0 0.0
        %5527 = vmatprep.subr.mxu0 0.0
        %5528 = vmatpush1.msra.mxu0 0.0
        %5529 = vmatprep.subr.mxu0 0.0
        %5530 = vmatpush1.msra.mxu0 0.0
        %5531 = vmatprep.subr.mxu0 0.0
        %5532 = vmatpush1.msra.mxu0 0.0
        %5533 = vmatprep.subr.mxu0 0.0
        %5534 = vmatpush1.msra.mxu0 0.0
        %5535 = vmatprep.subr.mxu0 0.0
        %5536 = vmatpush1.msra.mxu0 0.0
        %5537 = vmatprep.subr.mxu0 0.0
        %v5538 = vand.u32 %v5426, 4294901760
        %v5539 = vsub.f32 %v5426, %v5538
        %v5540 = vand.u32 %v5539, 4294901760
        %v5541 = vsub.f32 %v5539, %v5540
        %v5542 = vand.u32 %v5541, 4294901760
        %5543 = vmatpush1.msra.mxu0 %v5542
        %5544 = vmatprep.subr.mxu0 0.0
        %5545 = vmatpush2.msra.mxu0 0.0
        %5546 = vmatprep.subr.mxu0 0.0
        %5547 = vmatpush2.msra.mxu0 0.0
        %5548 = vmatprep.subr.mxu0 0.0
        %5549 = vmatpush2.msra.mxu0 0.0
        %5550 = vmatprep.subr.mxu0 0.0
        %5551 = vmatpush2.msra.mxu0 0.0
        %5552 = vmatprep.subr.mxu0 0.0
        %5553 = vmatpush2.msra.mxu0 0.0
        %5554 = vmatprep.subr.mxu0 0.0
        %5555 = vmatpush2.msra.mxu0 0.0
        %5556 = vmatprep.subr.mxu0 0.0
        %5557 = vmatpush2.msra.mxu0 0.0
        %5558 = vmatprep.subr.mxu0 0.0
        %5559 = vmatpush2.msra.mxu0 0.0
        %5560 = vmatprep.subr.mxu0 0.0
        %5561 = vmatpush2.msra.mxu0 0.0
        %5562 = vmatprep.subr.mxu0 0.0
        %5563 = vmatpush2.msra.mxu0 0.0
        %5564 = vmatprep.subr.mxu0 0.0
        %5565 = vmatpush2.msra.mxu0 0.0
        %5566 = vmatprep.subr.mxu0 0.0
        %5567 = vmatpush2.msra.mxu0 0.0
        %5568 = vmatprep.subr.mxu0 0.0
        %5569 = vmatpush2.msra.mxu0 0.0
        %5570 = vmatprep.subr.mxu0 0.0
        %5571 = vmatpush2.msra.mxu0 0.0
        %5572 = vmatprep.subr.mxu0 0.0
        %5573 = vmatpush2.msra.mxu0 0.0
        %5574 = vmatprep.subr.mxu0 0.0
        %5575 = vmatpush2.msra.mxu0 0.0
        %5576 = vmatprep.mubr.f32.mxu0 0.0
        %v5577 = vand.u32 %v5429, 4294901760
        %5578 = vmatmul.mubr.f32.gmra.mxu0 %v5577
        %v5579 = vpop.f32.mrf.mxu0
        %v5580 = vadd.f32 %v5504, %v5579
        %v5581 = vpop.f32.mrf.mxu0
        %5582 = vdwg.mxu0
        %5583 = vmatprep.subr.mxu0 0.0
        %5584 = vmatpush1.msra.mxu0 0.0
        %5585 = vmatprep.subr.mxu0 0.0
        %5586 = vmatpush1.msra.mxu0 0.0
        %5587 = vmatprep.subr.mxu0 0.0
        %5588 = vmatpush1.msra.mxu0 0.0
        %5589 = vmatprep.subr.mxu0 0.0
        %5590 = vmatpush1.msra.mxu0 0.0
        %5591 = vmatprep.subr.mxu0 0.0
        %5592 = vmatpush1.msra.mxu0 0.0
        %5593 = vmatprep.subr.mxu0 0.0
        %5594 = vmatpush1.msra.mxu0 0.0
        %5595 = vmatprep.subr.mxu0 0.0
        %5596 = vmatpush1.msra.mxu0 0.0
        %5597 = vmatprep.subr.mxu0 0.0
        %5598 = vmatpush1.msra.mxu0 0.0
        %5599 = vmatprep.subr.mxu0 0.0
        %5600 = vmatpush1.msra.mxu0 0.0
        %5601 = vmatprep.subr.mxu0 0.0
        %5602 = vmatpush1.msra.mxu0 0.0
        %5603 = vmatprep.subr.mxu0 0.0
        %5604 = vmatpush1.msra.mxu0 0.0
        %5605 = vmatprep.subr.mxu0 0.0
        %5606 = vmatpush1.msra.mxu0 0.0
        %5607 = vmatprep.subr.mxu0 0.0
        %5608 = vmatpush1.msra.mxu0 0.0
        %5609 = vmatprep.subr.mxu0 0.0
        %5610 = vmatpush1.msra.mxu0 0.0
        %5611 = vmatprep.subr.mxu0 0.0
        %5612 = vmatpush1.msra.mxu0 0.0
        %5613 = vmatprep.subr.mxu0 0.0
        %v5614 = vand.u32 %v5426, 4294901760
        %v5615 = vsub.f32 %v5426, %v5614
        %5616 = vmatpush1.msra.mxu0 %v5615
        %5617 = vmatprep.subr.mxu0 0.0
        %5618 = vmatpush2.msra.mxu0 0.0
        %5619 = vmatprep.subr.mxu0 0.0
        %5620 = vmatpush2.msra.mxu0 0.0
        %5621 = vmatprep.subr.mxu0 0.0
        %5622 = vmatpush2.msra.mxu0 0.0
        %5623 = vmatprep.subr.mxu0 0.0
        %5624 = vmatpush2.msra.mxu0 0.0
        %5625 = vmatprep.subr.mxu0 0.0
        %5626 = vmatpush2.msra.mxu0 0.0
        %5627 = vmatprep.subr.mxu0 0.0
        %5628 = vmatpush2.msra.mxu0 0.0
        %5629 = vmatprep.subr.mxu0 0.0
        %5630 = vmatpush2.msra.mxu0 0.0
        %5631 = vmatprep.subr.mxu0 0.0
        %5632 = vmatpush2.msra.mxu0 0.0
        %5633 = vmatprep.subr.mxu0 0.0
        %5634 = vmatpush2.msra.mxu0 0.0
        %5635 = vmatprep.subr.mxu0 0.0
        %5636 = vmatpush2.msra.mxu0 0.0
        %5637 = vmatprep.subr.mxu0 0.0
        %5638 = vmatpush2.msra.mxu0 0.0
        %5639 = vmatprep.subr.mxu0 0.0
        %5640 = vmatpush2.msra.mxu0 0.0
        %5641 = vmatprep.subr.mxu0 0.0
        %5642 = vmatpush2.msra.mxu0 0.0
        %5643 = vmatprep.subr.mxu0 0.0
        %5644 = vmatpush2.msra.mxu0 0.0
        %5645 = vmatprep.subr.mxu0 0.0
        %5646 = vmatpush2.msra.mxu0 0.0
        %5647 = vmatprep.subr.mxu0 0.0
        %5648 = vmatpush2.msra.mxu0 0.0
        %5649 = vmatprep.mubr.f32.mxu0 0.0
        %v5650 = vand.u32 %v5429, 4294901760
        %v5651 = vsub.f32 %v5429, %v5650
        %5652 = vmatmul.mubr.f32.gmra.mxu0 %v5651
        %v5653 = vpop.f32.mrf.mxu0
        %v5654 = vadd.f32 %v5580, %v5653
        %v5655 = vpop.f32.mrf.mxu0
        %5656 = vdwg.mxu0
        %5657 = vmatprep.subr.mxu0 0.0
        %5658 = vmatpush1.msra.mxu0 0.0
        %5659 = vmatprep.subr.mxu0 0.0
        %5660 = vmatpush1.msra.mxu0 0.0
        %5661 = vmatprep.subr.mxu0 0.0
        %5662 = vmatpush1.msra.mxu0 0.0
        %5663 = vmatprep.subr.mxu0 0.0
        %5664 = vmatpush1.msra.mxu0 0.0
        %5665 = vmatprep.subr.mxu0 0.0
        %5666 = vmatpush1.msra.mxu0 0.0
        %5667 = vmatprep.subr.mxu0 0.0
        %5668 = vmatpush1.msra.mxu0 0.0
        %5669 = vmatprep.subr.mxu0 0.0
        %5670 = vmatpush1.msra.mxu0 0.0
        %5671 = vmatprep.subr.mxu0 0.0
        %5672 = vmatpush1.msra.mxu0 0.0
        %5673 = vmatprep.subr.mxu0 0.0
        %5674 = vmatpush1.msra.mxu0 0.0
        %5675 = vmatprep.subr.mxu0 0.0
        %5676 = vmatpush1.msra.mxu0 0.0
        %5677 = vmatprep.subr.mxu0 0.0
        %5678 = vmatpush1.msra.mxu0 0.0
        %5679 = vmatprep.subr.mxu0 0.0
        %5680 = vmatpush1.msra.mxu0 0.0
        %5681 = vmatprep.subr.mxu0 0.0
        %5682 = vmatpush1.msra.mxu0 0.0
        %5683 = vmatprep.subr.mxu0 0.0
        %5684 = vmatpush1.msra.mxu0 0.0
        %5685 = vmatprep.subr.mxu0 0.0
        %5686 = vmatpush1.msra.mxu0 0.0
        %5687 = vmatprep.subr.mxu0 0.0
        %v5688 = vand.u32 %v5426, 4294901760
        %5689 = vmatpush1.msra.mxu0 %v5688
        %5690 = vmatprep.subr.mxu0 0.0
        %5691 = vmatpush2.msra.mxu0 0.0
        %5692 = vmatprep.subr.mxu0 0.0
        %5693 = vmatpush2.msra.mxu0 0.0
        %5694 = vmatprep.subr.mxu0 0.0
        %5695 = vmatpush2.msra.mxu0 0.0
        %5696 = vmatprep.subr.mxu0 0.0
        %5697 = vmatpush2.msra.mxu0 0.0
        %5698 = vmatprep.subr.mxu0 0.0
        %5699 = vmatpush2.msra.mxu0 0.0
        %5700 = vmatprep.subr.mxu0 0.0
        %5701 = vmatpush2.msra.mxu0 0.0
        %5702 = vmatprep.subr.mxu0 0.0
        %5703 = vmatpush2.msra.mxu0 0.0
        %5704 = vmatprep.subr.mxu0 0.0
        %5705 = vmatpush2.msra.mxu0 0.0
        %5706 = vmatprep.subr.mxu0 0.0
        %5707 = vmatpush2.msra.mxu0 0.0
        %5708 = vmatprep.subr.mxu0 0.0
        %5709 = vmatpush2.msra.mxu0 0.0
        %5710 = vmatprep.subr.mxu0 0.0
        %5711 = vmatpush2.msra.mxu0 0.0
        %5712 = vmatprep.subr.mxu0 0.0
        %5713 = vmatpush2.msra.mxu0 0.0
        %5714 = vmatprep.subr.mxu0 0.0
        %5715 = vmatpush2.msra.mxu0 0.0
        %5716 = vmatprep.subr.mxu0 0.0
        %5717 = vmatpush2.msra.mxu0 0.0
        %5718 = vmatprep.subr.mxu0 0.0
        %5719 = vmatpush2.msra.mxu0 0.0
        %5720 = vmatprep.subr.mxu0 0.0
        %5721 = vmatpush2.msra.mxu0 0.0
        %5722 = vmatprep.mubr.f32.mxu0 0.0
        %v5723 = vand.u32 %v5429, 4294901760
        %v5724 = vsub.f32 %v5429, %v5723
        %v5725 = vand.u32 %v5724, 4294901760
        %5726 = vmatmul.mubr.f32.gmra.mxu0 %v5725
        %v5727 = vpop.f32.mrf.mxu0
        %v5728 = vadd.f32 %v5654, %v5727
        %v5729 = vpop.f32.mrf.mxu0
        %5730 = vdwg.mxu0
        %5731 = vmatprep.subr.mxu0 0.0
        %5732 = vmatpush1.msra.mxu0 0.0
        %5733 = vmatprep.subr.mxu0 0.0
        %5734 = vmatpush1.msra.mxu0 0.0
        %5735 = vmatprep.subr.mxu0 0.0
        %5736 = vmatpush1.msra.mxu0 0.0
        %5737 = vmatprep.subr.mxu0 0.0
        %5738 = vmatpush1.msra.mxu0 0.0
        %5739 = vmatprep.subr.mxu0 0.0
        %5740 = vmatpush1.msra.mxu0 0.0
        %5741 = vmatprep.subr.mxu0 0.0
        %5742 = vmatpush1.msra.mxu0 0.0
        %5743 = vmatprep.subr.mxu0 0.0
        %5744 = vmatpush1.msra.mxu0 0.0
        %5745 = vmatprep.subr.mxu0 0.0
        %5746 = vmatpush1.msra.mxu0 0.0
        %5747 = vmatprep.subr.mxu0 0.0
        %5748 = vmatpush1.msra.mxu0 0.0
        %5749 = vmatprep.subr.mxu0 0.0
        %5750 = vmatpush1.msra.mxu0 0.0
        %5751 = vmatprep.subr.mxu0 0.0
        %5752 = vmatpush1.msra.mxu0 0.0
        %5753 = vmatprep.subr.mxu0 0.0
        %5754 = vmatpush1.msra.mxu0 0.0
        %5755 = vmatprep.subr.mxu0 0.0
        %5756 = vmatpush1.msra.mxu0 0.0
        %5757 = vmatprep.subr.mxu0 0.0
        %5758 = vmatpush1.msra.mxu0 0.0
        %5759 = vmatprep.subr.mxu0 0.0
        %5760 = vmatpush1.msra.mxu0 0.0
        %5761 = vmatprep.subr.mxu0 0.0
        %v5762 = vand.u32 %v5426, 4294901760
        %v5763 = vsub.f32 %v5426, %v5762
        %v5764 = vand.u32 %v5763, 4294901760
        %5765 = vmatpush1.msra.mxu0 %v5764
        %5766 = vmatprep.subr.mxu0 0.0
        %5767 = vmatpush2.msra.mxu0 0.0
        %5768 = vmatprep.subr.mxu0 0.0
        %5769 = vmatpush2.msra.mxu0 0.0
        %5770 = vmatprep.subr.mxu0 0.0
        %5771 = vmatpush2.msra.mxu0 0.0
        %5772 = vmatprep.subr.mxu0 0.0
        %5773 = vmatpush2.msra.mxu0 0.0
        %5774 = vmatprep.subr.mxu0 0.0
        %5775 = vmatpush2.msra.mxu0 0.0
        %5776 = vmatprep.subr.mxu0 0.0
        %5777 = vmatpush2.msra.mxu0 0.0
        %5778 = vmatprep.subr.mxu0 0.0
        %5779 = vmatpush2.msra.mxu0 0.0
        %5780 = vmatprep.subr.mxu0 0.0
        %5781 = vmatpush2.msra.mxu0 0.0
        %5782 = vmatprep.subr.mxu0 0.0
        %5783 = vmatpush2.msra.mxu0 0.0
        %5784 = vmatprep.subr.mxu0 0.0
        %5785 = vmatpush2.msra.mxu0 0.0
        %5786 = vmatprep.subr.mxu0 0.0
        %5787 = vmatpush2.msra.mxu0 0.0
        %5788 = vmatprep.subr.mxu0 0.0
        %5789 = vmatpush2.msra.mxu0 0.0
        %5790 = vmatprep.subr.mxu0 0.0
        %5791 = vmatpush2.msra.mxu0 0.0
        %5792 = vmatprep.subr.mxu0 0.0
        %5793 = vmatpush2.msra.mxu0 0.0
        %5794 = vmatprep.subr.mxu0 0.0
        %5795 = vmatpush2.msra.mxu0 0.0
        %5796 = vmatprep.subr.mxu0 0.0
        %5797 = vmatpush2.msra.mxu0 0.0
        %5798 = vmatprep.mubr.f32.mxu0 0.0
        %v5799 = vand.u32 %v5429, 4294901760
        %5800 = vmatmul.mubr.f32.gmra.mxu0 %v5799
        %v5801 = vpop.f32.mrf.mxu0
        %v5802 = vadd.f32 %v5728, %v5801
        %v5803 = vpop.f32.mrf.mxu0
        %5804 = vdwg.mxu0
        %5805 = vmatprep.subr.mxu0 0.0
        %5806 = vmatpush1.msra.mxu0 0.0
        %5807 = vmatprep.subr.mxu0 0.0
        %5808 = vmatpush1.msra.mxu0 0.0
        %5809 = vmatprep.subr.mxu0 0.0
        %5810 = vmatpush1.msra.mxu0 0.0
        %5811 = vmatprep.subr.mxu0 0.0
        %5812 = vmatpush1.msra.mxu0 0.0
        %5813 = vmatprep.subr.mxu0 0.0
        %5814 = vmatpush1.msra.mxu0 0.0
        %5815 = vmatprep.subr.mxu0 0.0
        %5816 = vmatpush1.msra.mxu0 0.0
        %5817 = vmatprep.subr.mxu0 0.0
        %5818 = vmatpush1.msra.mxu0 0.0
        %5819 = vmatprep.subr.mxu0 0.0
        %5820 = vmatpush1.msra.mxu0 0.0
        %5821 = vmatprep.subr.mxu0 0.0
        %5822 = vmatpush1.msra.mxu0 0.0
        %5823 = vmatprep.subr.mxu0 0.0
        %5824 = vmatpush1.msra.mxu0 0.0
        %5825 = vmatprep.subr.mxu0 0.0
        %5826 = vmatpush1.msra.mxu0 0.0
        %5827 = vmatprep.subr.mxu0 0.0
        %5828 = vmatpush1.msra.mxu0 0.0
        %5829 = vmatprep.subr.mxu0 0.0
        %5830 = vmatpush1.msra.mxu0 0.0
        %5831 = vmatprep.subr.mxu0 0.0
        %5832 = vmatpush1.msra.mxu0 0.0
        %5833 = vmatprep.subr.mxu0 0.0
        %5834 = vmatpush1.msra.mxu0 0.0
        %5835 = vmatprep.subr.mxu0 0.0
        %v5836 = vand.u32 %v5426, 4294901760
        %5837 = vmatpush1.msra.mxu0 %v5836
        %5838 = vmatprep.subr.mxu0 0.0
        %5839 = vmatpush2.msra.mxu0 0.0
        %5840 = vmatprep.subr.mxu0 0.0
        %5841 = vmatpush2.msra.mxu0 0.0
        %5842 = vmatprep.subr.mxu0 0.0
        %5843 = vmatpush2.msra.mxu0 0.0
        %5844 = vmatprep.subr.mxu0 0.0
        %5845 = vmatpush2.msra.mxu0 0.0
        %5846 = vmatprep.subr.mxu0 0.0
        %5847 = vmatpush2.msra.mxu0 0.0
        %5848 = vmatprep.subr.mxu0 0.0
        %5849 = vmatpush2.msra.mxu0 0.0
        %5850 = vmatprep.subr.mxu0 0.0
        %5851 = vmatpush2.msra.mxu0 0.0
        %5852 = vmatprep.subr.mxu0 0.0
        %5853 = vmatpush2.msra.mxu0 0.0
        %5854 = vmatprep.subr.mxu0 0.0
        %5855 = vmatpush2.msra.mxu0 0.0
        %5856 = vmatprep.subr.mxu0 0.0
        %5857 = vmatpush2.msra.mxu0 0.0
        %5858 = vmatprep.subr.mxu0 0.0
        %5859 = vmatpush2.msra.mxu0 0.0
        %5860 = vmatprep.subr.mxu0 0.0
        %5861 = vmatpush2.msra.mxu0 0.0
        %5862 = vmatprep.subr.mxu0 0.0
        %5863 = vmatpush2.msra.mxu0 0.0
        %5864 = vmatprep.subr.mxu0 0.0
        %5865 = vmatpush2.msra.mxu0 0.0
        %5866 = vmatprep.subr.mxu0 0.0
        %5867 = vmatpush2.msra.mxu0 0.0
        %5868 = vmatprep.subr.mxu0 0.0
        %5869 = vmatpush2.msra.mxu0 0.0
        %5870 = vmatprep.mubr.f32.mxu0 0.0
        %v5871 = vand.u32 %v5429, 4294901760
        %5872 = vmatmul.mubr.f32.gmra.mxu0 %v5871
        %v5873 = vpop.f32.mrf.mxu0
        %v5874 = vadd.f32 %v5802, %v5873
        %v5875 = vpop.f32.mrf.mxu0
        %5876 = vdwg.mxu0
        %5878 = vrot.lane.b32.xlu0 %v5874, 24
        %v5879 = vpop.permute.xlu0 %5878
        %vm5881 = vcmask 261312
        %5882 = vst.msk [vmem:[#allocation2] sm:$0xff] %vm5881, %v5879
        %v5883 = vld [vmem:[#allocation2] sm:$0xff]
        %5884 = vst.msk [vmem:[%s560] sm:$0xff] %vm598, %v5883
        %s5885 = sand.u32 %s291, 1
        %s5886 = scalar_lea.sflag [#allocation5], %s5885
        %s5887 = sand.u32 %s291, 1
        %s5888 = smul.addr %s5887, 8
        %s5889 = scalar_lea.vmem [#allocation12], %s5888
        %s5890 = sand.u32 %s319, 1
        %s5891 = scalar_lea.sflag [#allocation14], %s5890
        %s5892 = sand.u32 %s319, 1
        %s5893 = smul.addr %s5892, 32
        %s5894 = scalar_lea.vmem [#allocation13], %s5893
        // Predicated region
        $region77: #{tpu_custom_call.1} parent=55 // pred_check
          %p5895 = pneg %p301
        $region78: #{tpu_custom_call.1} parent=55 // pred_check_branch
          %5897 = sbr.rel (%p5895) target = $region80
        $region79: #{tpu_custom_call.1} parent=55 // pred_region
          %s5899 = ssub.s32 128, 128
          %5900 = vsyncadd %s5886, %s5899
          %s5901 = sadd.s32 %s39, %s40
          %s5902 = smul.addr %s5901, 128
          %s5903 = scalar_lea.hbm %s9, %s5902
          %s5905 = sshll.u32 %s5889, 4
          %s5906 = int_to_ptr.vmem [resolvable:$true] %s5905
          %5908 = dma.vmem_to_hbm [thread:$0]  %s5906, 128, %s5903, %s5886
        $region80: #{tpu_custom_call.1} parent=55 // pred_fallthru
          _
        // Predicated region
        $region81: #{tpu_custom_call.1} parent=55 // pred_check
          %p5909 = pneg %p329
        $region82: #{tpu_custom_call.1} parent=55 // pred_check_branch
          %5911 = sbr.rel (%p5909) target = $region84
        $region83: #{tpu_custom_call.1} parent=55 // pred_region
          %s5912 = smul.u32 4, %s39
          %s5914 = ssub.s32 512, 512
          %5915 = vsyncadd %s5891, %s5914
          %s5916 = smul.addr %s40, 4
          %s5917 = sadd.s32 %s5912, %s5916
          %s5918 = smul.addr %s5917, 128
          %s5919 = scalar_lea.hbm %s10, %s5918
          %s5920 = sshll.u32 %s5894, 4
          %s5921 = int_to_ptr.vmem [resolvable:$true] %s5920
          %5926 = dma.vmem_to_hbm [thread:$0]  %s5921, 512, %s5919, %s5891, 128, 128, 8
        $region84: #{tpu_custom_call.1} parent=55 // pred_fallthru
          _
      $region56: #{tpu_custom_call.1} parent=5 // pred_fallthru
        _
      %p5927 = scmp.le.s32.totalorder 2, %s30
      // Predicated region
      $region85: #{tpu_custom_call.1} parent=5 // pred_check
        %p5928 = pneg %p5927
      $region86: #{tpu_custom_call.1} parent=5 // pred_check_branch
        %5930 = sbr.rel (%p5928) target = $region88
      $region87: #{tpu_custom_call.1} parent=5 // pred_region
        %s5931 = ssub.s32 %s30, 2
        // Predicated region
        $region89: #{tpu_custom_call.1} parent=87 // pred_check
          %p5932 = pneg %p307
        $region90: #{tpu_custom_call.1} parent=87 // pred_check_branch
          %5934 = sbr.rel (%p5932) target = $region92
        $region91: #{tpu_custom_call.1} parent=87 // pred_region
          %s5935 = sand.u32 %s292, 1
          %s5936 = scalar_lea.sflag [#allocation5], %s5935
          %s5937 = sand.u32 %s292, 1
          %s5938 = smul.addr %s5937, 8
          %s5939 = scalar_lea.vmem [#allocation12], %s5938
          %5940 = dma.done %s5936, 128
        $region92: #{tpu_custom_call.1} parent=87 // pred_fallthru
          _
        // Predicated region
        $region93: #{tpu_custom_call.1} parent=87 // pred_check
          %p5941 = pneg %p335
        $region94: #{tpu_custom_call.1} parent=87 // pred_check_branch
          %5943 = sbr.rel (%p5941) target = $region96
        $region95: #{tpu_custom_call.1} parent=87 // pred_region
          %s5944 = sand.u32 %s320, 1
          %s5945 = scalar_lea.sflag [#allocation14], %s5944
          %s5946 = sand.u32 %s320, 1
          %s5947 = smul.addr %s5946, 32
          %s5948 = scalar_lea.vmem [#allocation13], %s5947
          %5949 = dma.done %s5945, 512
        $region96: #{tpu_custom_call.1} parent=87 // pred_fallthru
          _
      $region88: #{tpu_custom_call.1} parent=5 // pred_fallthru
        _
    $region6: #{tpu_custom_call.1} parent=1 // loop_footer
      %s34 = sadd.s32 1, %s30
    $region7: #{tpu_custom_call.1} parent=1 // loop_footer_branch
      %29 = sbr.rel target = $region3
    $region8: #{tpu_custom_call.1} parent=1 // loop_exit
      _
    %5950 = vsyncpa [#allocation4], 1
    %s5951 = scalar_lea.sflag [#allocation4], 1
    %5952 = vsyncpa %s5951, 1
    %5953 = vsyncpa [#allocation7], 1
    %s5954 = scalar_lea.sflag [#allocation7], 1
    %5955 = vsyncpa %s5954, 1
    %5956 = vsyncpa [#allocation10], 1
    %5957 = vsyncpa [#allocation5], 1
    %s5958 = scalar_lea.sflag [#allocation5], 1
    %5959 = vsyncpa %s5958, 1
    %5960 = vsyncpa [#allocation14], 1
    %s5961 = scalar_lea.sflag [#allocation14], 1
    %5962 = vsyncpa %s5961, 1

</llo_original>
